<compile_context>
chip_gen: v6e
topology: v6e:2x2x1
jax: 0.10.0
libtpu: 0.0.40
codegen_flags: <defaults>
</compile_context>

<pallas_src>
import math

import jax
import jax.numpy as jnp
from jax.experimental import pallas as pl
from jax.experimental.pallas import tpu as pltpu


def _icu_mlp_kernel(x_ref, w1_ref, b1_ref, w2_ref, b2_ref, w3_ref, b3_ref,
                    wc_ref, bc_ref, feat_ref, prob_ref):
    # MXU matmuls with bf16 inputs, f32 accumulation.
    x = x_ref[...].astype(jnp.bfloat16)

    h1 = jnp.dot(x, w1_ref[...], preferred_element_type=jnp.float32) + b1_ref[...]
    h1 = jnp.maximum(h1, 0.0).astype(jnp.bfloat16)

    h2 = jnp.dot(h1, w2_ref[...], preferred_element_type=jnp.float32) + b2_ref[...]
    h2 = jnp.maximum(h2, 0.0).astype(jnp.bfloat16)

    feat = jnp.dot(h2, w3_ref[...], preferred_element_type=jnp.float32) + b3_ref[...]
    feat_ref[...] = feat.astype(feat_ref.dtype)

    # 512 -> 1 head: VPU multiply + cross-lane reduce (XLU) + EUP sigmoid; keeps
    # the MXU free instead of a [TM,512]x[512,1] pass using <0.5% of its columns.
    logits = jnp.sum(feat * wc_ref[...], axis=-1, keepdims=True) + bc_ref[...]
    prob = jax.nn.sigmoid(logits)
    # Lane-dense store: broadcast the single prob column across 128 lanes.
    prob_ref[...] = jnp.broadcast_to(prob, prob_ref.shape).astype(prob_ref.dtype)


def icu_mlp(x, params, *, tm=512):
    """x: [B, in_features] float32. Returns (features [B,512], probs [B,1])."""
    B, in_features = x.shape
    w1, b1, w2, b2, w3, b3, wc, bc = (
        params["w1"], params["b1"], params["w2"], params["b2"],
        params["w3"], params["b3"], params["wc"], params["bc"],
    )

    # Batch tile: default 512 (multiple of 256 and 128); fall back to the full
    # (small) batch so the block shape stays legal for tiny B.
    tm = min(tm, B)
    grid = (pl.cdiv(B, tm),)

    # Weights/biases: full-array blocks with a constant index_map -> DMA'd once,
    # VMEM-resident across all batch tiles.
    resident = lambda a: pl.BlockSpec(a.shape, lambda i: (0,) * a.ndim)

    flops = 2 * B * (in_features * 1024 + 1024 * 1024 + 1024 * 512 + 512)
    bytes_accessed = (
        sum(int(a.size) * a.dtype.itemsize for a in (w1, b1, w2, b2, w3, b3, wc, bc))
        + int(x.size) * x.dtype.itemsize
        + B * 512 * 4 + B * 128 * 4
    )

    feat, prob_slab = pl.pallas_call(
        _icu_mlp_kernel,
        out_shape=(
            jax.ShapeDtypeStruct((B, 512), jnp.float32),   # features
            jax.ShapeDtypeStruct((B, 128), jnp.float32),   # lane-padded probs
        ),
        grid=grid,
        in_specs=[
            pl.BlockSpec((tm, in_features), lambda i: (i, 0)),
            resident(w1), resident(b1),
            resident(w2), resident(b2),
            resident(w3), resident(b3),
            resident(wc), resident(bc),
        ],
        out_specs=(
            pl.BlockSpec((tm, 512), lambda i: (i, 0)),
            pl.BlockSpec((tm, 128), lambda i: (i, 0)),
        ),
        compiler_params=pltpu.CompilerParams(
            dimension_semantics=("parallel",),
        ),
        cost_estimate=pl.CostEstimate(
            flops=flops, transcendentals=B, bytes_accessed=bytes_accessed),
    )(x, w1, b1, w2, b2, w3, b3, wc, bc)

    return feat, prob_slab[:, :1]


def _xavier_uniform(key, fan_in, fan_out, dtype=jnp.bfloat16):
    # Matches torch.nn.init.xavier_uniform_ (gain=1): U(-a, a), a = sqrt(6/(fan_in+fan_out)).
    a = math.sqrt(6.0 / (fan_in + fan_out))
    w = jax.random.uniform(key, (fan_in, fan_out), jnp.float32, minval=-a, maxval=a)
    return w.astype(dtype)   # transposed layout [fan_in, fan_out] for x @ W


def init_params(key, in_features):
    k1, k2, k3, k4 = jax.random.split(key, 4)
    return {
        "w1": _xavier_uniform(k1, in_features, 1024),          # bf16
        "b1": jnp.zeros((1, 1024), jnp.float32),
        "w2": _xavier_uniform(k2, 1024, 1024),                 # bf16
        "b2": jnp.zeros((1, 1024), jnp.float32),
        "w3": _xavier_uniform(k3, 1024, 512),                  # bf16
        "b3": jnp.zeros((1, 512), jnp.float32),
        # Classifier head kept f32 as a [1, 512] row vector for the VPU head.
        "wc": _xavier_uniform(k4, 512, 1, dtype=jnp.float32).reshape(1, 512),
        "bc": jnp.zeros((1, 1), jnp.float32),
    }


def _reference(x, p):
    # Pure-JAX f32 reference using the (bf16-quantized) weights upcast to f32.
    w1 = p["w1"].astype(jnp.float32)
    w2 = p["w2"].astype(jnp.float32)
    w3 = p["w3"].astype(jnp.float32)
    h1 = jnp.maximum(x @ w1 + p["b1"], 0.0)
    h2 = jnp.maximum(h1 @ w2 + p["b2"], 0.0)
    feat = h2 @ w3 + p["b3"]
    logits = jnp.sum(feat * p["wc"], axis=-1, keepdims=True) + p["bc"]
    return feat, jax.nn.sigmoid(logits)


if __name__ == "__main__":
    key = jax.random.PRNGKey(0)
    kx, kp = jax.random.split(key)

    B, in_features = 8, 32
    x = jax.random.normal(kx, (B, in_features), jnp.float32)
    params = init_params(kp, in_features)

    feat, prob = jax.block_until_ready(jax.jit(icu_mlp)(x, params))

    ref_feat, ref_prob = _reference(x, params)
    assert feat.shape == (B, 512) and prob.shape == (B, 1)
    # bf16 MXU inputs (f32 accumulation) vs. the f32 reference.
    assert jnp.allclose(feat, ref_feat, atol=3e-2, rtol=3e-2)
    assert jnp.allclose(prob, ref_prob, atol=1e-2, rtol=1e-2)

    print("KERNEL_OK")
</pallas_src>

<mosaic_0001>
module attributes {stable_mosaic.version = 11 : i64} {
  func.func @_icu_mlp_kernel(%arg0: i32, %arg1: memref<8x32xf32, #tpu.memory_space<vmem>>, %arg2: memref<32x1024xbf16, #tpu.memory_space<vmem>>, %arg3: memref<1x1024xf32, #tpu.memory_space<vmem>>, %arg4: memref<1024x1024xbf16, #tpu.memory_space<vmem>>, %arg5: memref<1x1024xf32, #tpu.memory_space<vmem>>, %arg6: memref<1024x512xbf16, #tpu.memory_space<vmem>>, %arg7: memref<1x512xf32, #tpu.memory_space<vmem>>, %arg8: memref<1x512xf32, #tpu.memory_space<vmem>>, %arg9: memref<1x1xf32, #tpu.memory_space<vmem>>, %arg10: memref<8x512xf32, #tpu.memory_space<vmem>>, %arg11: memref<8x128xf32, #tpu.memory_space<vmem>>) attributes {dimension_semantics = [#tpu.dimension_semantics<parallel>], iteration_bounds = array<i64: 1>, scalar_prefetch = 0 : i64, scratch_operands = 0 : i64, tpu.core_type = #tpu.core_type<tc>, window_params = [{transform_indices = @transform_0, window_bounds = array<i64: 8, 32>}, {pipeline_mode = #tpu.pipeline_mode<synchronous>, transform_indices = @transform_1, window_bounds = array<i64: 32, 1024>}, {pipeline_mode = #tpu.pipeline_mode<synchronous>, transform_indices = @transform_2, window_bounds = array<i64: 1, 1024>}, {pipeline_mode = #tpu.pipeline_mode<synchronous>, transform_indices = @transform_3, window_bounds = array<i64: 1024, 1024>}, {pipeline_mode = #tpu.pipeline_mode<synchronous>, transform_indices = @transform_4, window_bounds = array<i64: 1, 1024>}, {pipeline_mode = #tpu.pipeline_mode<synchronous>, transform_indices = @transform_5, window_bounds = array<i64: 1024, 512>}, {pipeline_mode = #tpu.pipeline_mode<synchronous>, transform_indices = @transform_6, window_bounds = array<i64: 1, 512>}, {pipeline_mode = #tpu.pipeline_mode<synchronous>, transform_indices = @transform_7, window_bounds = array<i64: 1, 512>}, {pipeline_mode = #tpu.pipeline_mode<synchronous>, transform_indices = @transform_8, window_bounds = array<i64: 1, 1>}, {transform_indices = @transform_9, window_bounds = array<i64: 8, 512>}, {transform_indices = @transform_10, window_bounds = array<i64: 8, 128>}]} {
    %c0 = arith.constant 0 : index
    %c0_0 = arith.constant 0 : index
    %0 = vector.load %arg1[%c0, %c0_0] : memref<8x32xf32, #tpu.memory_space<vmem>>, vector<8x32xf32>
    %1 = arith.truncf %0 : vector<8x32xf32> to vector<8x32xbf16>
    %c0_1 = arith.constant 0 : index
    %c0_2 = arith.constant 0 : index
    %2 = vector.load %arg2[%c0_1, %c0_2] : memref<32x1024xbf16, #tpu.memory_space<vmem>>, vector<32x1024xbf16>
    %cst = arith.constant dense<0.000000e+00> : vector<8x1024xf32>
    %3 = tpu.matmul %1, %2, %cst {dimension_numbers = #tpu.dot_dimension_numbers<[1], [0], [0], [1], [0, 0, 1, 1], [], []>} : vector<8x32xbf16>, vector<32x1024xbf16>, vector<8x1024xf32> -> vector<8x1024xf32>
    %c0_3 = arith.constant 0 : index
    %c0_4 = arith.constant 0 : index
    %4 = vector.load %arg3[%c0_3, %c0_4] : memref<1x1024xf32, #tpu.memory_space<vmem>>, vector<1x1024xf32>
    %5 = vector.broadcast %4 : vector<1x1024xf32> to vector<8x1024xf32>
    %6 = arith.addf %3, %5 : vector<8x1024xf32>
    %cst_5 = arith.constant 0.000000e+00 : f32
    %7 = vector.broadcast %cst_5 : f32 to vector<8x1024xf32>
    %8 = arith.maximumf %6, %7 : vector<8x1024xf32>
    %9 = arith.truncf %8 : vector<8x1024xf32> to vector<8x1024xbf16>
    %c0_6 = arith.constant 0 : index
    %c0_7 = arith.constant 0 : index
    %10 = vector.load %arg4[%c0_6, %c0_7] : memref<1024x1024xbf16, #tpu.memory_space<vmem>>, vector<1024x1024xbf16>
    %cst_8 = arith.constant dense<0.000000e+00> : vector<8x1024xf32>
    %11 = tpu.matmul %9, %10, %cst_8 {dimension_numbers = #tpu.dot_dimension_numbers<[1], [0], [0], [1], [0, 0, 1, 1], [], []>} : vector<8x1024xbf16>, vector<1024x1024xbf16>, vector<8x1024xf32> -> vector<8x1024xf32>
    %c0_9 = arith.constant 0 : index
    %c0_10 = arith.constant 0 : index
    %12 = vector.load %arg5[%c0_9, %c0_10] : memref<1x1024xf32, #tpu.memory_space<vmem>>, vector<1x1024xf32>
    %13 = vector.broadcast %12 : vector<1x1024xf32> to vector<8x1024xf32>
    %14 = arith.addf %11, %13 : vector<8x1024xf32>
    %cst_11 = arith.constant 0.000000e+00 : f32
    %15 = vector.broadcast %cst_11 : f32 to vector<8x1024xf32>
    %16 = arith.maximumf %14, %15 : vector<8x1024xf32>
    %17 = arith.truncf %16 : vector<8x1024xf32> to vector<8x1024xbf16>
    %c0_12 = arith.constant 0 : index
    %c0_13 = arith.constant 0 : index
    %18 = vector.load %arg6[%c0_12, %c0_13] : memref<1024x512xbf16, #tpu.memory_space<vmem>>, vector<1024x512xbf16>
    %cst_14 = arith.constant dense<0.000000e+00> : vector<8x512xf32>
    %19 = tpu.matmul %17, %18, %cst_14 {dimension_numbers = #tpu.dot_dimension_numbers<[1], [0], [0], [1], [0, 0, 1, 1], [], []>} : vector<8x1024xbf16>, vector<1024x512xbf16>, vector<8x512xf32> -> vector<8x512xf32>
    %c0_15 = arith.constant 0 : index
    %c0_16 = arith.constant 0 : index
    %20 = vector.load %arg7[%c0_15, %c0_16] : memref<1x512xf32, #tpu.memory_space<vmem>>, vector<1x512xf32>
    %21 = vector.broadcast %20 : vector<1x512xf32> to vector<8x512xf32>
    %22 = arith.addf %19, %21 : vector<8x512xf32>
    %c0_17 = arith.constant 0 : index
    %c0_18 = arith.constant 0 : index
    %23 = vector.load %arg10[%c0_17, %c0_18] : memref<8x512xf32, #tpu.memory_space<vmem>>, vector<8x512xf32>
    tpu.vector_store %arg10[%c0_17, %c0_18], %22 {strides = array<i32>} : memref<8x512xf32, #tpu.memory_space<vmem>>, vector<8x512xf32>,
    %c0_19 = arith.constant 0 : index
    %c0_20 = arith.constant 0 : index
    %24 = vector.load %arg8[%c0_19, %c0_20] : memref<1x512xf32, #tpu.memory_space<vmem>>, vector<1x512xf32>
    %25 = vector.broadcast %24 : vector<1x512xf32> to vector<8x512xf32>
    %26 = arith.mulf %22, %25 : vector<8x512xf32>
    %cst_21 = arith.constant dense<0.000000e+00> : vector<8xf32>
    %27 = vector.multi_reduction <add>, %26, %cst_21 [1] : vector<8x512xf32> to vector<8xf32>
    %28 = vector.shape_cast %27 : vector<8xf32> to vector<8x1xf32>
    %c0_22 = arith.constant 0 : index
    %c0_23 = arith.constant 0 : index
    %29 = vector.load %arg9[%c0_22, %c0_23] : memref<1x1xf32, #tpu.memory_space<vmem>>, vector<1x1xf32>
    %30 = vector.broadcast %29 : vector<1x1xf32> to vector<8x1xf32>
    %31 = arith.addf %28, %30 : vector<8x1xf32>
    %32 = arith.negf %31 : vector<8x1xf32>
    %33 = math.exp %32 : vector<8x1xf32>
    %cst_24 = arith.constant 1.000000e+00 : f32
    %34 = vector.broadcast %cst_24 : f32 to vector<8x1xf32>
    %35 = arith.addf %34, %33 : vector<8x1xf32>
    %36 = arith.divf %34, %35 : vector<8x1xf32>
    %37 = vector.shape_cast %36 : vector<8x1xf32> to vector<8x1xf32>
    %38 = vector.broadcast %37 : vector<8x1xf32> to vector<8x128xf32>
    %c0_25 = arith.constant 0 : index
    %c0_26 = arith.constant 0 : index
    %39 = vector.load %arg11[%c0_25, %c0_26] : memref<8x128xf32, #tpu.memory_space<vmem>>, vector<8x128xf32>
    tpu.vector_store %arg11[%c0_25, %c0_26], %38 {strides = array<i32>} : memref<8x128xf32, #tpu.memory_space<vmem>>, vector<8x128xf32>,
    return
  }
  func.func @transform_0(%arg0: i32) -> (i32, i32) {
    %c0_i32 = arith.constant 0 : i32
    %c0_i32_0 = arith.constant 0 : i32
    return %arg0, %c0_i32 : i32, i32
  }
  func.func @transform_1(%arg0: i32) -> (i32, i32) {
    %c0_i32 = arith.constant 0 : i32
    %c0_i32_0 = arith.constant 0 : i32
    %c0_i32_1 = arith.constant 0 : i32
    return %c0_i32, %c0_i32_0 : i32, i32
  }
  func.func @transform_2(%arg0: i32) -> (i32, i32) {
    %c0_i32 = arith.constant 0 : i32
    %c0_i32_0 = arith.constant 0 : i32
    %c0_i32_1 = arith.constant 0 : i32
    return %c0_i32, %c0_i32_0 : i32, i32
  }
  func.func @transform_3(%arg0: i32) -> (i32, i32) {
    %c0_i32 = arith.constant 0 : i32
    %c0_i32_0 = arith.constant 0 : i32
    %c0_i32_1 = arith.constant 0 : i32
    return %c0_i32, %c0_i32_0 : i32, i32
  }
  func.func @transform_4(%arg0: i32) -> (i32, i32) {
    %c0_i32 = arith.constant 0 : i32
    %c0_i32_0 = arith.constant 0 : i32
    %c0_i32_1 = arith.constant 0 : i32
    return %c0_i32, %c0_i32_0 : i32, i32
  }
  func.func @transform_5(%arg0: i32) -> (i32, i32) {
    %c0_i32 = arith.constant 0 : i32
    %c0_i32_0 = arith.constant 0 : i32
    %c0_i32_1 = arith.constant 0 : i32
    return %c0_i32, %c0_i32_0 : i32, i32
  }
  func.func @transform_6(%arg0: i32) -> (i32, i32) {
    %c0_i32 = arith.constant 0 : i32
    %c0_i32_0 = arith.constant 0 : i32
    %c0_i32_1 = arith.constant 0 : i32
    return %c0_i32, %c0_i32_0 : i32, i32
  }
  func.func @transform_7(%arg0: i32) -> (i32, i32) {
    %c0_i32 = arith.constant 0 : i32
    %c0_i32_0 = arith.constant 0 : i32
    %c0_i32_1 = arith.constant 0 : i32
    return %c0_i32, %c0_i32_0 : i32, i32
  }
  func.func @transform_8(%arg0: i32) -> (i32, i32) {
    %c0_i32 = arith.constant 0 : i32
    %c0_i32_0 = arith.constant 0 : i32
    %c0_i32_1 = arith.constant 0 : i32
    return %c0_i32, %c0_i32_0 : i32, i32
  }
  func.func @transform_9(%arg0: i32) -> (i32, i32) {
    %c0_i32 = arith.constant 0 : i32
    %c0_i32_0 = arith.constant 0 : i32
    return %arg0, %c0_i32 : i32, i32
  }
  func.func @transform_10(%arg0: i32) -> (i32, i32) {
    %c0_i32 = arith.constant 0 : i32
    %c0_i32_0 = arith.constant 0 : i32
    return %arg0, %c0_i32 : i32, i32
  }
}

</mosaic_0001>

<llo_original>
// kernel: icu_mlp.1
$region0: #{icu_mlp.1}
  #allocation0 [shape = 'u32[]', space=smem, size = 0x4, offset = 0x4, fixed_abs, tag = 'smem constant byte address 0x4 - core index']
  #allocation1 [shape = 'u32[144,128]{1,0:T(1,128)}', space=vmem, size = 0x12000, scoped, tag = 'internal scratch']
  #allocation2 [shape = 'f32[1,1]{1,0:T(1,128)S(1)}', space=vmem, size = 0x200, scoped, tag = 'scoped memory for icu_mlp.1']
  %s0 = inlined_call_operand.hbm [shape: f32[8,32], index: 0, kind: input, shape index: {}]
  %s1 = inlined_call_operand.hbm [shape: bf16[32,1024], index: 1, kind: input, shape index: {}]
  %s2 = inlined_call_operand.hbm [shape: f32[1,1024], index: 2, kind: input, shape index: {}]
  %s3 = inlined_call_operand.hbm [shape: bf16[1024,1024], index: 3, kind: input, shape index: {}]
  %s4 = inlined_call_operand.hbm [shape: f32[1,1024], index: 4, kind: input, shape index: {}]
  %s5 = inlined_call_operand.hbm [shape: bf16[1024,512], index: 5, kind: input, shape index: {}]
  %s6 = inlined_call_operand.hbm [shape: f32[1,512], index: 6, kind: input, shape index: {}]
  %s7 = inlined_call_operand.hbm [shape: f32[1,512], index: 7, kind: input, shape index: {}]
  %s8 = inlined_call_operand.<no memory space> [shape: f32[1,1], index: 8, kind: input, shape index: {}]
  %s9 = inlined_call_operand.hbm [shape: f32[8,512], index: 9, kind: output, shape index: {0}]
  %s10 = inlined_call_operand.vmem [shape: f32[8,128], index: 10, kind: output, shape index: {1}]
  %11 = xla_tuple %s9, %s10
  %s12 = sld [smem:[#allocation0]]
  $region86: #{icu_mlp.1} parent=0
    _
  %s14 = ssub.s32 1, %s12
  %s15 = scalar_select 0, %s14, %s12
  %v16 = vstv %s8
  %17 = vst [vmem:[#allocation2] sm:$0x1] %v16
  $region1: #{icu_mlp.1} parent=0
    #allocation3 [shape = 'u8[4096]{0}', space=vmem, size = 0x1000, scoped, tag = 'input window, operand 0, single buffered']
    #allocation4 [shape = 's32[1]{0}', space=sflag, size = 0x4, scoped, tag = 'scoped memory for icu_mlp.1']
    #allocation5 [shape = 's32[1]{0}', space=sflag, size = 0x4, scoped, tag = 'scoped memory for icu_mlp.1']
    #allocation6 [shape = 'u8[65536]{0}', space=vmem, size = 0x10000, scoped, tag = 'input window, operand 1, single buffered']
    #allocation7 [shape = 's32[1]{0}', space=sflag, size = 0x4, scoped, tag = 'scoped memory for icu_mlp.1']
    #allocation8 [shape = 'u8[4096]{0}', space=vmem, size = 0x1000, scoped, tag = 'input window, operand 2, single buffered']
    #allocation9 [shape = 'u8[2097152]{0}', space=vmem, size = 0x200000, scoped, tag = 'input window, operand 3, single buffered']
    #allocation10 [shape = 's32[1]{0}', space=sflag, size = 0x4, scoped, tag = 'scoped memory for icu_mlp.1']
    #allocation11 [shape = 'u8[4096]{0}', space=vmem, size = 0x1000, scoped, tag = 'input window, operand 4, single buffered']
    #allocation12 [shape = 'u8[1048576]{0}', space=vmem, size = 0x100000, scoped, tag = 'input window, operand 5, single buffered']
    #allocation13 [shape = 's32[1]{0}', space=sflag, size = 0x4, scoped, tag = 'scoped memory for icu_mlp.1']
    #allocation14 [shape = 'u8[2048]{0}', space=vmem, size = 0x800, scoped, tag = 'input window, operand 6, single buffered']
    #allocation15 [shape = 'u8[2048]{0}', space=vmem, size = 0x800, scoped, tag = 'input window, operand 7, single buffered']
    #allocation16 [shape = 's32[1]{0}', space=sflag, size = 0x4, scoped, tag = 'scoped memory for icu_mlp.1']
    #allocation17 [shape = 'u8[16384]{0}', space=vmem, size = 0x4000, scoped, tag = 'output window, operand 0, single buffered']
    %18 = vsyncpa [#allocation4], 0
    %19 = vsyncpa [#allocation7], 0
    %20 = vsyncpa [#allocation10], 0
    %21 = vsyncpa [#allocation13], 0
    %22 = vsyncpa [#allocation16], 0
    %23 = vsyncpa [#allocation5], 0
    // Predicated region
    $region2: #{icu_mlp.1} parent=1 // pred_check
      _
    $region3: #{icu_mlp.1} parent=1 // pred_check_branch
      %25 = sbr.rel (0) target = $region5
    $region4: #{icu_mlp.1} parent=1 // pred_region
      %s27 = ssub.s32 128, 128
      %28 = vsyncadd [#allocation4], %s27
      %s30 = sshll.u32 [#allocation3], 4
      %s31 = int_to_ptr.vmem [resolvable:$true] %s30
      %33 = dma.hbm_to_vmem [thread:$0]  %s0, 128, %s31, [#allocation4]
    $region5: #{icu_mlp.1} parent=1 // pred_fallthru
      _
    // Predicated region
    $region6: #{icu_mlp.1} parent=1 // pred_check
      _
    $region7: #{icu_mlp.1} parent=1 // pred_check_branch
      %35 = sbr.rel (0) target = $region9
    $region8: #{icu_mlp.1} parent=1 // pred_region
      %s37 = ssub.s32 2048, 2048
      %38 = vsyncadd [#allocation7], %s37
      %s39 = sshll.u32 [#allocation6], 4
      %s40 = int_to_ptr.vmem [resolvable:$true] %s39
      %45 = dma.hbm_to_vmem [thread:$0]  %s1, 2048, %s40, [#allocation7], 512, 512, 32
    $region9: #{icu_mlp.1} parent=1 // pred_fallthru
      _
    // Predicated region
    $region10: #{icu_mlp.1} parent=1 // pred_check
      _
    $region11: #{icu_mlp.1} parent=1 // pred_check_branch
      %47 = sbr.rel (0) target = $region13
    $region12: #{icu_mlp.1} parent=1 // pred_region
      %s49 = ssub.s32 128, 128
      %50 = vsyncadd [#allocation7], %s49
      %s52 = sshll.u32 [#allocation8], 4
      %s53 = int_to_ptr.vmem [resolvable:$true] %s52
      %55 = dma.hbm_to_vmem [thread:$0]  %s2, 128, %s53, [#allocation7]
    $region13: #{icu_mlp.1} parent=1 // pred_fallthru
      _
    // Predicated region
    $region14: #{icu_mlp.1} parent=1 // pred_check
      _
    $region15: #{icu_mlp.1} parent=1 // pred_check_branch
      %57 = sbr.rel (0) target = $region17
    $region16: #{icu_mlp.1} parent=1 // pred_region
      %s59 = ssub.s32 65536, 65536
      %60 = vsyncadd [#allocation10], %s59
      %s61 = sshll.u32 [#allocation9], 4
      %s62 = int_to_ptr.vmem [resolvable:$true] %s61
      %67 = dma.hbm_to_vmem [thread:$0]  %s3, 65536, %s62, [#allocation10], 512, 512, 32
    $region17: #{icu_mlp.1} parent=1 // pred_fallthru
      _
    // Predicated region
    $region18: #{icu_mlp.1} parent=1 // pred_check
      _
    $region19: #{icu_mlp.1} parent=1 // pred_check_branch
      %69 = sbr.rel (0) target = $region21
    $region20: #{icu_mlp.1} parent=1 // pred_region
      %s71 = ssub.s32 128, 128
      %72 = vsyncadd [#allocation10], %s71
      %s74 = sshll.u32 [#allocation11], 4
      %s75 = int_to_ptr.vmem [resolvable:$true] %s74
      %77 = dma.hbm_to_vmem [thread:$0]  %s4, 128, %s75, [#allocation10]
    $region21: #{icu_mlp.1} parent=1 // pred_fallthru
      _
    // Predicated region
    $region22: #{icu_mlp.1} parent=1 // pred_check
      _
    $region23: #{icu_mlp.1} parent=1 // pred_check_branch
      %79 = sbr.rel (0) target = $region25
    $region24: #{icu_mlp.1} parent=1 // pred_region
      %s81 = ssub.s32 32768, 32768
      %82 = vsyncadd [#allocation13], %s81
      %s83 = sshll.u32 [#allocation12], 4
      %s84 = int_to_ptr.vmem [resolvable:$true] %s83
      %89 = dma.hbm_to_vmem [thread:$0]  %s5, 32768, %s84, [#allocation13], 256, 256, 16
    $region25: #{icu_mlp.1} parent=1 // pred_fallthru
      _
    // Predicated region
    $region26: #{icu_mlp.1} parent=1 // pred_check
      _
    $region27: #{icu_mlp.1} parent=1 // pred_check_branch
      %91 = sbr.rel (0) target = $region29
    $region28: #{icu_mlp.1} parent=1 // pred_region
      %s93 = ssub.s32 64, 64
      %94 = vsyncadd [#allocation13], %s93
      %s96 = sshll.u32 [#allocation14], 4
      %s97 = int_to_ptr.vmem [resolvable:$true] %s96
      %99 = dma.hbm_to_vmem [thread:$0]  %s6, 64, %s97, [#allocation13]
    $region29: #{icu_mlp.1} parent=1 // pred_fallthru
      _
    // Predicated region
    $region30: #{icu_mlp.1} parent=1 // pred_check
      _
    $region31: #{icu_mlp.1} parent=1 // pred_check_branch
      %101 = sbr.rel (0) target = $region33
    $region32: #{icu_mlp.1} parent=1 // pred_region
      %s103 = ssub.s32 64, 64
      %104 = vsyncadd [#allocation16], %s103
      %s106 = sshll.u32 [#allocation15], 4
      %s107 = int_to_ptr.vmem [resolvable:$true] %s106
      %109 = dma.hbm_to_vmem [thread:$0]  %s7, 64, %s107, [#allocation16]
    $region33: #{icu_mlp.1} parent=1 // pred_fallthru
      _
    // Predicated region
    $region34: #{icu_mlp.1} parent=1 // pred_check
      _
    $region35: #{icu_mlp.1} parent=1 // pred_check_branch
      %111 = sbr.rel (0) target = $region37
    $region36: #{icu_mlp.1} parent=1 // pred_region
      _
    $region37: #{icu_mlp.1} parent=1 // pred_fallthru
      _
    // Predicated region
    $region38: #{icu_mlp.1} parent=1 // pred_check
      _
    $region39: #{icu_mlp.1} parent=1 // pred_check_branch
      %113 = sbr.rel (0) target = $region41
    $region40: #{icu_mlp.1} parent=1 // pred_region
      %114 = dma.done [#allocation4], 128
    $region41: #{icu_mlp.1} parent=1 // pred_fallthru
      _
    // Predicated region
    $region42: #{icu_mlp.1} parent=1 // pred_check
      _
    $region43: #{icu_mlp.1} parent=1 // pred_check_branch
      %116 = sbr.rel (0) target = $region45
    $region44: #{icu_mlp.1} parent=1 // pred_region
      %117 = dma.done [#allocation7], 2048
    $region45: #{icu_mlp.1} parent=1 // pred_fallthru
      _
    // Predicated region
    $region46: #{icu_mlp.1} parent=1 // pred_check
      _
    $region47: #{icu_mlp.1} parent=1 // pred_check_branch
      %119 = sbr.rel (0) target = $region49
    $region48: #{icu_mlp.1} parent=1 // pred_region
      %120 = dma.done [#allocation7], 128
    $region49: #{icu_mlp.1} parent=1 // pred_fallthru
      _
    // Predicated region
    $region50: #{icu_mlp.1} parent=1 // pred_check
      _
    $region51: #{icu_mlp.1} parent=1 // pred_check_branch
      %122 = sbr.rel (0) target = $region53
    $region52: #{icu_mlp.1} parent=1 // pred_region
      %123 = dma.done [#allocation10], 65536
    $region53: #{icu_mlp.1} parent=1 // pred_fallthru
      _
    // Predicated region
    $region54: #{icu_mlp.1} parent=1 // pred_check
      _
    $region55: #{icu_mlp.1} parent=1 // pred_check_branch
      %125 = sbr.rel (0) target = $region57
    $region56: #{icu_mlp.1} parent=1 // pred_region
      %126 = dma.done [#allocation10], 128
    $region57: #{icu_mlp.1} parent=1 // pred_fallthru
      _
    // Predicated region
    $region58: #{icu_mlp.1} parent=1 // pred_check
      _
    $region59: #{icu_mlp.1} parent=1 // pred_check_branch
      %128 = sbr.rel (0) target = $region61
    $region60: #{icu_mlp.1} parent=1 // pred_region
      %129 = dma.done [#allocation13], 32768
    $region61: #{icu_mlp.1} parent=1 // pred_fallthru
      _
    // Predicated region
    $region62: #{icu_mlp.1} parent=1 // pred_check
      _
    $region63: #{icu_mlp.1} parent=1 // pred_check_branch
      %131 = sbr.rel (0) target = $region65
    $region64: #{icu_mlp.1} parent=1 // pred_region
      %132 = dma.done [#allocation13], 64
    $region65: #{icu_mlp.1} parent=1 // pred_fallthru
      _
    // Predicated region
    $region66: #{icu_mlp.1} parent=1 // pred_check
      _
    $region67: #{icu_mlp.1} parent=1 // pred_check_branch
      %134 = sbr.rel (0) target = $region69
    $region68: #{icu_mlp.1} parent=1 // pred_region
      %135 = dma.done [#allocation16], 64
    $region69: #{icu_mlp.1} parent=1 // pred_fallthru
      _
    %v137 = vld [vmem:[#allocation3] sm:$0xff]
    %v138 = vpack.c.bf16 %v137, %v137
    %v139 = vld [vmem:[#allocation6] sm:$0xff]
    %v140 = vld [vmem:[#allocation6 + $0x8] sm:$0xff]
    %v141 = vld [vmem:[#allocation6 + $0x10] sm:$0xff]
    %v142 = vld [vmem:[#allocation6 + $0x18] sm:$0xff]
    %v143 = vld [vmem:[#allocation6 + $0x20] sm:$0xff]
    %v144 = vld [vmem:[#allocation6 + $0x28] sm:$0xff]
    %v145 = vld [vmem:[#allocation6 + $0x30] sm:$0xff]
    %v146 = vld [vmem:[#allocation6 + $0x38] sm:$0xff]
    %v147 = vld [vmem:[#allocation6 + $0x40] sm:$0xff]
    %v148 = vld [vmem:[#allocation6 + $0x48] sm:$0xff]
    %v149 = vld [vmem:[#allocation6 + $0x50] sm:$0xff]
    %v150 = vld [vmem:[#allocation6 + $0x58] sm:$0xff]
    %v151 = vld [vmem:[#allocation6 + $0x60] sm:$0xff]
    %v152 = vld [vmem:[#allocation6 + $0x68] sm:$0xff]
    %v153 = vld [vmem:[#allocation6 + $0x70] sm:$0xff]
    %v154 = vld [vmem:[#allocation6 + $0x78] sm:$0xff]
    %v155 = vld [vmem:[#allocation8] sm:$0xff]
    %v157 = vlaneseq
    %v158 = vshrl.u32 %v157, 7
    %v159 = vsub.s32 0, %v158
    %v160 = vrot.slane %v155, %v159
    %v161 = vlaneseq
    %v162 = vshrl.u32 %v161, 7
    %v163 = vsub.s32 1, %v162
    %v164 = vrot.slane %v155, %v163
    %v165 = vlaneseq
    %v166 = vshrl.u32 %v165, 7
    %v167 = vsub.s32 2, %v166
    %v168 = vrot.slane %v155, %v167
    %v169 = vlaneseq
    %v170 = vshrl.u32 %v169, 7
    %v171 = vsub.s32 3, %v170
    %v172 = vrot.slane %v155, %v171
    %v173 = vlaneseq
    %v174 = vshrl.u32 %v173, 7
    %v175 = vsub.s32 4, %v174
    %v176 = vrot.slane %v155, %v175
    %v177 = vlaneseq
    %v178 = vshrl.u32 %v177, 7
    %v179 = vsub.s32 5, %v178
    %v180 = vrot.slane %v155, %v179
    %v181 = vlaneseq
    %v182 = vshrl.u32 %v181, 7
    %v183 = vsub.s32 6, %v182
    %v184 = vrot.slane %v155, %v183
    %v185 = vlaneseq
    %v186 = vshrl.u32 %v185, 7
    %v187 = vsub.s32 7, %v186
    %v188 = vrot.slane %v155, %v187
    %v213 = vunpack.c.l.b16 %v139
    %v214 = vunpack.c.h.b16 %v139
    %v215 = vunpack.c.l.b16 %v140
    %v216 = vunpack.c.h.b16 %v140
    %v217 = vunpack.c.l.b16 %v141
    %v218 = vunpack.c.h.b16 %v141
    %v219 = vunpack.c.l.b16 %v142
    %v220 = vunpack.c.h.b16 %v142
    %v221 = vunpack.c.l.b16 %v143
    %v222 = vunpack.c.h.b16 %v143
    %v223 = vunpack.c.l.b16 %v144
    %v224 = vunpack.c.h.b16 %v144
    %v225 = vunpack.c.l.b16 %v145
    %v226 = vunpack.c.h.b16 %v145
    %v227 = vunpack.c.l.b16 %v146
    %v228 = vunpack.c.h.b16 %v146
    %v229 = vunpack.c.l.b16 %v147
    %v230 = vunpack.c.h.b16 %v147
    %v231 = vunpack.c.l.b16 %v148
    %v232 = vunpack.c.h.b16 %v148
    %v233 = vunpack.c.l.b16 %v149
    %v234 = vunpack.c.h.b16 %v149
    %v235 = vunpack.c.l.b16 %v150
    %v236 = vunpack.c.h.b16 %v150
    %v237 = vunpack.c.l.b16 %v151
    %v238 = vunpack.c.h.b16 %v151
    %v239 = vunpack.c.l.b16 %v152
    %v240 = vunpack.c.h.b16 %v152
    %v241 = vunpack.c.l.b16 %v153
    %v242 = vunpack.c.h.b16 %v153
    %v243 = vunpack.c.l.b16 %v154
    %v244 = vunpack.c.h.b16 %v154
    %v245 = vpack.c.b16 %v221, %v213
    %v246 = vpack.c.b16 %v222, %v214
    %v247 = vpack.c.b16 %v223, %v215
    %v248 = vpack.c.b16 %v224, %v216
    %v249 = vpack.c.b16 %v225, %v217
    %v250 = vpack.c.b16 %v226, %v218
    %v251 = vpack.c.b16 %v227, %v219
    %v252 = vpack.c.b16 %v228, %v220
    %v253 = vpack.c.b16 %v237, %v229
    %v254 = vpack.c.b16 %v238, %v230
    %v255 = vpack.c.b16 %v239, %v231
    %v256 = vpack.c.b16 %v240, %v232
    %v257 = vpack.c.b16 %v241, %v233
    %v258 = vpack.c.b16 %v242, %v234
    %v259 = vpack.c.b16 %v243, %v235
    %v260 = vpack.c.b16 %v244, %v236
    %vm277 = vcmask 261120
    %v279 = vsel %vm277, %v138, 0
    %281 = vmatprep.subr.bf16.mxu0 0
    %282 = vmatpush1.bf16.msra.mxu0 0
    %283 = vmatprep.subr.bf16.mxu0 0
    %284 = vmatpush1.bf16.msra.mxu0 0
    %285 = vmatprep.subr.bf16.mxu0 0
    %286 = vmatpush1.bf16.msra.mxu0 0
    %287 = vmatprep.subr.bf16.mxu0 0
    %288 = vmatpush1.bf16.msra.mxu0 0
    %289 = vmatprep.subr.bf16.mxu0 0
    %290 = vmatpush1.bf16.msra.mxu0 0
    %291 = vmatprep.subr.bf16.mxu0 0
    %292 = vmatpush1.bf16.msra.mxu0 0
    %293 = vmatprep.subr.bf16.mxu0 %v254
    %294 = vmatpush1.bf16.msra.mxu0 %v253
    %295 = vmatprep.subr.bf16.mxu0 %v246
    %296 = vmatpush1.bf16.msra.mxu0 %v245
    %297 = vmatprep.subr.bf16.mxu0 0
    %298 = vmatpush2.bf16.msra.mxu0 0
    %299 = vmatprep.subr.bf16.mxu0 0
    %300 = vmatpush2.bf16.msra.mxu0 0
    %301 = vmatprep.subr.bf16.mxu0 0
    %302 = vmatpush2.bf16.msra.mxu0 0
    %303 = vmatprep.subr.bf16.mxu0 0
    %304 = vmatpush2.bf16.msra.mxu0 0
    %305 = vmatprep.subr.bf16.mxu0 0
    %306 = vmatpush2.bf16.msra.mxu0 0
    %307 = vmatprep.subr.bf16.mxu0 0
    %308 = vmatpush2.bf16.msra.mxu0 0
    %309 = vmatprep.subr.bf16.mxu0 0
    %310 = vmatpush2.bf16.msra.mxu0 0
    %311 = vmatprep.subr.bf16.mxu0 0
    %312 = vmatpush2.bf16.msra.mxu0 0
    %313 = vmatprep.mubr.bf16.mxu0 0
    %314 = vmatmul.mubr.bf16.gmra.mxu0 %v279
    %v315 = vpop.f32.mrf.mxu0
    %v316 = vadd.f32 %v160, %v315
    %v317 = vpop.f32.mrf.mxu0
    %v318 = vadd.f32 %v164, %v317
    %v319 = vpop.f32.mrf.mxu0
    %v320 = vpop.f32.mrf.mxu0
    %321 = vdwg.mxu0
    %322 = vmatprep.subr.bf16.mxu0 0
    %323 = vmatpush1.bf16.msra.mxu0 0
    %324 = vmatprep.subr.bf16.mxu0 0
    %325 = vmatpush1.bf16.msra.mxu0 0
    %326 = vmatprep.subr.bf16.mxu0 0
    %327 = vmatpush1.bf16.msra.mxu0 0
    %328 = vmatprep.subr.bf16.mxu0 0
    %329 = vmatpush1.bf16.msra.mxu0 0
    %330 = vmatprep.subr.bf16.mxu0 0
    %331 = vmatpush1.bf16.msra.mxu0 0
    %332 = vmatprep.subr.bf16.mxu0 0
    %333 = vmatpush1.bf16.msra.mxu0 0
    %334 = vmatprep.subr.bf16.mxu0 %v256
    %335 = vmatpush1.bf16.msra.mxu0 %v255
    %336 = vmatprep.subr.bf16.mxu0 %v248
    %337 = vmatpush1.bf16.msra.mxu0 %v247
    %338 = vmatprep.subr.bf16.mxu0 0
    %339 = vmatpush2.bf16.msra.mxu0 0
    %340 = vmatprep.subr.bf16.mxu0 0
    %341 = vmatpush2.bf16.msra.mxu0 0
    %342 = vmatprep.subr.bf16.mxu0 0
    %343 = vmatpush2.bf16.msra.mxu0 0
    %344 = vmatprep.subr.bf16.mxu0 0
    %345 = vmatpush2.bf16.msra.mxu0 0
    %346 = vmatprep.subr.bf16.mxu0 0
    %347 = vmatpush2.bf16.msra.mxu0 0
    %348 = vmatprep.subr.bf16.mxu0 0
    %349 = vmatpush2.bf16.msra.mxu0 0
    %350 = vmatprep.subr.bf16.mxu0 0
    %351 = vmatpush2.bf16.msra.mxu0 0
    %352 = vmatprep.subr.bf16.mxu0 0
    %353 = vmatpush2.bf16.msra.mxu0 0
    %354 = vmatprep.mubr.bf16.mxu0 0
    %355 = vmatmul.mubr.bf16.gmra.mxu0 %v279
    %v356 = vpop.f32.mrf.mxu0
    %v357 = vadd.f32 %v168, %v356
    %v358 = vpop.f32.mrf.mxu0
    %v359 = vadd.f32 %v172, %v358
    %v360 = vpop.f32.mrf.mxu0
    %v361 = vpop.f32.mrf.mxu0
    %362 = vdwg.mxu0
    %363 = vmatprep.subr.bf16.mxu0 0
    %364 = vmatpush1.bf16.msra.mxu0 0
    %365 = vmatprep.subr.bf16.mxu0 0
    %366 = vmatpush1.bf16.msra.mxu0 0
    %367 = vmatprep.subr.bf16.mxu0 0
    %368 = vmatpush1.bf16.msra.mxu0 0
    %369 = vmatprep.subr.bf16.mxu0 0
    %370 = vmatpush1.bf16.msra.mxu0 0
    %371 = vmatprep.subr.bf16.mxu0 0
    %372 = vmatpush1.bf16.msra.mxu0 0
    %373 = vmatprep.subr.bf16.mxu0 0
    %374 = vmatpush1.bf16.msra.mxu0 0
    %375 = vmatprep.subr.bf16.mxu0 %v258
    %376 = vmatpush1.bf16.msra.mxu0 %v257
    %377 = vmatprep.subr.bf16.mxu0 %v250
    %378 = vmatpush1.bf16.msra.mxu0 %v249
    %379 = vmatprep.subr.bf16.mxu0 0
    %380 = vmatpush2.bf16.msra.mxu0 0
    %381 = vmatprep.subr.bf16.mxu0 0
    %382 = vmatpush2.bf16.msra.mxu0 0
    %383 = vmatprep.subr.bf16.mxu0 0
    %384 = vmatpush2.bf16.msra.mxu0 0
    %385 = vmatprep.subr.bf16.mxu0 0
    %386 = vmatpush2.bf16.msra.mxu0 0
    %387 = vmatprep.subr.bf16.mxu0 0
    %388 = vmatpush2.bf16.msra.mxu0 0
    %389 = vmatprep.subr.bf16.mxu0 0
    %390 = vmatpush2.bf16.msra.mxu0 0
    %391 = vmatprep.subr.bf16.mxu0 0
    %392 = vmatpush2.bf16.msra.mxu0 0
    %393 = vmatprep.subr.bf16.mxu0 0
    %394 = vmatpush2.bf16.msra.mxu0 0
    %395 = vmatprep.mubr.bf16.mxu0 0
    %396 = vmatmul.mubr.bf16.gmra.mxu0 %v279
    %v397 = vpop.f32.mrf.mxu0
    %v398 = vadd.f32 %v176, %v397
    %v399 = vpop.f32.mrf.mxu0
    %v400 = vadd.f32 %v180, %v399
    %v401 = vpop.f32.mrf.mxu0
    %v402 = vpop.f32.mrf.mxu0
    %403 = vdwg.mxu0
    %404 = vmatprep.subr.bf16.mxu0 0
    %405 = vmatpush1.bf16.msra.mxu0 0
    %406 = vmatprep.subr.bf16.mxu0 0
    %407 = vmatpush1.bf16.msra.mxu0 0
    %408 = vmatprep.subr.bf16.mxu0 0
    %409 = vmatpush1.bf16.msra.mxu0 0
    %410 = vmatprep.subr.bf16.mxu0 0
    %411 = vmatpush1.bf16.msra.mxu0 0
    %412 = vmatprep.subr.bf16.mxu0 0
    %413 = vmatpush1.bf16.msra.mxu0 0
    %414 = vmatprep.subr.bf16.mxu0 0
    %415 = vmatpush1.bf16.msra.mxu0 0
    %416 = vmatprep.subr.bf16.mxu0 %v260
    %417 = vmatpush1.bf16.msra.mxu0 %v259
    %418 = vmatprep.subr.bf16.mxu0 %v252
    %419 = vmatpush1.bf16.msra.mxu0 %v251
    %420 = vmatprep.subr.bf16.mxu0 0
    %421 = vmatpush2.bf16.msra.mxu0 0
    %422 = vmatprep.subr.bf16.mxu0 0
    %423 = vmatpush2.bf16.msra.mxu0 0
    %424 = vmatprep.subr.bf16.mxu0 0
    %425 = vmatpush2.bf16.msra.mxu0 0
    %426 = vmatprep.subr.bf16.mxu0 0
    %427 = vmatpush2.bf16.msra.mxu0 0
    %428 = vmatprep.subr.bf16.mxu0 0
    %429 = vmatpush2.bf16.msra.mxu0 0
    %430 = vmatprep.subr.bf16.mxu0 0
    %431 = vmatpush2.bf16.msra.mxu0 0
    %432 = vmatprep.subr.bf16.mxu0 0
    %433 = vmatpush2.bf16.msra.mxu0 0
    %434 = vmatprep.subr.bf16.mxu0 0
    %435 = vmatpush2.bf16.msra.mxu0 0
    %436 = vmatprep.mubr.bf16.mxu0 0
    %437 = vmatmul.mubr.bf16.gmra.mxu0 %v279
    %v438 = vpop.f32.mrf.mxu0
    %v439 = vadd.f32 %v184, %v438
    %v440 = vpop.f32.mrf.mxu0
    %v441 = vadd.f32 %v188, %v440
    %v442 = vpop.f32.mrf.mxu0
    %v443 = vpop.f32.mrf.mxu0
    %444 = vdwg.mxu0
    %v445 = vmax.f32 %v316, 0.0
    %v446 = vmax.f32 %v318, 0.0
    %v447 = vmax.f32 %v357, 0.0
    %v448 = vmax.f32 %v359, 0.0
    %v449 = vmax.f32 %v398, 0.0
    %v450 = vmax.f32 %v400, 0.0
    %v451 = vmax.f32 %v439, 0.0
    %v452 = vmax.f32 %v441, 0.0
    %v453 = vpack.c.bf16 %v445, %v445
    %v454 = vpack.c.bf16 %v446, %v446
    %v455 = vpack.c.bf16 %v447, %v447
    %v456 = vpack.c.bf16 %v448, %v448
    %v457 = vpack.c.bf16 %v449, %v449
    %v458 = vpack.c.bf16 %v450, %v450
    %v459 = vpack.c.bf16 %v451, %v451
    %v460 = vpack.c.bf16 %v452, %v452
    %v461 = vld [vmem:[#allocation9] sm:$0xff]
    %v462 = vld [vmem:[#allocation9 + $0x8] sm:$0xff]
    %v463 = vld [vmem:[#allocation9 + $0x10] sm:$0xff]
    %v464 = vld [vmem:[#allocation9 + $0x18] sm:$0xff]
    %v465 = vld [vmem:[#allocation9 + $0x20] sm:$0xff]
    %v466 = vld [vmem:[#allocation9 + $0x28] sm:$0xff]
    %v467 = vld [vmem:[#allocation9 + $0x30] sm:$0xff]
    %v468 = vld [vmem:[#allocation9 + $0x38] sm:$0xff]
    %v469 = vld [vmem:[#allocation9 + $0x40] sm:$0xff]
    %v470 = vld [vmem:[#allocation9 + $0x48] sm:$0xff]
    %v471 = vld [vmem:[#allocation9 + $0x50] sm:$0xff]
    %v472 = vld [vmem:[#allocation9 + $0x58] sm:$0xff]
    %v473 = vld [vmem:[#allocation9 + $0x60] sm:$0xff]
    %v474 = vld [vmem:[#allocation9 + $0x68] sm:$0xff]
    %v475 = vld [vmem:[#allocation9 + $0x70] sm:$0xff]
    %v476 = vld [vmem:[#allocation9 + $0x78] sm:$0xff]
    %v477 = vld [vmem:[#allocation9 + $0x80] sm:$0xff]
    %v478 = vld [vmem:[#allocation9 + $0x88] sm:$0xff]
    %v479 = vld [vmem:[#allocation9 + $0x90] sm:$0xff]
    %v480 = vld [vmem:[#allocation9 + $0x98] sm:$0xff]
    %v481 = vld [vmem:[#allocation9 + $0xa0] sm:$0xff]
    %v482 = vld [vmem:[#allocation9 + $0xa8] sm:$0xff]
    %v483 = vld [vmem:[#allocation9 + $0xb0] sm:$0xff]
    %v484 = vld [vmem:[#allocation9 + $0xb8] sm:$0xff]
    %v485 = vld [vmem:[#allocation9 + $0xc0] sm:$0xff]
    %v486 = vld [vmem:[#allocation9 + $0xc8] sm:$0xff]
    %v487 = vld [vmem:[#allocation9 + $0xd0] sm:$0xff]
    %v488 = vld [vmem:[#allocation9 + $0xd8] sm:$0xff]
    %v489 = vld [vmem:[#allocation9 + $0xe0] sm:$0xff]
    %v490 = vld [vmem:[#allocation9 + $0xe8] sm:$0xff]
    %v491 = vld [vmem:[#allocation9 + $0xf0] sm:$0xff]
    %v492 = vld [vmem:[#allocation9 + $0xf8] sm:$0xff]
    %v493 = vld [vmem:[#allocation9 + $0x100] sm:$0xff]
    %v494 = vld [vmem:[#allocation9 + $0x108] sm:$0xff]
    %v495 = vld [vmem:[#allocation9 + $0x110] sm:$0xff]
    %v496 = vld [vmem:[#allocation9 + $0x118] sm:$0xff]
    %v497 = vld [vmem:[#allocation9 + $0x120] sm:$0xff]
    %v498 = vld [vmem:[#allocation9 + $0x128] sm:$0xff]
    %v499 = vld [vmem:[#allocation9 + $0x130] sm:$0xff]
    %v500 = vld [vmem:[#allocation9 + $0x138] sm:$0xff]
    %v501 = vld [vmem:[#allocation9 + $0x140] sm:$0xff]
    %v502 = vld [vmem:[#allocation9 + $0x148] sm:$0xff]
    %v503 = vld [vmem:[#allocation9 + $0x150] sm:$0xff]
    %v504 = vld [vmem:[#allocation9 + $0x158] sm:$0xff]
    %v505 = vld [vmem:[#allocation9 + $0x160] sm:$0xff]
    %v506 = vld [vmem:[#allocation9 + $0x168] sm:$0xff]
    %v507 = vld [vmem:[#allocation9 + $0x170] sm:$0xff]
    %v508 = vld [vmem:[#allocation9 + $0x178] sm:$0xff]
    %v509 = vld [vmem:[#allocation9 + $0x180] sm:$0xff]
    %v510 = vld [vmem:[#allocation9 + $0x188] sm:$0xff]
    %v511 = vld [vmem:[#allocation9 + $0x190] sm:$0xff]
    %v512 = vld [vmem:[#allocation9 + $0x198] sm:$0xff]
    %v513 = vld [vmem:[#allocation9 + $0x1a0] sm:$0xff]
    %v514 = vld [vmem:[#allocation9 + $0x1a8] sm:$0xff]
    %v515 = vld [vmem:[#allocation9 + $0x1b0] sm:$0xff]
    %v516 = vld [vmem:[#allocation9 + $0x1b8] sm:$0xff]
    %v517 = vld [vmem:[#allocation9 + $0x1c0] sm:$0xff]
    %v518 = vld [vmem:[#allocation9 + $0x1c8] sm:$0xff]
    %v519 = vld [vmem:[#allocation9 + $0x1d0] sm:$0xff]
    %v520 = vld [vmem:[#allocation9 + $0x1d8] sm:$0xff]
    %v521 = vld [vmem:[#allocation9 + $0x1e0] sm:$0xff]
    %v522 = vld [vmem:[#allocation9 + $0x1e8] sm:$0xff]
    %v523 = vld [vmem:[#allocation9 + $0x1f0] sm:$0xff]
    %v524 = vld [vmem:[#allocation9 + $0x1f8] sm:$0xff]
    %v525 = vld [vmem:[#allocation9 + $0x200] sm:$0xff]
    %v526 = vld [vmem:[#allocation9 + $0x208] sm:$0xff]
    %v527 = vld [vmem:[#allocation9 + $0x210] sm:$0xff]
    %v528 = vld [vmem:[#allocation9 + $0x218] sm:$0xff]
    %v529 = vld [vmem:[#allocation9 + $0x220] sm:$0xff]
    %v530 = vld [vmem:[#allocation9 + $0x228] sm:$0xff]
    %v531 = vld [vmem:[#allocation9 + $0x230] sm:$0xff]
    %v532 = vld [vmem:[#allocation9 + $0x238] sm:$0xff]
    %v533 = vld [vmem:[#allocation9 + $0x240] sm:$0xff]
    %v534 = vld [vmem:[#allocation9 + $0x248] sm:$0xff]
    %v535 = vld [vmem:[#allocation9 + $0x250] sm:$0xff]
    %v536 = vld [vmem:[#allocation9 + $0x258] sm:$0xff]
    %v537 = vld [vmem:[#allocation9 + $0x260] sm:$0xff]
    %v538 = vld [vmem:[#allocation9 + $0x268] sm:$0xff]
    %v539 = vld [vmem:[#allocation9 + $0x270] sm:$0xff]
    %v540 = vld [vmem:[#allocation9 + $0x278] sm:$0xff]
    %v541 = vld [vmem:[#allocation9 + $0x280] sm:$0xff]
    %v542 = vld [vmem:[#allocation9 + $0x288] sm:$0xff]
    %v543 = vld [vmem:[#allocation9 + $0x290] sm:$0xff]
    %v544 = vld [vmem:[#allocation9 + $0x298] sm:$0xff]
    %v545 = vld [vmem:[#allocation9 + $0x2a0] sm:$0xff]
    %v546 = vld [vmem:[#allocation9 + $0x2a8] sm:$0xff]
    %v547 = vld [vmem:[#allocation9 + $0x2b0] sm:$0xff]
    %v548 = vld [vmem:[#allocation9 + $0x2b8] sm:$0xff]
    %v549 = vld [vmem:[#allocation9 + $0x2c0] sm:$0xff]
    %v550 = vld [vmem:[#allocation9 + $0x2c8] sm:$0xff]
    %v551 = vld [vmem:[#allocation9 + $0x2d0] sm:$0xff]
    %v552 = vld [vmem:[#allocation9 + $0x2d8] sm:$0xff]
    %v553 = vld [vmem:[#allocation9 + $0x2e0] sm:$0xff]
    %v554 = vld [vmem:[#allocation9 + $0x2e8] sm:$0xff]
    %v555 = vld [vmem:[#allocation9 + $0x2f0] sm:$0xff]
    %v556 = vld [vmem:[#allocation9 + $0x2f8] sm:$0xff]
    %v557 = vld [vmem:[#allocation9 + $0x300] sm:$0xff]
    %v558 = vld [vmem:[#allocation9 + $0x308] sm:$0xff]
    %v559 = vld [vmem:[#allocation9 + $0x310] sm:$0xff]
    %v560 = vld [vmem:[#allocation9 + $0x318] sm:$0xff]
    %v561 = vld [vmem:[#allocation9 + $0x320] sm:$0xff]
    %v562 = vld [vmem:[#allocation9 + $0x328] sm:$0xff]
    %v563 = vld [vmem:[#allocation9 + $0x330] sm:$0xff]
    %v564 = vld [vmem:[#allocation9 + $0x338] sm:$0xff]
    %v565 = vld [vmem:[#allocation9 + $0x340] sm:$0xff]
    %v566 = vld [vmem:[#allocation9 + $0x348] sm:$0xff]
    %v567 = vld [vmem:[#allocation9 + $0x350] sm:$0xff]
    %v568 = vld [vmem:[#allocation9 + $0x358] sm:$0xff]
    %v569 = vld [vmem:[#allocation9 + $0x360] sm:$0xff]
    %v570 = vld [vmem:[#allocation9 + $0x368] sm:$0xff]
    %v571 = vld [vmem:[#allocation9 + $0x370] sm:$0xff]
    %v572 = vld [vmem:[#allocation9 + $0x378] sm:$0xff]
    %v573 = vld [vmem:[#allocation9 + $0x380] sm:$0xff]
    %v574 = vld [vmem:[#allocation9 + $0x388] sm:$0xff]
    %v575 = vld [vmem:[#allocation9 + $0x390] sm:$0xff]
    %v576 = vld [vmem:[#allocation9 + $0x398] sm:$0xff]
    %v577 = vld [vmem:[#allocation9 + $0x3a0] sm:$0xff]
    %v578 = vld [vmem:[#allocation9 + $0x3a8] sm:$0xff]
    %v579 = vld [vmem:[#allocation9 + $0x3b0] sm:$0xff]
    %v580 = vld [vmem:[#allocation9 + $0x3b8] sm:$0xff]
    %v581 = vld [vmem:[#allocation9 + $0x3c0] sm:$0xff]
    %v582 = vld [vmem:[#allocation9 + $0x3c8] sm:$0xff]
    %v583 = vld [vmem:[#allocation9 + $0x3d0] sm:$0xff]
    %v584 = vld [vmem:[#allocation9 + $0x3d8] sm:$0xff]
    %v585 = vld [vmem:[#allocation9 + $0x3e0] sm:$0xff]
    %v586 = vld [vmem:[#allocation9 + $0x3e8] sm:$0xff]
    %v587 = vld [vmem:[#allocation9 + $0x3f0] sm:$0xff]
    %v588 = vld [vmem:[#allocation9 + $0x3f8] sm:$0xff]
    %v589 = vld [vmem:[#allocation9 + $0x400] sm:$0xff]
    %v590 = vld [vmem:[#allocation9 + $0x408] sm:$0xff]
    %v591 = vld [vmem:[#allocation9 + $0x410] sm:$0xff]
    %v592 = vld [vmem:[#allocation9 + $0x418] sm:$0xff]
    %v593 = vld [vmem:[#allocation9 + $0x420] sm:$0xff]
    %v594 = vld [vmem:[#allocation9 + $0x428] sm:$0xff]
    %v595 = vld [vmem:[#allocation9 + $0x430] sm:$0xff]
    %v596 = vld [vmem:[#allocation9 + $0x438] sm:$0xff]
    %v597 = vld [vmem:[#allocation9 + $0x440] sm:$0xff]
    %v598 = vld [vmem:[#allocation9 + $0x448] sm:$0xff]
    %v599 = vld [vmem:[#allocation9 + $0x450] sm:$0xff]
    %v600 = vld [vmem:[#allocation9 + $0x458] sm:$0xff]
    %v601 = vld [vmem:[#allocation9 + $0x460] sm:$0xff]
    %v602 = vld [vmem:[#allocation9 + $0x468] sm:$0xff]
    %v603 = vld [vmem:[#allocation9 + $0x470] sm:$0xff]
    %v604 = vld [vmem:[#allocation9 + $0x478] sm:$0xff]
    %v605 = vld [vmem:[#allocation9 + $0x480] sm:$0xff]
    %v606 = vld [vmem:[#allocation9 + $0x488] sm:$0xff]
    %v607 = vld [vmem:[#allocation9 + $0x490] sm:$0xff]
    %v608 = vld [vmem:[#allocation9 + $0x498] sm:$0xff]
    %v609 = vld [vmem:[#allocation9 + $0x4a0] sm:$0xff]
    %v610 = vld [vmem:[#allocation9 + $0x4a8] sm:$0xff]
    %v611 = vld [vmem:[#allocation9 + $0x4b0] sm:$0xff]
    %v612 = vld [vmem:[#allocation9 + $0x4b8] sm:$0xff]
    %v613 = vld [vmem:[#allocation9 + $0x4c0] sm:$0xff]
    %v614 = vld [vmem:[#allocation9 + $0x4c8] sm:$0xff]
    %v615 = vld [vmem:[#allocation9 + $0x4d0] sm:$0xff]
    %v616 = vld [vmem:[#allocation9 + $0x4d8] sm:$0xff]
    %v617 = vld [vmem:[#allocation9 + $0x4e0] sm:$0xff]
    %v618 = vld [vmem:[#allocation9 + $0x4e8] sm:$0xff]
    %v619 = vld [vmem:[#allocation9 + $0x4f0] sm:$0xff]
    %v620 = vld [vmem:[#allocation9 + $0x4f8] sm:$0xff]
    %v621 = vld [vmem:[#allocation9 + $0x500] sm:$0xff]
    %v622 = vld [vmem:[#allocation9 + $0x508] sm:$0xff]
    %v623 = vld [vmem:[#allocation9 + $0x510] sm:$0xff]
    %v624 = vld [vmem:[#allocation9 + $0x518] sm:$0xff]
    %v625 = vld [vmem:[#allocation9 + $0x520] sm:$0xff]
    %v626 = vld [vmem:[#allocation9 + $0x528] sm:$0xff]
    %v627 = vld [vmem:[#allocation9 + $0x530] sm:$0xff]
    %v628 = vld [vmem:[#allocation9 + $0x538] sm:$0xff]
    %v629 = vld [vmem:[#allocation9 + $0x540] sm:$0xff]
    %v630 = vld [vmem:[#allocation9 + $0x548] sm:$0xff]
    %v631 = vld [vmem:[#allocation9 + $0x550] sm:$0xff]
    %v632 = vld [vmem:[#allocation9 + $0x558] sm:$0xff]
    %v633 = vld [vmem:[#allocation9 + $0x560] sm:$0xff]
    %v634 = vld [vmem:[#allocation9 + $0x568] sm:$0xff]
    %v635 = vld [vmem:[#allocation9 + $0x570] sm:$0xff]
    %v636 = vld [vmem:[#allocation9 + $0x578] sm:$0xff]
    %v637 = vld [vmem:[#allocation9 + $0x580] sm:$0xff]
    %v638 = vld [vmem:[#allocation9 + $0x588] sm:$0xff]
    %v639 = vld [vmem:[#allocation9 + $0x590] sm:$0xff]
    %v640 = vld [vmem:[#allocation9 + $0x598] sm:$0xff]
    %v641 = vld [vmem:[#allocation9 + $0x5a0] sm:$0xff]
    %v642 = vld [vmem:[#allocation9 + $0x5a8] sm:$0xff]
    %v643 = vld [vmem:[#allocation9 + $0x5b0] sm:$0xff]
    %v644 = vld [vmem:[#allocation9 + $0x5b8] sm:$0xff]
    %v645 = vld [vmem:[#allocation9 + $0x5c0] sm:$0xff]
    %v646 = vld [vmem:[#allocation9 + $0x5c8] sm:$0xff]
    %v647 = vld [vmem:[#allocation9 + $0x5d0] sm:$0xff]
    %v648 = vld [vmem:[#allocation9 + $0x5d8] sm:$0xff]
    %v649 = vld [vmem:[#allocation9 + $0x5e0] sm:$0xff]
    %v650 = vld [vmem:[#allocation9 + $0x5e8] sm:$0xff]
    %v651 = vld [vmem:[#allocation9 + $0x5f0] sm:$0xff]
    %v652 = vld [vmem:[#allocation9 + $0x5f8] sm:$0xff]
    %v653 = vld [vmem:[#allocation9 + $0x600] sm:$0xff]
    %v654 = vld [vmem:[#allocation9 + $0x608] sm:$0xff]
    %v655 = vld [vmem:[#allocation9 + $0x610] sm:$0xff]
    %v656 = vld [vmem:[#allocation9 + $0x618] sm:$0xff]
    %v657 = vld [vmem:[#allocation9 + $0x620] sm:$0xff]
    %v658 = vld [vmem:[#allocation9 + $0x628] sm:$0xff]
    %v659 = vld [vmem:[#allocation9 + $0x630] sm:$0xff]
    %v660 = vld [vmem:[#allocation9 + $0x638] sm:$0xff]
    %v661 = vld [vmem:[#allocation9 + $0x640] sm:$0xff]
    %v662 = vld [vmem:[#allocation9 + $0x648] sm:$0xff]
    %v663 = vld [vmem:[#allocation9 + $0x650] sm:$0xff]
    %v664 = vld [vmem:[#allocation9 + $0x658] sm:$0xff]
    %v665 = vld [vmem:[#allocation9 + $0x660] sm:$0xff]
    %v666 = vld [vmem:[#allocation9 + $0x668] sm:$0xff]
    %v667 = vld [vmem:[#allocation9 + $0x670] sm:$0xff]
    %v668 = vld [vmem:[#allocation9 + $0x678] sm:$0xff]
    %v669 = vld [vmem:[#allocation9 + $0x680] sm:$0xff]
    %v670 = vld [vmem:[#allocation9 + $0x688] sm:$0xff]
    %v671 = vld [vmem:[#allocation9 + $0x690] sm:$0xff]
    %v672 = vld [vmem:[#allocation9 + $0x698] sm:$0xff]
    %v673 = vld [vmem:[#allocation9 + $0x6a0] sm:$0xff]
    %v674 = vld [vmem:[#allocation9 + $0x6a8] sm:$0xff]
    %v675 = vld [vmem:[#allocation9 + $0x6b0] sm:$0xff]
    %v676 = vld [vmem:[#allocation9 + $0x6b8] sm:$0xff]
    %v677 = vld [vmem:[#allocation9 + $0x6c0] sm:$0xff]
    %v678 = vld [vmem:[#allocation9 + $0x6c8] sm:$0xff]
    %v679 = vld [vmem:[#allocation9 + $0x6d0] sm:$0xff]
    %v680 = vld [vmem:[#allocation9 + $0x6d8] sm:$0xff]
    %v681 = vld [vmem:[#allocation9 + $0x6e0] sm:$0xff]
    %v682 = vld [vmem:[#allocation9 + $0x6e8] sm:$0xff]
    %v683 = vld [vmem:[#allocation9 + $0x6f0] sm:$0xff]
    %v684 = vld [vmem:[#allocation9 + $0x6f8] sm:$0xff]
    %v685 = vld [vmem:[#allocation9 + $0x700] sm:$0xff]
    %v686 = vld [vmem:[#allocation9 + $0x708] sm:$0xff]
    %v687 = vld [vmem:[#allocation9 + $0x710] sm:$0xff]
    %v688 = vld [vmem:[#allocation9 + $0x718] sm:$0xff]
    %v689 = vld [vmem:[#allocation9 + $0x720] sm:$0xff]
    %v690 = vld [vmem:[#allocation9 + $0x728] sm:$0xff]
    %v691 = vld [vmem:[#allocation9 + $0x730] sm:$0xff]
    %v692 = vld [vmem:[#allocation9 + $0x738] sm:$0xff]
    %v693 = vld [vmem:[#allocation9 + $0x740] sm:$0xff]
    %v694 = vld [vmem:[#allocation9 + $0x748] sm:$0xff]
    %v695 = vld [vmem:[#allocation9 + $0x750] sm:$0xff]
    %v696 = vld [vmem:[#allocation9 + $0x758] sm:$0xff]
    %v697 = vld [vmem:[#allocation9 + $0x760] sm:$0xff]
    %v698 = vld [vmem:[#allocation9 + $0x768] sm:$0xff]
    %v699 = vld [vmem:[#allocation9 + $0x770] sm:$0xff]
    %v700 = vld [vmem:[#allocation9 + $0x778] sm:$0xff]
    %v701 = vld [vmem:[#allocation9 + $0x780] sm:$0xff]
    %v702 = vld [vmem:[#allocation9 + $0x788] sm:$0xff]
    %v703 = vld [vmem:[#allocation9 + $0x790] sm:$0xff]
    %v704 = vld [vmem:[#allocation9 + $0x798] sm:$0xff]
    %v705 = vld [vmem:[#allocation9 + $0x7a0] sm:$0xff]
    %v706 = vld [vmem:[#allocation9 + $0x7a8] sm:$0xff]
    %v707 = vld [vmem:[#allocation9 + $0x7b0] sm:$0xff]
    %v708 = vld [vmem:[#allocation9 + $0x7b8] sm:$0xff]
    %v709 = vld [vmem:[#allocation9 + $0x7c0] sm:$0xff]
    %v710 = vld [vmem:[#allocation9 + $0x7c8] sm:$0xff]
    %v711 = vld [vmem:[#allocation9 + $0x7d0] sm:$0xff]
    %v712 = vld [vmem:[#allocation9 + $0x7d8] sm:$0xff]
    %v713 = vld [vmem:[#allocation9 + $0x7e0] sm:$0xff]
    %v714 = vld [vmem:[#allocation9 + $0x7e8] sm:$0xff]
    %v715 = vld [vmem:[#allocation9 + $0x7f0] sm:$0xff]
    %v716 = vld [vmem:[#allocation9 + $0x7f8] sm:$0xff]
    %v717 = vld [vmem:[#allocation9 + $0x800] sm:$0xff]
    %v718 = vld [vmem:[#allocation9 + $0x808] sm:$0xff]
    %v719 = vld [vmem:[#allocation9 + $0x810] sm:$0xff]
    %v720 = vld [vmem:[#allocation9 + $0x818] sm:$0xff]
    %v721 = vld [vmem:[#allocation9 + $0x820] sm:$0xff]
    %v722 = vld [vmem:[#allocation9 + $0x828] sm:$0xff]
    %v723 = vld [vmem:[#allocation9 + $0x830] sm:$0xff]
    %v724 = vld [vmem:[#allocation9 + $0x838] sm:$0xff]
    %v725 = vld [vmem:[#allocation9 + $0x840] sm:$0xff]
    %v726 = vld [vmem:[#allocation9 + $0x848] sm:$0xff]
    %v727 = vld [vmem:[#allocation9 + $0x850] sm:$0xff]
    %v728 = vld [vmem:[#allocation9 + $0x858] sm:$0xff]
    %v729 = vld [vmem:[#allocation9 + $0x860] sm:$0xff]
    %v730 = vld [vmem:[#allocation9 + $0x868] sm:$0xff]
    %v731 = vld [vmem:[#allocation9 + $0x870] sm:$0xff]
    %v732 = vld [vmem:[#allocation9 + $0x878] sm:$0xff]
    %v733 = vld [vmem:[#allocation9 + $0x880] sm:$0xff]
    %v734 = vld [vmem:[#allocation9 + $0x888] sm:$0xff]
    %v735 = vld [vmem:[#allocation9 + $0x890] sm:$0xff]
    %v736 = vld [vmem:[#allocation9 + $0x898] sm:$0xff]
    %v737 = vld [vmem:[#allocation9 + $0x8a0] sm:$0xff]
    %v738 = vld [vmem:[#allocation9 + $0x8a8] sm:$0xff]
    %v739 = vld [vmem:[#allocation9 + $0x8b0] sm:$0xff]
    %v740 = vld [vmem:[#allocation9 + $0x8b8] sm:$0xff]
    %v741 = vld [vmem:[#allocation9 + $0x8c0] sm:$0xff]
    %v742 = vld [vmem:[#allocation9 + $0x8c8] sm:$0xff]
    %v743 = vld [vmem:[#allocation9 + $0x8d0] sm:$0xff]
    %v744 = vld [vmem:[#allocation9 + $0x8d8] sm:$0xff]
    %v745 = vld [vmem:[#allocation9 + $0x8e0] sm:$0xff]
    %v746 = vld [vmem:[#allocation9 + $0x8e8] sm:$0xff]
    %v747 = vld [vmem:[#allocation9 + $0x8f0] sm:$0xff]
    %v748 = vld [vmem:[#allocation9 + $0x8f8] sm:$0xff]
    %v749 = vld [vmem:[#allocation9 + $0x900] sm:$0xff]
    %v750 = vld [vmem:[#allocation9 + $0x908] sm:$0xff]
    %v751 = vld [vmem:[#allocation9 + $0x910] sm:$0xff]
    %v752 = vld [vmem:[#allocation9 + $0x918] sm:$0xff]
    %v753 = vld [vmem:[#allocation9 + $0x920] sm:$0xff]
    %v754 = vld [vmem:[#allocation9 + $0x928] sm:$0xff]
    %v755 = vld [vmem:[#allocation9 + $0x930] sm:$0xff]
    %v756 = vld [vmem:[#allocation9 + $0x938] sm:$0xff]
    %v757 = vld [vmem:[#allocation9 + $0x940] sm:$0xff]
    %v758 = vld [vmem:[#allocation9 + $0x948] sm:$0xff]
    %v759 = vld [vmem:[#allocation9 + $0x950] sm:$0xff]
    %v760 = vld [vmem:[#allocation9 + $0x958] sm:$0xff]
    %v761 = vld [vmem:[#allocation9 + $0x960] sm:$0xff]
    %v762 = vld [vmem:[#allocation9 + $0x968] sm:$0xff]
    %v763 = vld [vmem:[#allocation9 + $0x970] sm:$0xff]
    %v764 = vld [vmem:[#allocation9 + $0x978] sm:$0xff]
    %v765 = vld [vmem:[#allocation9 + $0x980] sm:$0xff]
    %v766 = vld [vmem:[#allocation9 + $0x988] sm:$0xff]
    %v767 = vld [vmem:[#allocation9 + $0x990] sm:$0xff]
    %v768 = vld [vmem:[#allocation9 + $0x998] sm:$0xff]
    %v769 = vld [vmem:[#allocation9 + $0x9a0] sm:$0xff]
    %v770 = vld [vmem:[#allocation9 + $0x9a8] sm:$0xff]
    %v771 = vld [vmem:[#allocation9 + $0x9b0] sm:$0xff]
    %v772 = vld [vmem:[#allocation9 + $0x9b8] sm:$0xff]
    %v773 = vld [vmem:[#allocation9 + $0x9c0] sm:$0xff]
    %v774 = vld [vmem:[#allocation9 + $0x9c8] sm:$0xff]
    %v775 = vld [vmem:[#allocation9 + $0x9d0] sm:$0xff]
    %v776 = vld [vmem:[#allocation9 + $0x9d8] sm:$0xff]
    %v777 = vld [vmem:[#allocation9 + $0x9e0] sm:$0xff]
    %v778 = vld [vmem:[#allocation9 + $0x9e8] sm:$0xff]
    %v779 = vld [vmem:[#allocation9 + $0x9f0] sm:$0xff]
    %v780 = vld [vmem:[#allocation9 + $0x9f8] sm:$0xff]
    %v781 = vld [vmem:[#allocation9 + $0xa00] sm:$0xff]
    %v782 = vld [vmem:[#allocation9 + $0xa08] sm:$0xff]
    %v783 = vld [vmem:[#allocation9 + $0xa10] sm:$0xff]
    %v784 = vld [vmem:[#allocation9 + $0xa18] sm:$0xff]
    %v785 = vld [vmem:[#allocation9 + $0xa20] sm:$0xff]
    %v786 = vld [vmem:[#allocation9 + $0xa28] sm:$0xff]
    %v787 = vld [vmem:[#allocation9 + $0xa30] sm:$0xff]
    %v788 = vld [vmem:[#allocation9 + $0xa38] sm:$0xff]
    %v789 = vld [vmem:[#allocation9 + $0xa40] sm:$0xff]
    %v790 = vld [vmem:[#allocation9 + $0xa48] sm:$0xff]
    %v791 = vld [vmem:[#allocation9 + $0xa50] sm:$0xff]
    %v792 = vld [vmem:[#allocation9 + $0xa58] sm:$0xff]
    %v793 = vld [vmem:[#allocation9 + $0xa60] sm:$0xff]
    %v794 = vld [vmem:[#allocation9 + $0xa68] sm:$0xff]
    %v795 = vld [vmem:[#allocation9 + $0xa70] sm:$0xff]
    %v796 = vld [vmem:[#allocation9 + $0xa78] sm:$0xff]
    %v797 = vld [vmem:[#allocation9 + $0xa80] sm:$0xff]
    %v798 = vld [vmem:[#allocation9 + $0xa88] sm:$0xff]
    %v799 = vld [vmem:[#allocation9 + $0xa90] sm:$0xff]
    %v800 = vld [vmem:[#allocation9 + $0xa98] sm:$0xff]
    %v801 = vld [vmem:[#allocation9 + $0xaa0] sm:$0xff]
    %v802 = vld [vmem:[#allocation9 + $0xaa8] sm:$0xff]
    %v803 = vld [vmem:[#allocation9 + $0xab0] sm:$0xff]
    %v804 = vld [vmem:[#allocation9 + $0xab8] sm:$0xff]
    %v805 = vld [vmem:[#allocation9 + $0xac0] sm:$0xff]
    %v806 = vld [vmem:[#allocation9 + $0xac8] sm:$0xff]
    %v807 = vld [vmem:[#allocation9 + $0xad0] sm:$0xff]
    %v808 = vld [vmem:[#allocation9 + $0xad8] sm:$0xff]
    %v809 = vld [vmem:[#allocation9 + $0xae0] sm:$0xff]
    %v810 = vld [vmem:[#allocation9 + $0xae8] sm:$0xff]
    %v811 = vld [vmem:[#allocation9 + $0xaf0] sm:$0xff]
    %v812 = vld [vmem:[#allocation9 + $0xaf8] sm:$0xff]
    %v813 = vld [vmem:[#allocation9 + $0xb00] sm:$0xff]
    %v814 = vld [vmem:[#allocation9 + $0xb08] sm:$0xff]
    %v815 = vld [vmem:[#allocation9 + $0xb10] sm:$0xff]
    %v816 = vld [vmem:[#allocation9 + $0xb18] sm:$0xff]
    %v817 = vld [vmem:[#allocation9 + $0xb20] sm:$0xff]
    %v818 = vld [vmem:[#allocation9 + $0xb28] sm:$0xff]
    %v819 = vld [vmem:[#allocation9 + $0xb30] sm:$0xff]
    %v820 = vld [vmem:[#allocation9 + $0xb38] sm:$0xff]
    %v821 = vld [vmem:[#allocation9 + $0xb40] sm:$0xff]
    %v822 = vld [vmem:[#allocation9 + $0xb48] sm:$0xff]
    %v823 = vld [vmem:[#allocation9 + $0xb50] sm:$0xff]
    %v824 = vld [vmem:[#allocation9 + $0xb58] sm:$0xff]
    %v825 = vld [vmem:[#allocation9 + $0xb60] sm:$0xff]
    %v826 = vld [vmem:[#allocation9 + $0xb68] sm:$0xff]
    %v827 = vld [vmem:[#allocation9 + $0xb70] sm:$0xff]
    %v828 = vld [vmem:[#allocation9 + $0xb78] sm:$0xff]
    %v829 = vld [vmem:[#allocation9 + $0xb80] sm:$0xff]
    %v830 = vld [vmem:[#allocation9 + $0xb88] sm:$0xff]
    %v831 = vld [vmem:[#allocation9 + $0xb90] sm:$0xff]
    %v832 = vld [vmem:[#allocation9 + $0xb98] sm:$0xff]
    %v833 = vld [vmem:[#allocation9 + $0xba0] sm:$0xff]
    %v834 = vld [vmem:[#allocation9 + $0xba8] sm:$0xff]
    %v835 = vld [vmem:[#allocation9 + $0xbb0] sm:$0xff]
    %v836 = vld [vmem:[#allocation9 + $0xbb8] sm:$0xff]
    %v837 = vld [vmem:[#allocation9 + $0xbc0] sm:$0xff]
    %v838 = vld [vmem:[#allocation9 + $0xbc8] sm:$0xff]
    %v839 = vld [vmem:[#allocation9 + $0xbd0] sm:$0xff]
    %v840 = vld [vmem:[#allocation9 + $0xbd8] sm:$0xff]
    %v841 = vld [vmem:[#allocation9 + $0xbe0] sm:$0xff]
    %v842 = vld [vmem:[#allocation9 + $0xbe8] sm:$0xff]
    %v843 = vld [vmem:[#allocation9 + $0xbf0] sm:$0xff]
    %v844 = vld [vmem:[#allocation9 + $0xbf8] sm:$0xff]
    %v845 = vld [vmem:[#allocation9 + $0xc00] sm:$0xff]
    %v846 = vld [vmem:[#allocation9 + $0xc08] sm:$0xff]
    %v847 = vld [vmem:[#allocation9 + $0xc10] sm:$0xff]
    %v848 = vld [vmem:[#allocation9 + $0xc18] sm:$0xff]
    %v849 = vld [vmem:[#allocation9 + $0xc20] sm:$0xff]
    %v850 = vld [vmem:[#allocation9 + $0xc28] sm:$0xff]
    %v851 = vld [vmem:[#allocation9 + $0xc30] sm:$0xff]
    %v852 = vld [vmem:[#allocation9 + $0xc38] sm:$0xff]
    %v853 = vld [vmem:[#allocation9 + $0xc40] sm:$0xff]
    %v854 = vld [vmem:[#allocation9 + $0xc48] sm:$0xff]
    %v855 = vld [vmem:[#allocation9 + $0xc50] sm:$0xff]
    %v856 = vld [vmem:[#allocation9 + $0xc58] sm:$0xff]
    %v857 = vld [vmem:[#allocation9 + $0xc60] sm:$0xff]
    %v858 = vld [vmem:[#allocation9 + $0xc68] sm:$0xff]
    %v859 = vld [vmem:[#allocation9 + $0xc70] sm:$0xff]
    %v860 = vld [vmem:[#allocation9 + $0xc78] sm:$0xff]
    %v861 = vld [vmem:[#allocation9 + $0xc80] sm:$0xff]
    %v862 = vld [vmem:[#allocation9 + $0xc88] sm:$0xff]
    %v863 = vld [vmem:[#allocation9 + $0xc90] sm:$0xff]
    %v864 = vld [vmem:[#allocation9 + $0xc98] sm:$0xff]
    %v865 = vld [vmem:[#allocation9 + $0xca0] sm:$0xff]
    %v866 = vld [vmem:[#allocation9 + $0xca8] sm:$0xff]
    %v867 = vld [vmem:[#allocation9 + $0xcb0] sm:$0xff]
    %v868 = vld [vmem:[#allocation9 + $0xcb8] sm:$0xff]
    %v869 = vld [vmem:[#allocation9 + $0xcc0] sm:$0xff]
    %v870 = vld [vmem:[#allocation9 + $0xcc8] sm:$0xff]
    %v871 = vld [vmem:[#allocation9 + $0xcd0] sm:$0xff]
    %v872 = vld [vmem:[#allocation9 + $0xcd8] sm:$0xff]
    %v873 = vld [vmem:[#allocation9 + $0xce0] sm:$0xff]
    %v874 = vld [vmem:[#allocation9 + $0xce8] sm:$0xff]
    %v875 = vld [vmem:[#allocation9 + $0xcf0] sm:$0xff]
    %v876 = vld [vmem:[#allocation9 + $0xcf8] sm:$0xff]
    %v877 = vld [vmem:[#allocation9 + $0xd00] sm:$0xff]
    %v878 = vld [vmem:[#allocation9 + $0xd08] sm:$0xff]
    %v879 = vld [vmem:[#allocation9 + $0xd10] sm:$0xff]
    %v880 = vld [vmem:[#allocation9 + $0xd18] sm:$0xff]
    %v881 = vld [vmem:[#allocation9 + $0xd20] sm:$0xff]
    %v882 = vld [vmem:[#allocation9 + $0xd28] sm:$0xff]
    %v883 = vld [vmem:[#allocation9 + $0xd30] sm:$0xff]
    %v884 = vld [vmem:[#allocation9 + $0xd38] sm:$0xff]
    %v885 = vld [vmem:[#allocation9 + $0xd40] sm:$0xff]
    %v886 = vld [vmem:[#allocation9 + $0xd48] sm:$0xff]
    %v887 = vld [vmem:[#allocation9 + $0xd50] sm:$0xff]
    %v888 = vld [vmem:[#allocation9 + $0xd58] sm:$0xff]
    %v889 = vld [vmem:[#allocation9 + $0xd60] sm:$0xff]
    %v890 = vld [vmem:[#allocation9 + $0xd68] sm:$0xff]
    %v891 = vld [vmem:[#allocation9 + $0xd70] sm:$0xff]
    %v892 = vld [vmem:[#allocation9 + $0xd78] sm:$0xff]
    %v893 = vld [vmem:[#allocation9 + $0xd80] sm:$0xff]
    %v894 = vld [vmem:[#allocation9 + $0xd88] sm:$0xff]
    %v895 = vld [vmem:[#allocation9 + $0xd90] sm:$0xff]
    %v896 = vld [vmem:[#allocation9 + $0xd98] sm:$0xff]
    %v897 = vld [vmem:[#allocation9 + $0xda0] sm:$0xff]
    %v898 = vld [vmem:[#allocation9 + $0xda8] sm:$0xff]
    %v899 = vld [vmem:[#allocation9 + $0xdb0] sm:$0xff]
    %v900 = vld [vmem:[#allocation9 + $0xdb8] sm:$0xff]
    %v901 = vld [vmem:[#allocation9 + $0xdc0] sm:$0xff]
    %v902 = vld [vmem:[#allocation9 + $0xdc8] sm:$0xff]
    %v903 = vld [vmem:[#allocation9 + $0xdd0] sm:$0xff]
    %v904 = vld [vmem:[#allocation9 + $0xdd8] sm:$0xff]
    %v905 = vld [vmem:[#allocation9 + $0xde0] sm:$0xff]
    %v906 = vld [vmem:[#allocation9 + $0xde8] sm:$0xff]
    %v907 = vld [vmem:[#allocation9 + $0xdf0] sm:$0xff]
    %v908 = vld [vmem:[#allocation9 + $0xdf8] sm:$0xff]
    %v909 = vld [vmem:[#allocation9 + $0xe00] sm:$0xff]
    %v910 = vld [vmem:[#allocation9 + $0xe08] sm:$0xff]
    %v911 = vld [vmem:[#allocation9 + $0xe10] sm:$0xff]
    %v912 = vld [vmem:[#allocation9 + $0xe18] sm:$0xff]
    %v913 = vld [vmem:[#allocation9 + $0xe20] sm:$0xff]
    %v914 = vld [vmem:[#allocation9 + $0xe28] sm:$0xff]
    %v915 = vld [vmem:[#allocation9 + $0xe30] sm:$0xff]
    %v916 = vld [vmem:[#allocation9 + $0xe38] sm:$0xff]
    %v917 = vld [vmem:[#allocation9 + $0xe40] sm:$0xff]
    %v918 = vld [vmem:[#allocation9 + $0xe48] sm:$0xff]
    %v919 = vld [vmem:[#allocation9 + $0xe50] sm:$0xff]
    %v920 = vld [vmem:[#allocation9 + $0xe58] sm:$0xff]
    %v921 = vld [vmem:[#allocation9 + $0xe60] sm:$0xff]
    %v922 = vld [vmem:[#allocation9 + $0xe68] sm:$0xff]
    %v923 = vld [vmem:[#allocation9 + $0xe70] sm:$0xff]
    %v924 = vld [vmem:[#allocation9 + $0xe78] sm:$0xff]
    %v925 = vld [vmem:[#allocation9 + $0xe80] sm:$0xff]
    %v926 = vld [vmem:[#allocation9 + $0xe88] sm:$0xff]
    %v927 = vld [vmem:[#allocation9 + $0xe90] sm:$0xff]
    %v928 = vld [vmem:[#allocation9 + $0xe98] sm:$0xff]
    %v929 = vld [vmem:[#allocation9 + $0xea0] sm:$0xff]
    %v930 = vld [vmem:[#allocation9 + $0xea8] sm:$0xff]
    %v931 = vld [vmem:[#allocation9 + $0xeb0] sm:$0xff]
    %v932 = vld [vmem:[#allocation9 + $0xeb8] sm:$0xff]
    %v933 = vld [vmem:[#allocation9 + $0xec0] sm:$0xff]
    %v934 = vld [vmem:[#allocation9 + $0xec8] sm:$0xff]
    %v935 = vld [vmem:[#allocation9 + $0xed0] sm:$0xff]
    %v936 = vld [vmem:[#allocation9 + $0xed8] sm:$0xff]
    %v937 = vld [vmem:[#allocation9 + $0xee0] sm:$0xff]
    %v938 = vld [vmem:[#allocation9 + $0xee8] sm:$0xff]
    %v939 = vld [vmem:[#allocation9 + $0xef0] sm:$0xff]
    %v940 = vld [vmem:[#allocation9 + $0xef8] sm:$0xff]
    %v941 = vld [vmem:[#allocation9 + $0xf00] sm:$0xff]
    %v942 = vld [vmem:[#allocation9 + $0xf08] sm:$0xff]
    %v943 = vld [vmem:[#allocation9 + $0xf10] sm:$0xff]
    %v944 = vld [vmem:[#allocation9 + $0xf18] sm:$0xff]
    %v945 = vld [vmem:[#allocation9 + $0xf20] sm:$0xff]
    %v946 = vld [vmem:[#allocation9 + $0xf28] sm:$0xff]
    %v947 = vld [vmem:[#allocation9 + $0xf30] sm:$0xff]
    %v948 = vld [vmem:[#allocation9 + $0xf38] sm:$0xff]
    %v949 = vld [vmem:[#allocation9 + $0xf40] sm:$0xff]
    %v950 = vld [vmem:[#allocation9 + $0xf48] sm:$0xff]
    %v951 = vld [vmem:[#allocation9 + $0xf50] sm:$0xff]
    %v952 = vld [vmem:[#allocation9 + $0xf58] sm:$0xff]
    %v953 = vld [vmem:[#allocation9 + $0xf60] sm:$0xff]
    %v954 = vld [vmem:[#allocation9 + $0xf68] sm:$0xff]
    %v955 = vld [vmem:[#allocation9 + $0xf70] sm:$0xff]
    %v956 = vld [vmem:[#allocation9 + $0xf78] sm:$0xff]
    %v957 = vld [vmem:[#allocation9 + $0xf80] sm:$0xff]
    %v958 = vld [vmem:[#allocation9 + $0xf88] sm:$0xff]
    %v959 = vld [vmem:[#allocation9 + $0xf90] sm:$0xff]
    %v960 = vld [vmem:[#allocation9 + $0xf98] sm:$0xff]
    %v961 = vld [vmem:[#allocation9 + $0xfa0] sm:$0xff]
    %v962 = vld [vmem:[#allocation9 + $0xfa8] sm:$0xff]
    %v963 = vld [vmem:[#allocation9 + $0xfb0] sm:$0xff]
    %v964 = vld [vmem:[#allocation9 + $0xfb8] sm:$0xff]
    %v965 = vld [vmem:[#allocation9 + $0xfc0] sm:$0xff]
    %v966 = vld [vmem:[#allocation9 + $0xfc8] sm:$0xff]
    %v967 = vld [vmem:[#allocation9 + $0xfd0] sm:$0xff]
    %v968 = vld [vmem:[#allocation9 + $0xfd8] sm:$0xff]
    %v969 = vld [vmem:[#allocation9 + $0xfe0] sm:$0xff]
    %v970 = vld [vmem:[#allocation9 + $0xfe8] sm:$0xff]
    %v971 = vld [vmem:[#allocation9 + $0xff0] sm:$0xff]
    %v972 = vld [vmem:[#allocation9 + $0xff8] sm:$0xff]
    %v973 = vld [vmem:[#allocation11] sm:$0xff]
    %v975 = vlaneseq
    %v976 = vshrl.u32 %v975, 7
    %v977 = vsub.s32 0, %v976
    %v978 = vrot.slane %v973, %v977
    %v979 = vlaneseq
    %v980 = vshrl.u32 %v979, 7
    %v981 = vsub.s32 1, %v980
    %v982 = vrot.slane %v973, %v981
    %v983 = vlaneseq
    %v984 = vshrl.u32 %v983, 7
    %v985 = vsub.s32 2, %v984
    %v986 = vrot.slane %v973, %v985
    %v987 = vlaneseq
    %v988 = vshrl.u32 %v987, 7
    %v989 = vsub.s32 3, %v988
    %v990 = vrot.slane %v973, %v989
    %v991 = vlaneseq
    %v992 = vshrl.u32 %v991, 7
    %v993 = vsub.s32 4, %v992
    %v994 = vrot.slane %v973, %v993
    %v995 = vlaneseq
    %v996 = vshrl.u32 %v995, 7
    %v997 = vsub.s32 5, %v996
    %v998 = vrot.slane %v973, %v997
    %v999 = vlaneseq
    %v1000 = vshrl.u32 %v999, 7
    %v1001 = vsub.s32 6, %v1000
    %v1002 = vrot.slane %v973, %v1001
    %v1003 = vlaneseq
    %v1004 = vshrl.u32 %v1003, 7
    %v1005 = vsub.s32 7, %v1004
    %v1006 = vrot.slane %v973, %v1005
    %v1527 = vunpack.c.l.b16 %v461
    %v1528 = vunpack.c.h.b16 %v461
    %v1529 = vunpack.c.l.b16 %v462
    %v1530 = vunpack.c.h.b16 %v462
    %v1531 = vunpack.c.l.b16 %v463
    %v1532 = vunpack.c.h.b16 %v463
    %v1533 = vunpack.c.l.b16 %v464
    %v1534 = vunpack.c.h.b16 %v464
    %v1535 = vunpack.c.l.b16 %v465
    %v1536 = vunpack.c.h.b16 %v465
    %v1537 = vunpack.c.l.b16 %v466
    %v1538 = vunpack.c.h.b16 %v466
    %v1539 = vunpack.c.l.b16 %v467
    %v1540 = vunpack.c.h.b16 %v467
    %v1541 = vunpack.c.l.b16 %v468
    %v1542 = vunpack.c.h.b16 %v468
    %v1543 = vunpack.c.l.b16 %v469
    %v1544 = vunpack.c.h.b16 %v469
    %v1545 = vunpack.c.l.b16 %v470
    %v1546 = vunpack.c.h.b16 %v470
    %v1547 = vunpack.c.l.b16 %v471
    %v1548 = vunpack.c.h.b16 %v471
    %v1549 = vunpack.c.l.b16 %v472
    %v1550 = vunpack.c.h.b16 %v472
    %v1551 = vunpack.c.l.b16 %v473
    %v1552 = vunpack.c.h.b16 %v473
    %v1553 = vunpack.c.l.b16 %v474
    %v1554 = vunpack.c.h.b16 %v474
    %v1555 = vunpack.c.l.b16 %v475
    %v1556 = vunpack.c.h.b16 %v475
    %v1557 = vunpack.c.l.b16 %v476
    %v1558 = vunpack.c.h.b16 %v476
    %v1559 = vunpack.c.l.b16 %v477
    %v1560 = vunpack.c.h.b16 %v477
    %v1561 = vunpack.c.l.b16 %v478
    %v1562 = vunpack.c.h.b16 %v478
    %v1563 = vunpack.c.l.b16 %v479
    %v1564 = vunpack.c.h.b16 %v479
    %v1565 = vunpack.c.l.b16 %v480
    %v1566 = vunpack.c.h.b16 %v480
    %v1567 = vunpack.c.l.b16 %v481
    %v1568 = vunpack.c.h.b16 %v481
    %v1569 = vunpack.c.l.b16 %v482
    %v1570 = vunpack.c.h.b16 %v482
    %v1571 = vunpack.c.l.b16 %v483
    %v1572 = vunpack.c.h.b16 %v483
    %v1573 = vunpack.c.l.b16 %v484
    %v1574 = vunpack.c.h.b16 %v484
    %v1575 = vunpack.c.l.b16 %v485
    %v1576 = vunpack.c.h.b16 %v485
    %v1577 = vunpack.c.l.b16 %v486
    %v1578 = vunpack.c.h.b16 %v486
    %v1579 = vunpack.c.l.b16 %v487
    %v1580 = vunpack.c.h.b16 %v487
    %v1581 = vunpack.c.l.b16 %v488
    %v1582 = vunpack.c.h.b16 %v488
    %v1583 = vunpack.c.l.b16 %v489
    %v1584 = vunpack.c.h.b16 %v489
    %v1585 = vunpack.c.l.b16 %v490
    %v1586 = vunpack.c.h.b16 %v490
    %v1587 = vunpack.c.l.b16 %v491
    %v1588 = vunpack.c.h.b16 %v491
    %v1589 = vunpack.c.l.b16 %v492
    %v1590 = vunpack.c.h.b16 %v492
    %v1591 = vunpack.c.l.b16 %v493
    %v1592 = vunpack.c.h.b16 %v493
    %v1593 = vunpack.c.l.b16 %v494
    %v1594 = vunpack.c.h.b16 %v494
    %v1595 = vunpack.c.l.b16 %v495
    %v1596 = vunpack.c.h.b16 %v495
    %v1597 = vunpack.c.l.b16 %v496
    %v1598 = vunpack.c.h.b16 %v496
    %v1599 = vunpack.c.l.b16 %v497
    %v1600 = vunpack.c.h.b16 %v497
    %v1601 = vunpack.c.l.b16 %v498
    %v1602 = vunpack.c.h.b16 %v498
    %v1603 = vunpack.c.l.b16 %v499
    %v1604 = vunpack.c.h.b16 %v499
    %v1605 = vunpack.c.l.b16 %v500
    %v1606 = vunpack.c.h.b16 %v500
    %v1607 = vunpack.c.l.b16 %v501
    %v1608 = vunpack.c.h.b16 %v501
    %v1609 = vunpack.c.l.b16 %v502
    %v1610 = vunpack.c.h.b16 %v502
    %v1611 = vunpack.c.l.b16 %v503
    %v1612 = vunpack.c.h.b16 %v503
    %v1613 = vunpack.c.l.b16 %v504
    %v1614 = vunpack.c.h.b16 %v504
    %v1615 = vunpack.c.l.b16 %v505
    %v1616 = vunpack.c.h.b16 %v505
    %v1617 = vunpack.c.l.b16 %v506
    %v1618 = vunpack.c.h.b16 %v506
    %v1619 = vunpack.c.l.b16 %v507
    %v1620 = vunpack.c.h.b16 %v507
    %v1621 = vunpack.c.l.b16 %v508
    %v1622 = vunpack.c.h.b16 %v508
    %v1623 = vunpack.c.l.b16 %v509
    %v1624 = vunpack.c.h.b16 %v509
    %v1625 = vunpack.c.l.b16 %v510
    %v1626 = vunpack.c.h.b16 %v510
    %v1627 = vunpack.c.l.b16 %v511
    %v1628 = vunpack.c.h.b16 %v511
    %v1629 = vunpack.c.l.b16 %v512
    %v1630 = vunpack.c.h.b16 %v512
    %v1631 = vunpack.c.l.b16 %v513
    %v1632 = vunpack.c.h.b16 %v513
    %v1633 = vunpack.c.l.b16 %v514
    %v1634 = vunpack.c.h.b16 %v514
    %v1635 = vunpack.c.l.b16 %v515
    %v1636 = vunpack.c.h.b16 %v515
    %v1637 = vunpack.c.l.b16 %v516
    %v1638 = vunpack.c.h.b16 %v516
    %v1639 = vunpack.c.l.b16 %v517
    %v1640 = vunpack.c.h.b16 %v517
    %v1641 = vunpack.c.l.b16 %v518
    %v1642 = vunpack.c.h.b16 %v518
    %v1643 = vunpack.c.l.b16 %v519
    %v1644 = vunpack.c.h.b16 %v519
    %v1645 = vunpack.c.l.b16 %v520
    %v1646 = vunpack.c.h.b16 %v520
    %v1647 = vunpack.c.l.b16 %v521
    %v1648 = vunpack.c.h.b16 %v521
    %v1649 = vunpack.c.l.b16 %v522
    %v1650 = vunpack.c.h.b16 %v522
    %v1651 = vunpack.c.l.b16 %v523
    %v1652 = vunpack.c.h.b16 %v523
    %v1653 = vunpack.c.l.b16 %v524
    %v1654 = vunpack.c.h.b16 %v524
    %v1655 = vunpack.c.l.b16 %v525
    %v1656 = vunpack.c.h.b16 %v525
    %v1657 = vunpack.c.l.b16 %v526
    %v1658 = vunpack.c.h.b16 %v526
    %v1659 = vunpack.c.l.b16 %v527
    %v1660 = vunpack.c.h.b16 %v527
    %v1661 = vunpack.c.l.b16 %v528
    %v1662 = vunpack.c.h.b16 %v528
    %v1663 = vunpack.c.l.b16 %v529
    %v1664 = vunpack.c.h.b16 %v529
    %v1665 = vunpack.c.l.b16 %v530
    %v1666 = vunpack.c.h.b16 %v530
    %v1667 = vunpack.c.l.b16 %v531
    %v1668 = vunpack.c.h.b16 %v531
    %v1669 = vunpack.c.l.b16 %v532
    %v1670 = vunpack.c.h.b16 %v532
    %v1671 = vunpack.c.l.b16 %v533
    %v1672 = vunpack.c.h.b16 %v533
    %v1673 = vunpack.c.l.b16 %v534
    %v1674 = vunpack.c.h.b16 %v534
    %v1675 = vunpack.c.l.b16 %v535
    %v1676 = vunpack.c.h.b16 %v535
    %v1677 = vunpack.c.l.b16 %v536
    %v1678 = vunpack.c.h.b16 %v536
    %v1679 = vunpack.c.l.b16 %v537
    %v1680 = vunpack.c.h.b16 %v537
    %v1681 = vunpack.c.l.b16 %v538
    %v1682 = vunpack.c.h.b16 %v538
    %v1683 = vunpack.c.l.b16 %v539
    %v1684 = vunpack.c.h.b16 %v539
    %v1685 = vunpack.c.l.b16 %v540
    %v1686 = vunpack.c.h.b16 %v540
    %v1687 = vunpack.c.l.b16 %v541
    %v1688 = vunpack.c.h.b16 %v541
    %v1689 = vunpack.c.l.b16 %v542
    %v1690 = vunpack.c.h.b16 %v542
    %v1691 = vunpack.c.l.b16 %v543
    %v1692 = vunpack.c.h.b16 %v543
    %v1693 = vunpack.c.l.b16 %v544
    %v1694 = vunpack.c.h.b16 %v544
    %v1695 = vunpack.c.l.b16 %v545
    %v1696 = vunpack.c.h.b16 %v545
    %v1697 = vunpack.c.l.b16 %v546
    %v1698 = vunpack.c.h.b16 %v546
    %v1699 = vunpack.c.l.b16 %v547
    %v1700 = vunpack.c.h.b16 %v547
    %v1701 = vunpack.c.l.b16 %v548
    %v1702 = vunpack.c.h.b16 %v548
    %v1703 = vunpack.c.l.b16 %v549
    %v1704 = vunpack.c.h.b16 %v549
    %v1705 = vunpack.c.l.b16 %v550
    %v1706 = vunpack.c.h.b16 %v550
    %v1707 = vunpack.c.l.b16 %v551
    %v1708 = vunpack.c.h.b16 %v551
    %v1709 = vunpack.c.l.b16 %v552
    %v1710 = vunpack.c.h.b16 %v552
    %v1711 = vunpack.c.l.b16 %v553
    %v1712 = vunpack.c.h.b16 %v553
    %v1713 = vunpack.c.l.b16 %v554
    %v1714 = vunpack.c.h.b16 %v554
    %v1715 = vunpack.c.l.b16 %v555
    %v1716 = vunpack.c.h.b16 %v555
    %v1717 = vunpack.c.l.b16 %v556
    %v1718 = vunpack.c.h.b16 %v556
    %v1719 = vunpack.c.l.b16 %v557
    %v1720 = vunpack.c.h.b16 %v557
    %v1721 = vunpack.c.l.b16 %v558
    %v1722 = vunpack.c.h.b16 %v558
    %v1723 = vunpack.c.l.b16 %v559
    %v1724 = vunpack.c.h.b16 %v559
    %v1725 = vunpack.c.l.b16 %v560
    %v1726 = vunpack.c.h.b16 %v560
    %v1727 = vunpack.c.l.b16 %v561
    %v1728 = vunpack.c.h.b16 %v561
    %v1729 = vunpack.c.l.b16 %v562
    %v1730 = vunpack.c.h.b16 %v562
    %v1731 = vunpack.c.l.b16 %v563
    %v1732 = vunpack.c.h.b16 %v563
    %v1733 = vunpack.c.l.b16 %v564
    %v1734 = vunpack.c.h.b16 %v564
    %v1735 = vunpack.c.l.b16 %v565
    %v1736 = vunpack.c.h.b16 %v565
    %v1737 = vunpack.c.l.b16 %v566
    %v1738 = vunpack.c.h.b16 %v566
    %v1739 = vunpack.c.l.b16 %v567
    %v1740 = vunpack.c.h.b16 %v567
    %v1741 = vunpack.c.l.b16 %v568
    %v1742 = vunpack.c.h.b16 %v568
    %v1743 = vunpack.c.l.b16 %v569
    %v1744 = vunpack.c.h.b16 %v569
    %v1745 = vunpack.c.l.b16 %v570
    %v1746 = vunpack.c.h.b16 %v570
    %v1747 = vunpack.c.l.b16 %v571
    %v1748 = vunpack.c.h.b16 %v571
    %v1749 = vunpack.c.l.b16 %v572
    %v1750 = vunpack.c.h.b16 %v572
    %v1751 = vunpack.c.l.b16 %v573
    %v1752 = vunpack.c.h.b16 %v573
    %v1753 = vunpack.c.l.b16 %v574
    %v1754 = vunpack.c.h.b16 %v574
    %v1755 = vunpack.c.l.b16 %v575
    %v1756 = vunpack.c.h.b16 %v575
    %v1757 = vunpack.c.l.b16 %v576
    %v1758 = vunpack.c.h.b16 %v576
    %v1759 = vunpack.c.l.b16 %v577
    %v1760 = vunpack.c.h.b16 %v577
    %v1761 = vunpack.c.l.b16 %v578
    %v1762 = vunpack.c.h.b16 %v578
    %v1763 = vunpack.c.l.b16 %v579
    %v1764 = vunpack.c.h.b16 %v579
    %v1765 = vunpack.c.l.b16 %v580
    %v1766 = vunpack.c.h.b16 %v580
    %v1767 = vunpack.c.l.b16 %v581
    %v1768 = vunpack.c.h.b16 %v581
    %v1769 = vunpack.c.l.b16 %v582
    %v1770 = vunpack.c.h.b16 %v582
    %v1771 = vunpack.c.l.b16 %v583
    %v1772 = vunpack.c.h.b16 %v583
    %v1773 = vunpack.c.l.b16 %v584
    %v1774 = vunpack.c.h.b16 %v584
    %v1775 = vunpack.c.l.b16 %v585
    %v1776 = vunpack.c.h.b16 %v585
    %v1777 = vunpack.c.l.b16 %v586
    %v1778 = vunpack.c.h.b16 %v586
    %v1779 = vunpack.c.l.b16 %v587
    %v1780 = vunpack.c.h.b16 %v587
    %v1781 = vunpack.c.l.b16 %v588
    %v1782 = vunpack.c.h.b16 %v588
    %v1783 = vunpack.c.l.b16 %v589
    %v1784 = vunpack.c.h.b16 %v589
    %v1785 = vunpack.c.l.b16 %v590
    %v1786 = vunpack.c.h.b16 %v590
    %v1787 = vunpack.c.l.b16 %v591
    %v1788 = vunpack.c.h.b16 %v591
    %v1789 = vunpack.c.l.b16 %v592
    %v1790 = vunpack.c.h.b16 %v592
    %v1791 = vunpack.c.l.b16 %v593
    %v1792 = vunpack.c.h.b16 %v593
    %v1793 = vunpack.c.l.b16 %v594
    %v1794 = vunpack.c.h.b16 %v594
    %v1795 = vunpack.c.l.b16 %v595
    %v1796 = vunpack.c.h.b16 %v595
    %v1797 = vunpack.c.l.b16 %v596
    %v1798 = vunpack.c.h.b16 %v596
    %v1799 = vunpack.c.l.b16 %v597
    %v1800 = vunpack.c.h.b16 %v597
    %v1801 = vunpack.c.l.b16 %v598
    %v1802 = vunpack.c.h.b16 %v598
    %v1803 = vunpack.c.l.b16 %v599
    %v1804 = vunpack.c.h.b16 %v599
    %v1805 = vunpack.c.l.b16 %v600
    %v1806 = vunpack.c.h.b16 %v600
    %v1807 = vunpack.c.l.b16 %v601
    %v1808 = vunpack.c.h.b16 %v601
    %v1809 = vunpack.c.l.b16 %v602
    %v1810 = vunpack.c.h.b16 %v602
    %v1811 = vunpack.c.l.b16 %v603
    %v1812 = vunpack.c.h.b16 %v603
    %v1813 = vunpack.c.l.b16 %v604
    %v1814 = vunpack.c.h.b16 %v604
    %v1815 = vunpack.c.l.b16 %v605
    %v1816 = vunpack.c.h.b16 %v605
    %v1817 = vunpack.c.l.b16 %v606
    %v1818 = vunpack.c.h.b16 %v606
    %v1819 = vunpack.c.l.b16 %v607
    %v1820 = vunpack.c.h.b16 %v607
    %v1821 = vunpack.c.l.b16 %v608
    %v1822 = vunpack.c.h.b16 %v608
    %v1823 = vunpack.c.l.b16 %v609
    %v1824 = vunpack.c.h.b16 %v609
    %v1825 = vunpack.c.l.b16 %v610
    %v1826 = vunpack.c.h.b16 %v610
    %v1827 = vunpack.c.l.b16 %v611
    %v1828 = vunpack.c.h.b16 %v611
    %v1829 = vunpack.c.l.b16 %v612
    %v1830 = vunpack.c.h.b16 %v612
    %v1831 = vunpack.c.l.b16 %v613
    %v1832 = vunpack.c.h.b16 %v613
    %v1833 = vunpack.c.l.b16 %v614
    %v1834 = vunpack.c.h.b16 %v614
    %v1835 = vunpack.c.l.b16 %v615
    %v1836 = vunpack.c.h.b16 %v615
    %v1837 = vunpack.c.l.b16 %v616
    %v1838 = vunpack.c.h.b16 %v616
    %v1839 = vunpack.c.l.b16 %v617
    %v1840 = vunpack.c.h.b16 %v617
    %v1841 = vunpack.c.l.b16 %v618
    %v1842 = vunpack.c.h.b16 %v618
    %v1843 = vunpack.c.l.b16 %v619
    %v1844 = vunpack.c.h.b16 %v619
    %v1845 = vunpack.c.l.b16 %v620
    %v1846 = vunpack.c.h.b16 %v620
    %v1847 = vunpack.c.l.b16 %v621
    %v1848 = vunpack.c.h.b16 %v621
    %v1849 = vunpack.c.l.b16 %v622
    %v1850 = vunpack.c.h.b16 %v622
    %v1851 = vunpack.c.l.b16 %v623
    %v1852 = vunpack.c.h.b16 %v623
    %v1853 = vunpack.c.l.b16 %v624
    %v1854 = vunpack.c.h.b16 %v624
    %v1855 = vunpack.c.l.b16 %v625
    %v1856 = vunpack.c.h.b16 %v625
    %v1857 = vunpack.c.l.b16 %v626
    %v1858 = vunpack.c.h.b16 %v626
    %v1859 = vunpack.c.l.b16 %v627
    %v1860 = vunpack.c.h.b16 %v627
    %v1861 = vunpack.c.l.b16 %v628
    %v1862 = vunpack.c.h.b16 %v628
    %v1863 = vunpack.c.l.b16 %v629
    %v1864 = vunpack.c.h.b16 %v629
    %v1865 = vunpack.c.l.b16 %v630
    %v1866 = vunpack.c.h.b16 %v630
    %v1867 = vunpack.c.l.b16 %v631
    %v1868 = vunpack.c.h.b16 %v631
    %v1869 = vunpack.c.l.b16 %v632
    %v1870 = vunpack.c.h.b16 %v632
    %v1871 = vunpack.c.l.b16 %v633
    %v1872 = vunpack.c.h.b16 %v633
    %v1873 = vunpack.c.l.b16 %v634
    %v1874 = vunpack.c.h.b16 %v634
    %v1875 = vunpack.c.l.b16 %v635
    %v1876 = vunpack.c.h.b16 %v635
    %v1877 = vunpack.c.l.b16 %v636
    %v1878 = vunpack.c.h.b16 %v636
    %v1879 = vunpack.c.l.b16 %v637
    %v1880 = vunpack.c.h.b16 %v637
    %v1881 = vunpack.c.l.b16 %v638
    %v1882 = vunpack.c.h.b16 %v638
    %v1883 = vunpack.c.l.b16 %v639
    %v1884 = vunpack.c.h.b16 %v639
    %v1885 = vunpack.c.l.b16 %v640
    %v1886 = vunpack.c.h.b16 %v640
    %v1887 = vunpack.c.l.b16 %v641
    %v1888 = vunpack.c.h.b16 %v641
    %v1889 = vunpack.c.l.b16 %v642
    %v1890 = vunpack.c.h.b16 %v642
    %v1891 = vunpack.c.l.b16 %v643
    %v1892 = vunpack.c.h.b16 %v643
    %v1893 = vunpack.c.l.b16 %v644
    %v1894 = vunpack.c.h.b16 %v644
    %v1895 = vunpack.c.l.b16 %v645
    %v1896 = vunpack.c.h.b16 %v645
    %v1897 = vunpack.c.l.b16 %v646
    %v1898 = vunpack.c.h.b16 %v646
    %v1899 = vunpack.c.l.b16 %v647
    %v1900 = vunpack.c.h.b16 %v647
    %v1901 = vunpack.c.l.b16 %v648
    %v1902 = vunpack.c.h.b16 %v648
    %v1903 = vunpack.c.l.b16 %v649
    %v1904 = vunpack.c.h.b16 %v649
    %v1905 = vunpack.c.l.b16 %v650
    %v1906 = vunpack.c.h.b16 %v650
    %v1907 = vunpack.c.l.b16 %v651
    %v1908 = vunpack.c.h.b16 %v651
    %v1909 = vunpack.c.l.b16 %v652
    %v1910 = vunpack.c.h.b16 %v652
    %v1911 = vunpack.c.l.b16 %v653
    %v1912 = vunpack.c.h.b16 %v653
    %v1913 = vunpack.c.l.b16 %v654
    %v1914 = vunpack.c.h.b16 %v654
    %v1915 = vunpack.c.l.b16 %v655
    %v1916 = vunpack.c.h.b16 %v655
    %v1917 = vunpack.c.l.b16 %v656
    %v1918 = vunpack.c.h.b16 %v656
    %v1919 = vunpack.c.l.b16 %v657
    %v1920 = vunpack.c.h.b16 %v657
    %v1921 = vunpack.c.l.b16 %v658
    %v1922 = vunpack.c.h.b16 %v658
    %v1923 = vunpack.c.l.b16 %v659
    %v1924 = vunpack.c.h.b16 %v659
    %v1925 = vunpack.c.l.b16 %v660
    %v1926 = vunpack.c.h.b16 %v660
    %v1927 = vunpack.c.l.b16 %v661
    %v1928 = vunpack.c.h.b16 %v661
    %v1929 = vunpack.c.l.b16 %v662
    %v1930 = vunpack.c.h.b16 %v662
    %v1931 = vunpack.c.l.b16 %v663
    %v1932 = vunpack.c.h.b16 %v663
    %v1933 = vunpack.c.l.b16 %v664
    %v1934 = vunpack.c.h.b16 %v664
    %v1935 = vunpack.c.l.b16 %v665
    %v1936 = vunpack.c.h.b16 %v665
    %v1937 = vunpack.c.l.b16 %v666
    %v1938 = vunpack.c.h.b16 %v666
    %v1939 = vunpack.c.l.b16 %v667
    %v1940 = vunpack.c.h.b16 %v667
    %v1941 = vunpack.c.l.b16 %v668
    %v1942 = vunpack.c.h.b16 %v668
    %v1943 = vunpack.c.l.b16 %v669
    %v1944 = vunpack.c.h.b16 %v669
    %v1945 = vunpack.c.l.b16 %v670
    %v1946 = vunpack.c.h.b16 %v670
    %v1947 = vunpack.c.l.b16 %v671
    %v1948 = vunpack.c.h.b16 %v671
    %v1949 = vunpack.c.l.b16 %v672
    %v1950 = vunpack.c.h.b16 %v672
    %v1951 = vunpack.c.l.b16 %v673
    %v1952 = vunpack.c.h.b16 %v673
    %v1953 = vunpack.c.l.b16 %v674
    %v1954 = vunpack.c.h.b16 %v674
    %v1955 = vunpack.c.l.b16 %v675
    %v1956 = vunpack.c.h.b16 %v675
    %v1957 = vunpack.c.l.b16 %v676
    %v1958 = vunpack.c.h.b16 %v676
    %v1959 = vunpack.c.l.b16 %v677
    %v1960 = vunpack.c.h.b16 %v677
    %v1961 = vunpack.c.l.b16 %v678
    %v1962 = vunpack.c.h.b16 %v678
    %v1963 = vunpack.c.l.b16 %v679
    %v1964 = vunpack.c.h.b16 %v679
    %v1965 = vunpack.c.l.b16 %v680
    %v1966 = vunpack.c.h.b16 %v680
    %v1967 = vunpack.c.l.b16 %v681
    %v1968 = vunpack.c.h.b16 %v681
    %v1969 = vunpack.c.l.b16 %v682
    %v1970 = vunpack.c.h.b16 %v682
    %v1971 = vunpack.c.l.b16 %v683
    %v1972 = vunpack.c.h.b16 %v683
    %v1973 = vunpack.c.l.b16 %v684
    %v1974 = vunpack.c.h.b16 %v684
    %v1975 = vunpack.c.l.b16 %v685
    %v1976 = vunpack.c.h.b16 %v685
    %v1977 = vunpack.c.l.b16 %v686
    %v1978 = vunpack.c.h.b16 %v686
    %v1979 = vunpack.c.l.b16 %v687
    %v1980 = vunpack.c.h.b16 %v687
    %v1981 = vunpack.c.l.b16 %v688
    %v1982 = vunpack.c.h.b16 %v688
    %v1983 = vunpack.c.l.b16 %v689
    %v1984 = vunpack.c.h.b16 %v689
    %v1985 = vunpack.c.l.b16 %v690
    %v1986 = vunpack.c.h.b16 %v690
    %v1987 = vunpack.c.l.b16 %v691
    %v1988 = vunpack.c.h.b16 %v691
    %v1989 = vunpack.c.l.b16 %v692
    %v1990 = vunpack.c.h.b16 %v692
    %v1991 = vunpack.c.l.b16 %v693
    %v1992 = vunpack.c.h.b16 %v693
    %v1993 = vunpack.c.l.b16 %v694
    %v1994 = vunpack.c.h.b16 %v694
    %v1995 = vunpack.c.l.b16 %v695
    %v1996 = vunpack.c.h.b16 %v695
    %v1997 = vunpack.c.l.b16 %v696
    %v1998 = vunpack.c.h.b16 %v696
    %v1999 = vunpack.c.l.b16 %v697
    %v2000 = vunpack.c.h.b16 %v697
    %v2001 = vunpack.c.l.b16 %v698
    %v2002 = vunpack.c.h.b16 %v698
    %v2003 = vunpack.c.l.b16 %v699
    %v2004 = vunpack.c.h.b16 %v699
    %v2005 = vunpack.c.l.b16 %v700
    %v2006 = vunpack.c.h.b16 %v700
    %v2007 = vunpack.c.l.b16 %v701
    %v2008 = vunpack.c.h.b16 %v701
    %v2009 = vunpack.c.l.b16 %v702
    %v2010 = vunpack.c.h.b16 %v702
    %v2011 = vunpack.c.l.b16 %v703
    %v2012 = vunpack.c.h.b16 %v703
    %v2013 = vunpack.c.l.b16 %v704
    %v2014 = vunpack.c.h.b16 %v704
    %v2015 = vunpack.c.l.b16 %v705
    %v2016 = vunpack.c.h.b16 %v705
    %v2017 = vunpack.c.l.b16 %v706
    %v2018 = vunpack.c.h.b16 %v706
    %v2019 = vunpack.c.l.b16 %v707
    %v2020 = vunpack.c.h.b16 %v707
    %v2021 = vunpack.c.l.b16 %v708
    %v2022 = vunpack.c.h.b16 %v708
    %v2023 = vunpack.c.l.b16 %v709
    %v2024 = vunpack.c.h.b16 %v709
    %v2025 = vunpack.c.l.b16 %v710
    %v2026 = vunpack.c.h.b16 %v710
    %v2027 = vunpack.c.l.b16 %v711
    %v2028 = vunpack.c.h.b16 %v711
    %v2029 = vunpack.c.l.b16 %v712
    %v2030 = vunpack.c.h.b16 %v712
    %v2031 = vunpack.c.l.b16 %v713
    %v2032 = vunpack.c.h.b16 %v713
    %v2033 = vunpack.c.l.b16 %v714
    %v2034 = vunpack.c.h.b16 %v714
    %v2035 = vunpack.c.l.b16 %v715
    %v2036 = vunpack.c.h.b16 %v715
    %v2037 = vunpack.c.l.b16 %v716
    %v2038 = vunpack.c.h.b16 %v716
    %v2039 = vunpack.c.l.b16 %v717
    %v2040 = vunpack.c.h.b16 %v717
    %v2041 = vunpack.c.l.b16 %v718
    %v2042 = vunpack.c.h.b16 %v718
    %v2043 = vunpack.c.l.b16 %v719
    %v2044 = vunpack.c.h.b16 %v719
    %v2045 = vunpack.c.l.b16 %v720
    %v2046 = vunpack.c.h.b16 %v720
    %v2047 = vunpack.c.l.b16 %v721
    %v2048 = vunpack.c.h.b16 %v721
    %v2049 = vunpack.c.l.b16 %v722
    %v2050 = vunpack.c.h.b16 %v722
    %v2051 = vunpack.c.l.b16 %v723
    %v2052 = vunpack.c.h.b16 %v723
    %v2053 = vunpack.c.l.b16 %v724
    %v2054 = vunpack.c.h.b16 %v724
    %v2055 = vunpack.c.l.b16 %v725
    %v2056 = vunpack.c.h.b16 %v725
    %v2057 = vunpack.c.l.b16 %v726
    %v2058 = vunpack.c.h.b16 %v726
    %v2059 = vunpack.c.l.b16 %v727
    %v2060 = vunpack.c.h.b16 %v727
    %v2061 = vunpack.c.l.b16 %v728
    %v2062 = vunpack.c.h.b16 %v728
    %v2063 = vunpack.c.l.b16 %v729
    %v2064 = vunpack.c.h.b16 %v729
    %v2065 = vunpack.c.l.b16 %v730
    %v2066 = vunpack.c.h.b16 %v730
    %v2067 = vunpack.c.l.b16 %v731
    %v2068 = vunpack.c.h.b16 %v731
    %v2069 = vunpack.c.l.b16 %v732
    %v2070 = vunpack.c.h.b16 %v732
    %v2071 = vunpack.c.l.b16 %v733
    %v2072 = vunpack.c.h.b16 %v733
    %v2073 = vunpack.c.l.b16 %v734
    %v2074 = vunpack.c.h.b16 %v734
    %v2075 = vunpack.c.l.b16 %v735
    %v2076 = vunpack.c.h.b16 %v735
    %v2077 = vunpack.c.l.b16 %v736
    %v2078 = vunpack.c.h.b16 %v736
    %v2079 = vunpack.c.l.b16 %v737
    %v2080 = vunpack.c.h.b16 %v737
    %v2081 = vunpack.c.l.b16 %v738
    %v2082 = vunpack.c.h.b16 %v738
    %v2083 = vunpack.c.l.b16 %v739
    %v2084 = vunpack.c.h.b16 %v739
    %v2085 = vunpack.c.l.b16 %v740
    %v2086 = vunpack.c.h.b16 %v740
    %v2087 = vunpack.c.l.b16 %v741
    %v2088 = vunpack.c.h.b16 %v741
    %v2089 = vunpack.c.l.b16 %v742
    %v2090 = vunpack.c.h.b16 %v742
    %v2091 = vunpack.c.l.b16 %v743
    %v2092 = vunpack.c.h.b16 %v743
    %v2093 = vunpack.c.l.b16 %v744
    %v2094 = vunpack.c.h.b16 %v744
    %v2095 = vunpack.c.l.b16 %v745
    %v2096 = vunpack.c.h.b16 %v745
    %v2097 = vunpack.c.l.b16 %v746
    %v2098 = vunpack.c.h.b16 %v746
    %v2099 = vunpack.c.l.b16 %v747
    %v2100 = vunpack.c.h.b16 %v747
    %v2101 = vunpack.c.l.b16 %v748
    %v2102 = vunpack.c.h.b16 %v748
    %v2103 = vunpack.c.l.b16 %v749
    %v2104 = vunpack.c.h.b16 %v749
    %v2105 = vunpack.c.l.b16 %v750
    %v2106 = vunpack.c.h.b16 %v750
    %v2107 = vunpack.c.l.b16 %v751
    %v2108 = vunpack.c.h.b16 %v751
    %v2109 = vunpack.c.l.b16 %v752
    %v2110 = vunpack.c.h.b16 %v752
    %v2111 = vunpack.c.l.b16 %v753
    %v2112 = vunpack.c.h.b16 %v753
    %v2113 = vunpack.c.l.b16 %v754
    %v2114 = vunpack.c.h.b16 %v754
    %v2115 = vunpack.c.l.b16 %v755
    %v2116 = vunpack.c.h.b16 %v755
    %v2117 = vunpack.c.l.b16 %v756
    %v2118 = vunpack.c.h.b16 %v756
    %v2119 = vunpack.c.l.b16 %v757
    %v2120 = vunpack.c.h.b16 %v757
    %v2121 = vunpack.c.l.b16 %v758
    %v2122 = vunpack.c.h.b16 %v758
    %v2123 = vunpack.c.l.b16 %v759
    %v2124 = vunpack.c.h.b16 %v759
    %v2125 = vunpack.c.l.b16 %v760
    %v2126 = vunpack.c.h.b16 %v760
    %v2127 = vunpack.c.l.b16 %v761
    %v2128 = vunpack.c.h.b16 %v761
    %v2129 = vunpack.c.l.b16 %v762
    %v2130 = vunpack.c.h.b16 %v762
    %v2131 = vunpack.c.l.b16 %v763
    %v2132 = vunpack.c.h.b16 %v763
    %v2133 = vunpack.c.l.b16 %v764
    %v2134 = vunpack.c.h.b16 %v764
    %v2135 = vunpack.c.l.b16 %v765
    %v2136 = vunpack.c.h.b16 %v765
    %v2137 = vunpack.c.l.b16 %v766
    %v2138 = vunpack.c.h.b16 %v766
    %v2139 = vunpack.c.l.b16 %v767
    %v2140 = vunpack.c.h.b16 %v767
    %v2141 = vunpack.c.l.b16 %v768
    %v2142 = vunpack.c.h.b16 %v768
    %v2143 = vunpack.c.l.b16 %v769
    %v2144 = vunpack.c.h.b16 %v769
    %v2145 = vunpack.c.l.b16 %v770
    %v2146 = vunpack.c.h.b16 %v770
    %v2147 = vunpack.c.l.b16 %v771
    %v2148 = vunpack.c.h.b16 %v771
    %v2149 = vunpack.c.l.b16 %v772
    %v2150 = vunpack.c.h.b16 %v772
    %v2151 = vunpack.c.l.b16 %v773
    %v2152 = vunpack.c.h.b16 %v773
    %v2153 = vunpack.c.l.b16 %v774
    %v2154 = vunpack.c.h.b16 %v774
    %v2155 = vunpack.c.l.b16 %v775
    %v2156 = vunpack.c.h.b16 %v775
    %v2157 = vunpack.c.l.b16 %v776
    %v2158 = vunpack.c.h.b16 %v776
    %v2159 = vunpack.c.l.b16 %v777
    %v2160 = vunpack.c.h.b16 %v777
    %v2161 = vunpack.c.l.b16 %v778
    %v2162 = vunpack.c.h.b16 %v778
    %v2163 = vunpack.c.l.b16 %v779
    %v2164 = vunpack.c.h.b16 %v779
    %v2165 = vunpack.c.l.b16 %v780
    %v2166 = vunpack.c.h.b16 %v780
    %v2167 = vunpack.c.l.b16 %v781
    %v2168 = vunpack.c.h.b16 %v781
    %v2169 = vunpack.c.l.b16 %v782
    %v2170 = vunpack.c.h.b16 %v782
    %v2171 = vunpack.c.l.b16 %v783
    %v2172 = vunpack.c.h.b16 %v783
    %v2173 = vunpack.c.l.b16 %v784
    %v2174 = vunpack.c.h.b16 %v784
    %v2175 = vunpack.c.l.b16 %v785
    %v2176 = vunpack.c.h.b16 %v785
    %v2177 = vunpack.c.l.b16 %v786
    %v2178 = vunpack.c.h.b16 %v786
    %v2179 = vunpack.c.l.b16 %v787
    %v2180 = vunpack.c.h.b16 %v787
    %v2181 = vunpack.c.l.b16 %v788
    %v2182 = vunpack.c.h.b16 %v788
    %v2183 = vunpack.c.l.b16 %v789
    %v2184 = vunpack.c.h.b16 %v789
    %v2185 = vunpack.c.l.b16 %v790
    %v2186 = vunpack.c.h.b16 %v790
    %v2187 = vunpack.c.l.b16 %v791
    %v2188 = vunpack.c.h.b16 %v791
    %v2189 = vunpack.c.l.b16 %v792
    %v2190 = vunpack.c.h.b16 %v792
    %v2191 = vunpack.c.l.b16 %v793
    %v2192 = vunpack.c.h.b16 %v793
    %v2193 = vunpack.c.l.b16 %v794
    %v2194 = vunpack.c.h.b16 %v794
    %v2195 = vunpack.c.l.b16 %v795
    %v2196 = vunpack.c.h.b16 %v795
    %v2197 = vunpack.c.l.b16 %v796
    %v2198 = vunpack.c.h.b16 %v796
    %v2199 = vunpack.c.l.b16 %v797
    %v2200 = vunpack.c.h.b16 %v797
    %v2201 = vunpack.c.l.b16 %v798
    %v2202 = vunpack.c.h.b16 %v798
    %v2203 = vunpack.c.l.b16 %v799
    %v2204 = vunpack.c.h.b16 %v799
    %v2205 = vunpack.c.l.b16 %v800
    %v2206 = vunpack.c.h.b16 %v800
    %v2207 = vunpack.c.l.b16 %v801
    %v2208 = vunpack.c.h.b16 %v801
    %v2209 = vunpack.c.l.b16 %v802
    %v2210 = vunpack.c.h.b16 %v802
    %v2211 = vunpack.c.l.b16 %v803
    %v2212 = vunpack.c.h.b16 %v803
    %v2213 = vunpack.c.l.b16 %v804
    %v2214 = vunpack.c.h.b16 %v804
    %v2215 = vunpack.c.l.b16 %v805
    %v2216 = vunpack.c.h.b16 %v805
    %v2217 = vunpack.c.l.b16 %v806
    %v2218 = vunpack.c.h.b16 %v806
    %v2219 = vunpack.c.l.b16 %v807
    %v2220 = vunpack.c.h.b16 %v807
    %v2221 = vunpack.c.l.b16 %v808
    %v2222 = vunpack.c.h.b16 %v808
    %v2223 = vunpack.c.l.b16 %v809
    %v2224 = vunpack.c.h.b16 %v809
    %v2225 = vunpack.c.l.b16 %v810
    %v2226 = vunpack.c.h.b16 %v810
    %v2227 = vunpack.c.l.b16 %v811
    %v2228 = vunpack.c.h.b16 %v811
    %v2229 = vunpack.c.l.b16 %v812
    %v2230 = vunpack.c.h.b16 %v812
    %v2231 = vunpack.c.l.b16 %v813
    %v2232 = vunpack.c.h.b16 %v813
    %v2233 = vunpack.c.l.b16 %v814
    %v2234 = vunpack.c.h.b16 %v814
    %v2235 = vunpack.c.l.b16 %v815
    %v2236 = vunpack.c.h.b16 %v815
    %v2237 = vunpack.c.l.b16 %v816
    %v2238 = vunpack.c.h.b16 %v816
    %v2239 = vunpack.c.l.b16 %v817
    %v2240 = vunpack.c.h.b16 %v817
    %v2241 = vunpack.c.l.b16 %v818
    %v2242 = vunpack.c.h.b16 %v818
    %v2243 = vunpack.c.l.b16 %v819
    %v2244 = vunpack.c.h.b16 %v819
    %v2245 = vunpack.c.l.b16 %v820
    %v2246 = vunpack.c.h.b16 %v820
    %v2247 = vunpack.c.l.b16 %v821
    %v2248 = vunpack.c.h.b16 %v821
    %v2249 = vunpack.c.l.b16 %v822
    %v2250 = vunpack.c.h.b16 %v822
    %v2251 = vunpack.c.l.b16 %v823
    %v2252 = vunpack.c.h.b16 %v823
    %v2253 = vunpack.c.l.b16 %v824
    %v2254 = vunpack.c.h.b16 %v824
    %v2255 = vunpack.c.l.b16 %v825
    %v2256 = vunpack.c.h.b16 %v825
    %v2257 = vunpack.c.l.b16 %v826
    %v2258 = vunpack.c.h.b16 %v826
    %v2259 = vunpack.c.l.b16 %v827
    %v2260 = vunpack.c.h.b16 %v827
    %v2261 = vunpack.c.l.b16 %v828
    %v2262 = vunpack.c.h.b16 %v828
    %v2263 = vunpack.c.l.b16 %v829
    %v2264 = vunpack.c.h.b16 %v829
    %v2265 = vunpack.c.l.b16 %v830
    %v2266 = vunpack.c.h.b16 %v830
    %v2267 = vunpack.c.l.b16 %v831
    %v2268 = vunpack.c.h.b16 %v831
    %v2269 = vunpack.c.l.b16 %v832
    %v2270 = vunpack.c.h.b16 %v832
    %v2271 = vunpack.c.l.b16 %v833
    %v2272 = vunpack.c.h.b16 %v833
    %v2273 = vunpack.c.l.b16 %v834
    %v2274 = vunpack.c.h.b16 %v834
    %v2275 = vunpack.c.l.b16 %v835
    %v2276 = vunpack.c.h.b16 %v835
    %v2277 = vunpack.c.l.b16 %v836
    %v2278 = vunpack.c.h.b16 %v836
    %v2279 = vunpack.c.l.b16 %v837
    %v2280 = vunpack.c.h.b16 %v837
    %v2281 = vunpack.c.l.b16 %v838
    %v2282 = vunpack.c.h.b16 %v838
    %v2283 = vunpack.c.l.b16 %v839
    %v2284 = vunpack.c.h.b16 %v839
    %v2285 = vunpack.c.l.b16 %v840
    %v2286 = vunpack.c.h.b16 %v840
    %v2287 = vunpack.c.l.b16 %v841
    %v2288 = vunpack.c.h.b16 %v841
    %v2289 = vunpack.c.l.b16 %v842
    %v2290 = vunpack.c.h.b16 %v842
    %v2291 = vunpack.c.l.b16 %v843
    %v2292 = vunpack.c.h.b16 %v843
    %v2293 = vunpack.c.l.b16 %v844
    %v2294 = vunpack.c.h.b16 %v844
    %v2295 = vunpack.c.l.b16 %v845
    %v2296 = vunpack.c.h.b16 %v845
    %v2297 = vunpack.c.l.b16 %v846
    %v2298 = vunpack.c.h.b16 %v846
    %v2299 = vunpack.c.l.b16 %v847
    %v2300 = vunpack.c.h.b16 %v847
    %v2301 = vunpack.c.l.b16 %v848
    %v2302 = vunpack.c.h.b16 %v848
    %v2303 = vunpack.c.l.b16 %v849
    %v2304 = vunpack.c.h.b16 %v849
    %v2305 = vunpack.c.l.b16 %v850
    %v2306 = vunpack.c.h.b16 %v850
    %v2307 = vunpack.c.l.b16 %v851
    %v2308 = vunpack.c.h.b16 %v851
    %v2309 = vunpack.c.l.b16 %v852
    %v2310 = vunpack.c.h.b16 %v852
    %v2311 = vunpack.c.l.b16 %v853
    %v2312 = vunpack.c.h.b16 %v853
    %v2313 = vunpack.c.l.b16 %v854
    %v2314 = vunpack.c.h.b16 %v854
    %v2315 = vunpack.c.l.b16 %v855
    %v2316 = vunpack.c.h.b16 %v855
    %v2317 = vunpack.c.l.b16 %v856
    %v2318 = vunpack.c.h.b16 %v856
    %v2319 = vunpack.c.l.b16 %v857
    %v2320 = vunpack.c.h.b16 %v857
    %v2321 = vunpack.c.l.b16 %v858
    %v2322 = vunpack.c.h.b16 %v858
    %v2323 = vunpack.c.l.b16 %v859
    %v2324 = vunpack.c.h.b16 %v859
    %v2325 = vunpack.c.l.b16 %v860
    %v2326 = vunpack.c.h.b16 %v860
    %v2327 = vunpack.c.l.b16 %v861
    %v2328 = vunpack.c.h.b16 %v861
    %v2329 = vunpack.c.l.b16 %v862
    %v2330 = vunpack.c.h.b16 %v862
    %v2331 = vunpack.c.l.b16 %v863
    %v2332 = vunpack.c.h.b16 %v863
    %v2333 = vunpack.c.l.b16 %v864
    %v2334 = vunpack.c.h.b16 %v864
    %v2335 = vunpack.c.l.b16 %v865
    %v2336 = vunpack.c.h.b16 %v865
    %v2337 = vunpack.c.l.b16 %v866
    %v2338 = vunpack.c.h.b16 %v866
    %v2339 = vunpack.c.l.b16 %v867
    %v2340 = vunpack.c.h.b16 %v867
    %v2341 = vunpack.c.l.b16 %v868
    %v2342 = vunpack.c.h.b16 %v868
    %v2343 = vunpack.c.l.b16 %v869
    %v2344 = vunpack.c.h.b16 %v869
    %v2345 = vunpack.c.l.b16 %v870
    %v2346 = vunpack.c.h.b16 %v870
    %v2347 = vunpack.c.l.b16 %v871
    %v2348 = vunpack.c.h.b16 %v871
    %v2349 = vunpack.c.l.b16 %v872
    %v2350 = vunpack.c.h.b16 %v872
    %v2351 = vunpack.c.l.b16 %v873
    %v2352 = vunpack.c.h.b16 %v873
    %v2353 = vunpack.c.l.b16 %v874
    %v2354 = vunpack.c.h.b16 %v874
    %v2355 = vunpack.c.l.b16 %v875
    %v2356 = vunpack.c.h.b16 %v875
    %v2357 = vunpack.c.l.b16 %v876
    %v2358 = vunpack.c.h.b16 %v876
    %v2359 = vunpack.c.l.b16 %v877
    %v2360 = vunpack.c.h.b16 %v877
    %v2361 = vunpack.c.l.b16 %v878
    %v2362 = vunpack.c.h.b16 %v878
    %v2363 = vunpack.c.l.b16 %v879
    %v2364 = vunpack.c.h.b16 %v879
    %v2365 = vunpack.c.l.b16 %v880
    %v2366 = vunpack.c.h.b16 %v880
    %v2367 = vunpack.c.l.b16 %v881
    %v2368 = vunpack.c.h.b16 %v881
    %v2369 = vunpack.c.l.b16 %v882
    %v2370 = vunpack.c.h.b16 %v882
    %v2371 = vunpack.c.l.b16 %v883
    %v2372 = vunpack.c.h.b16 %v883
    %v2373 = vunpack.c.l.b16 %v884
    %v2374 = vunpack.c.h.b16 %v884
    %v2375 = vunpack.c.l.b16 %v885
    %v2376 = vunpack.c.h.b16 %v885
    %v2377 = vunpack.c.l.b16 %v886
    %v2378 = vunpack.c.h.b16 %v886
    %v2379 = vunpack.c.l.b16 %v887
    %v2380 = vunpack.c.h.b16 %v887
    %v2381 = vunpack.c.l.b16 %v888
    %v2382 = vunpack.c.h.b16 %v888
    %v2383 = vunpack.c.l.b16 %v889
    %v2384 = vunpack.c.h.b16 %v889
    %v2385 = vunpack.c.l.b16 %v890
    %v2386 = vunpack.c.h.b16 %v890
    %v2387 = vunpack.c.l.b16 %v891
    %v2388 = vunpack.c.h.b16 %v891
    %v2389 = vunpack.c.l.b16 %v892
    %v2390 = vunpack.c.h.b16 %v892
    %v2391 = vunpack.c.l.b16 %v893
    %v2392 = vunpack.c.h.b16 %v893
    %v2393 = vunpack.c.l.b16 %v894
    %v2394 = vunpack.c.h.b16 %v894
    %v2395 = vunpack.c.l.b16 %v895
    %v2396 = vunpack.c.h.b16 %v895
    %v2397 = vunpack.c.l.b16 %v896
    %v2398 = vunpack.c.h.b16 %v896
    %v2399 = vunpack.c.l.b16 %v897
    %v2400 = vunpack.c.h.b16 %v897
    %v2401 = vunpack.c.l.b16 %v898
    %v2402 = vunpack.c.h.b16 %v898
    %v2403 = vunpack.c.l.b16 %v899
    %v2404 = vunpack.c.h.b16 %v899
    %v2405 = vunpack.c.l.b16 %v900
    %v2406 = vunpack.c.h.b16 %v900
    %v2407 = vunpack.c.l.b16 %v901
    %v2408 = vunpack.c.h.b16 %v901
    %v2409 = vunpack.c.l.b16 %v902
    %v2410 = vunpack.c.h.b16 %v902
    %v2411 = vunpack.c.l.b16 %v903
    %v2412 = vunpack.c.h.b16 %v903
    %v2413 = vunpack.c.l.b16 %v904
    %v2414 = vunpack.c.h.b16 %v904
    %v2415 = vunpack.c.l.b16 %v905
    %v2416 = vunpack.c.h.b16 %v905
    %v2417 = vunpack.c.l.b16 %v906
    %v2418 = vunpack.c.h.b16 %v906
    %v2419 = vunpack.c.l.b16 %v907
    %v2420 = vunpack.c.h.b16 %v907
    %v2421 = vunpack.c.l.b16 %v908
    %v2422 = vunpack.c.h.b16 %v908
    %v2423 = vunpack.c.l.b16 %v909
    %v2424 = vunpack.c.h.b16 %v909
    %v2425 = vunpack.c.l.b16 %v910
    %v2426 = vunpack.c.h.b16 %v910
    %v2427 = vunpack.c.l.b16 %v911
    %v2428 = vunpack.c.h.b16 %v911
    %v2429 = vunpack.c.l.b16 %v912
    %v2430 = vunpack.c.h.b16 %v912
    %v2431 = vunpack.c.l.b16 %v913
    %v2432 = vunpack.c.h.b16 %v913
    %v2433 = vunpack.c.l.b16 %v914
    %v2434 = vunpack.c.h.b16 %v914
    %v2435 = vunpack.c.l.b16 %v915
    %v2436 = vunpack.c.h.b16 %v915
    %v2437 = vunpack.c.l.b16 %v916
    %v2438 = vunpack.c.h.b16 %v916
    %v2439 = vunpack.c.l.b16 %v917
    %v2440 = vunpack.c.h.b16 %v917
    %v2441 = vunpack.c.l.b16 %v918
    %v2442 = vunpack.c.h.b16 %v918
    %v2443 = vunpack.c.l.b16 %v919
    %v2444 = vunpack.c.h.b16 %v919
    %v2445 = vunpack.c.l.b16 %v920
    %v2446 = vunpack.c.h.b16 %v920
    %v2447 = vunpack.c.l.b16 %v921
    %v2448 = vunpack.c.h.b16 %v921
    %v2449 = vunpack.c.l.b16 %v922
    %v2450 = vunpack.c.h.b16 %v922
    %v2451 = vunpack.c.l.b16 %v923
    %v2452 = vunpack.c.h.b16 %v923
    %v2453 = vunpack.c.l.b16 %v924
    %v2454 = vunpack.c.h.b16 %v924
    %v2455 = vunpack.c.l.b16 %v925
    %v2456 = vunpack.c.h.b16 %v925
    %v2457 = vunpack.c.l.b16 %v926
    %v2458 = vunpack.c.h.b16 %v926
    %v2459 = vunpack.c.l.b16 %v927
    %v2460 = vunpack.c.h.b16 %v927
    %v2461 = vunpack.c.l.b16 %v928
    %v2462 = vunpack.c.h.b16 %v928
    %v2463 = vunpack.c.l.b16 %v929
    %v2464 = vunpack.c.h.b16 %v929
    %v2465 = vunpack.c.l.b16 %v930
    %v2466 = vunpack.c.h.b16 %v930
    %v2467 = vunpack.c.l.b16 %v931
    %v2468 = vunpack.c.h.b16 %v931
    %v2469 = vunpack.c.l.b16 %v932
    %v2470 = vunpack.c.h.b16 %v932
    %v2471 = vunpack.c.l.b16 %v933
    %v2472 = vunpack.c.h.b16 %v933
    %v2473 = vunpack.c.l.b16 %v934
    %v2474 = vunpack.c.h.b16 %v934
    %v2475 = vunpack.c.l.b16 %v935
    %v2476 = vunpack.c.h.b16 %v935
    %v2477 = vunpack.c.l.b16 %v936
    %v2478 = vunpack.c.h.b16 %v936
    %v2479 = vunpack.c.l.b16 %v937
    %v2480 = vunpack.c.h.b16 %v937
    %v2481 = vunpack.c.l.b16 %v938
    %v2482 = vunpack.c.h.b16 %v938
    %v2483 = vunpack.c.l.b16 %v939
    %v2484 = vunpack.c.h.b16 %v939
    %v2485 = vunpack.c.l.b16 %v940
    %v2486 = vunpack.c.h.b16 %v940
    %v2487 = vunpack.c.l.b16 %v941
    %v2488 = vunpack.c.h.b16 %v941
    %v2489 = vunpack.c.l.b16 %v942
    %v2490 = vunpack.c.h.b16 %v942
    %v2491 = vunpack.c.l.b16 %v943
    %v2492 = vunpack.c.h.b16 %v943
    %v2493 = vunpack.c.l.b16 %v944
    %v2494 = vunpack.c.h.b16 %v944
    %v2495 = vunpack.c.l.b16 %v945
    %v2496 = vunpack.c.h.b16 %v945
    %v2497 = vunpack.c.l.b16 %v946
    %v2498 = vunpack.c.h.b16 %v946
    %v2499 = vunpack.c.l.b16 %v947
    %v2500 = vunpack.c.h.b16 %v947
    %v2501 = vunpack.c.l.b16 %v948
    %v2502 = vunpack.c.h.b16 %v948
    %v2503 = vunpack.c.l.b16 %v949
    %v2504 = vunpack.c.h.b16 %v949
    %v2505 = vunpack.c.l.b16 %v950
    %v2506 = vunpack.c.h.b16 %v950
    %v2507 = vunpack.c.l.b16 %v951
    %v2508 = vunpack.c.h.b16 %v951
    %v2509 = vunpack.c.l.b16 %v952
    %v2510 = vunpack.c.h.b16 %v952
    %v2511 = vunpack.c.l.b16 %v953
    %v2512 = vunpack.c.h.b16 %v953
    %v2513 = vunpack.c.l.b16 %v954
    %v2514 = vunpack.c.h.b16 %v954
    %v2515 = vunpack.c.l.b16 %v955
    %v2516 = vunpack.c.h.b16 %v955
    %v2517 = vunpack.c.l.b16 %v956
    %v2518 = vunpack.c.h.b16 %v956
    %v2519 = vunpack.c.l.b16 %v957
    %v2520 = vunpack.c.h.b16 %v957
    %v2521 = vunpack.c.l.b16 %v958
    %v2522 = vunpack.c.h.b16 %v958
    %v2523 = vunpack.c.l.b16 %v959
    %v2524 = vunpack.c.h.b16 %v959
    %v2525 = vunpack.c.l.b16 %v960
    %v2526 = vunpack.c.h.b16 %v960
    %v2527 = vunpack.c.l.b16 %v961
    %v2528 = vunpack.c.h.b16 %v961
    %v2529 = vunpack.c.l.b16 %v962
    %v2530 = vunpack.c.h.b16 %v962
    %v2531 = vunpack.c.l.b16 %v963
    %v2532 = vunpack.c.h.b16 %v963
    %v2533 = vunpack.c.l.b16 %v964
    %v2534 = vunpack.c.h.b16 %v964
    %v2535 = vunpack.c.l.b16 %v965
    %v2536 = vunpack.c.h.b16 %v965
    %v2537 = vunpack.c.l.b16 %v966
    %v2538 = vunpack.c.h.b16 %v966
    %v2539 = vunpack.c.l.b16 %v967
    %v2540 = vunpack.c.h.b16 %v967
    %v2541 = vunpack.c.l.b16 %v968
    %v2542 = vunpack.c.h.b16 %v968
    %v2543 = vunpack.c.l.b16 %v969
    %v2544 = vunpack.c.h.b16 %v969
    %v2545 = vunpack.c.l.b16 %v970
    %v2546 = vunpack.c.h.b16 %v970
    %v2547 = vunpack.c.l.b16 %v971
    %v2548 = vunpack.c.h.b16 %v971
    %v2549 = vunpack.c.l.b16 %v972
    %v2550 = vunpack.c.h.b16 %v972
    %v2551 = vpack.c.b16 %v1535, %v1527
    %v2552 = vpack.c.b16 %v1536, %v1528
    %v2553 = vpack.c.b16 %v1537, %v1529
    %v2554 = vpack.c.b16 %v1538, %v1530
    %v2555 = vpack.c.b16 %v1539, %v1531
    %v2556 = vpack.c.b16 %v1540, %v1532
    %v2557 = vpack.c.b16 %v1541, %v1533
    %v2558 = vpack.c.b16 %v1542, %v1534
    %v2559 = vpack.c.b16 %v1551, %v1543
    %v2560 = vpack.c.b16 %v1552, %v1544
    %v2561 = vpack.c.b16 %v1553, %v1545
    %v2562 = vpack.c.b16 %v1554, %v1546
    %v2563 = vpack.c.b16 %v1555, %v1547
    %v2564 = vpack.c.b16 %v1556, %v1548
    %v2565 = vpack.c.b16 %v1557, %v1549
    %v2566 = vpack.c.b16 %v1558, %v1550
    %v2567 = vpack.c.b16 %v1567, %v1559
    %v2568 = vpack.c.b16 %v1568, %v1560
    %v2569 = vpack.c.b16 %v1569, %v1561
    %v2570 = vpack.c.b16 %v1570, %v1562
    %v2571 = vpack.c.b16 %v1571, %v1563
    %v2572 = vpack.c.b16 %v1572, %v1564
    %v2573 = vpack.c.b16 %v1573, %v1565
    %v2574 = vpack.c.b16 %v1574, %v1566
    %v2575 = vpack.c.b16 %v1583, %v1575
    %v2576 = vpack.c.b16 %v1584, %v1576
    %v2577 = vpack.c.b16 %v1585, %v1577
    %v2578 = vpack.c.b16 %v1586, %v1578
    %v2579 = vpack.c.b16 %v1587, %v1579
    %v2580 = vpack.c.b16 %v1588, %v1580
    %v2581 = vpack.c.b16 %v1589, %v1581
    %v2582 = vpack.c.b16 %v1590, %v1582
    %v2583 = vpack.c.b16 %v1599, %v1591
    %v2584 = vpack.c.b16 %v1600, %v1592
    %v2585 = vpack.c.b16 %v1601, %v1593
    %v2586 = vpack.c.b16 %v1602, %v1594
    %v2587 = vpack.c.b16 %v1603, %v1595
    %v2588 = vpack.c.b16 %v1604, %v1596
    %v2589 = vpack.c.b16 %v1605, %v1597
    %v2590 = vpack.c.b16 %v1606, %v1598
    %v2591 = vpack.c.b16 %v1615, %v1607
    %v2592 = vpack.c.b16 %v1616, %v1608
    %v2593 = vpack.c.b16 %v1617, %v1609
    %v2594 = vpack.c.b16 %v1618, %v1610
    %v2595 = vpack.c.b16 %v1619, %v1611
    %v2596 = vpack.c.b16 %v1620, %v1612
    %v2597 = vpack.c.b16 %v1621, %v1613
    %v2598 = vpack.c.b16 %v1622, %v1614
    %v2599 = vpack.c.b16 %v1631, %v1623
    %v2600 = vpack.c.b16 %v1632, %v1624
    %v2601 = vpack.c.b16 %v1633, %v1625
    %v2602 = vpack.c.b16 %v1634, %v1626
    %v2603 = vpack.c.b16 %v1635, %v1627
    %v2604 = vpack.c.b16 %v1636, %v1628
    %v2605 = vpack.c.b16 %v1637, %v1629
    %v2606 = vpack.c.b16 %v1638, %v1630
    %v2607 = vpack.c.b16 %v1647, %v1639
    %v2608 = vpack.c.b16 %v1648, %v1640
    %v2609 = vpack.c.b16 %v1649, %v1641
    %v2610 = vpack.c.b16 %v1650, %v1642
    %v2611 = vpack.c.b16 %v1651, %v1643
    %v2612 = vpack.c.b16 %v1652, %v1644
    %v2613 = vpack.c.b16 %v1653, %v1645
    %v2614 = vpack.c.b16 %v1654, %v1646
    %v2615 = vpack.c.b16 %v1663, %v1655
    %v2616 = vpack.c.b16 %v1664, %v1656
    %v2617 = vpack.c.b16 %v1665, %v1657
    %v2618 = vpack.c.b16 %v1666, %v1658
    %v2619 = vpack.c.b16 %v1667, %v1659
    %v2620 = vpack.c.b16 %v1668, %v1660
    %v2621 = vpack.c.b16 %v1669, %v1661
    %v2622 = vpack.c.b16 %v1670, %v1662
    %v2623 = vpack.c.b16 %v1679, %v1671
    %v2624 = vpack.c.b16 %v1680, %v1672
    %v2625 = vpack.c.b16 %v1681, %v1673
    %v2626 = vpack.c.b16 %v1682, %v1674
    %v2627 = vpack.c.b16 %v1683, %v1675
    %v2628 = vpack.c.b16 %v1684, %v1676
    %v2629 = vpack.c.b16 %v1685, %v1677
    %v2630 = vpack.c.b16 %v1686, %v1678
    %v2631 = vpack.c.b16 %v1695, %v1687
    %v2632 = vpack.c.b16 %v1696, %v1688
    %v2633 = vpack.c.b16 %v1697, %v1689
    %v2634 = vpack.c.b16 %v1698, %v1690
    %v2635 = vpack.c.b16 %v1699, %v1691
    %v2636 = vpack.c.b16 %v1700, %v1692
    %v2637 = vpack.c.b16 %v1701, %v1693
    %v2638 = vpack.c.b16 %v1702, %v1694
    %v2639 = vpack.c.b16 %v1711, %v1703
    %v2640 = vpack.c.b16 %v1712, %v1704
    %v2641 = vpack.c.b16 %v1713, %v1705
    %v2642 = vpack.c.b16 %v1714, %v1706
    %v2643 = vpack.c.b16 %v1715, %v1707
    %v2644 = vpack.c.b16 %v1716, %v1708
    %v2645 = vpack.c.b16 %v1717, %v1709
    %v2646 = vpack.c.b16 %v1718, %v1710
    %v2647 = vpack.c.b16 %v1727, %v1719
    %v2648 = vpack.c.b16 %v1728, %v1720
    %v2649 = vpack.c.b16 %v1729, %v1721
    %v2650 = vpack.c.b16 %v1730, %v1722
    %v2651 = vpack.c.b16 %v1731, %v1723
    %v2652 = vpack.c.b16 %v1732, %v1724
    %v2653 = vpack.c.b16 %v1733, %v1725
    %v2654 = vpack.c.b16 %v1734, %v1726
    %v2655 = vpack.c.b16 %v1743, %v1735
    %v2656 = vpack.c.b16 %v1744, %v1736
    %v2657 = vpack.c.b16 %v1745, %v1737
    %v2658 = vpack.c.b16 %v1746, %v1738
    %v2659 = vpack.c.b16 %v1747, %v1739
    %v2660 = vpack.c.b16 %v1748, %v1740
    %v2661 = vpack.c.b16 %v1749, %v1741
    %v2662 = vpack.c.b16 %v1750, %v1742
    %v2663 = vpack.c.b16 %v1759, %v1751
    %v2664 = vpack.c.b16 %v1760, %v1752
    %v2665 = vpack.c.b16 %v1761, %v1753
    %v2666 = vpack.c.b16 %v1762, %v1754
    %v2667 = vpack.c.b16 %v1763, %v1755
    %v2668 = vpack.c.b16 %v1764, %v1756
    %v2669 = vpack.c.b16 %v1765, %v1757
    %v2670 = vpack.c.b16 %v1766, %v1758
    %v2671 = vpack.c.b16 %v1775, %v1767
    %v2672 = vpack.c.b16 %v1776, %v1768
    %v2673 = vpack.c.b16 %v1777, %v1769
    %v2674 = vpack.c.b16 %v1778, %v1770
    %v2675 = vpack.c.b16 %v1779, %v1771
    %v2676 = vpack.c.b16 %v1780, %v1772
    %v2677 = vpack.c.b16 %v1781, %v1773
    %v2678 = vpack.c.b16 %v1782, %v1774
    %v2679 = vpack.c.b16 %v1791, %v1783
    %v2680 = vpack.c.b16 %v1792, %v1784
    %v2681 = vpack.c.b16 %v1793, %v1785
    %v2682 = vpack.c.b16 %v1794, %v1786
    %v2683 = vpack.c.b16 %v1795, %v1787
    %v2684 = vpack.c.b16 %v1796, %v1788
    %v2685 = vpack.c.b16 %v1797, %v1789
    %v2686 = vpack.c.b16 %v1798, %v1790
    %v2687 = vpack.c.b16 %v1807, %v1799
    %v2688 = vpack.c.b16 %v1808, %v1800
    %v2689 = vpack.c.b16 %v1809, %v1801
    %v2690 = vpack.c.b16 %v1810, %v1802
    %v2691 = vpack.c.b16 %v1811, %v1803
    %v2692 = vpack.c.b16 %v1812, %v1804
    %v2693 = vpack.c.b16 %v1813, %v1805
    %v2694 = vpack.c.b16 %v1814, %v1806
    %v2695 = vpack.c.b16 %v1823, %v1815
    %v2696 = vpack.c.b16 %v1824, %v1816
    %v2697 = vpack.c.b16 %v1825, %v1817
    %v2698 = vpack.c.b16 %v1826, %v1818
    %v2699 = vpack.c.b16 %v1827, %v1819
    %v2700 = vpack.c.b16 %v1828, %v1820
    %v2701 = vpack.c.b16 %v1829, %v1821
    %v2702 = vpack.c.b16 %v1830, %v1822
    %v2703 = vpack.c.b16 %v1839, %v1831
    %v2704 = vpack.c.b16 %v1840, %v1832
    %v2705 = vpack.c.b16 %v1841, %v1833
    %v2706 = vpack.c.b16 %v1842, %v1834
    %v2707 = vpack.c.b16 %v1843, %v1835
    %v2708 = vpack.c.b16 %v1844, %v1836
    %v2709 = vpack.c.b16 %v1845, %v1837
    %v2710 = vpack.c.b16 %v1846, %v1838
    %v2711 = vpack.c.b16 %v1855, %v1847
    %v2712 = vpack.c.b16 %v1856, %v1848
    %v2713 = vpack.c.b16 %v1857, %v1849
    %v2714 = vpack.c.b16 %v1858, %v1850
    %v2715 = vpack.c.b16 %v1859, %v1851
    %v2716 = vpack.c.b16 %v1860, %v1852
    %v2717 = vpack.c.b16 %v1861, %v1853
    %v2718 = vpack.c.b16 %v1862, %v1854
    %v2719 = vpack.c.b16 %v1871, %v1863
    %v2720 = vpack.c.b16 %v1872, %v1864
    %v2721 = vpack.c.b16 %v1873, %v1865
    %v2722 = vpack.c.b16 %v1874, %v1866
    %v2723 = vpack.c.b16 %v1875, %v1867
    %v2724 = vpack.c.b16 %v1876, %v1868
    %v2725 = vpack.c.b16 %v1877, %v1869
    %v2726 = vpack.c.b16 %v1878, %v1870
    %v2727 = vpack.c.b16 %v1887, %v1879
    %v2728 = vpack.c.b16 %v1888, %v1880
    %v2729 = vpack.c.b16 %v1889, %v1881
    %v2730 = vpack.c.b16 %v1890, %v1882
    %v2731 = vpack.c.b16 %v1891, %v1883
    %v2732 = vpack.c.b16 %v1892, %v1884
    %v2733 = vpack.c.b16 %v1893, %v1885
    %v2734 = vpack.c.b16 %v1894, %v1886
    %v2735 = vpack.c.b16 %v1903, %v1895
    %v2736 = vpack.c.b16 %v1904, %v1896
    %v2737 = vpack.c.b16 %v1905, %v1897
    %v2738 = vpack.c.b16 %v1906, %v1898
    %v2739 = vpack.c.b16 %v1907, %v1899
    %v2740 = vpack.c.b16 %v1908, %v1900
    %v2741 = vpack.c.b16 %v1909, %v1901
    %v2742 = vpack.c.b16 %v1910, %v1902
    %v2743 = vpack.c.b16 %v1919, %v1911
    %v2744 = vpack.c.b16 %v1920, %v1912
    %v2745 = vpack.c.b16 %v1921, %v1913
    %v2746 = vpack.c.b16 %v1922, %v1914
    %v2747 = vpack.c.b16 %v1923, %v1915
    %v2748 = vpack.c.b16 %v1924, %v1916
    %v2749 = vpack.c.b16 %v1925, %v1917
    %v2750 = vpack.c.b16 %v1926, %v1918
    %v2751 = vpack.c.b16 %v1935, %v1927
    %v2752 = vpack.c.b16 %v1936, %v1928
    %v2753 = vpack.c.b16 %v1937, %v1929
    %v2754 = vpack.c.b16 %v1938, %v1930
    %v2755 = vpack.c.b16 %v1939, %v1931
    %v2756 = vpack.c.b16 %v1940, %v1932
    %v2757 = vpack.c.b16 %v1941, %v1933
    %v2758 = vpack.c.b16 %v1942, %v1934
    %v2759 = vpack.c.b16 %v1951, %v1943
    %v2760 = vpack.c.b16 %v1952, %v1944
    %v2761 = vpack.c.b16 %v1953, %v1945
    %v2762 = vpack.c.b16 %v1954, %v1946
    %v2763 = vpack.c.b16 %v1955, %v1947
    %v2764 = vpack.c.b16 %v1956, %v1948
    %v2765 = vpack.c.b16 %v1957, %v1949
    %v2766 = vpack.c.b16 %v1958, %v1950
    %v2767 = vpack.c.b16 %v1967, %v1959
    %v2768 = vpack.c.b16 %v1968, %v1960
    %v2769 = vpack.c.b16 %v1969, %v1961
    %v2770 = vpack.c.b16 %v1970, %v1962
    %v2771 = vpack.c.b16 %v1971, %v1963
    %v2772 = vpack.c.b16 %v1972, %v1964
    %v2773 = vpack.c.b16 %v1973, %v1965
    %v2774 = vpack.c.b16 %v1974, %v1966
    %v2775 = vpack.c.b16 %v1983, %v1975
    %v2776 = vpack.c.b16 %v1984, %v1976
    %v2777 = vpack.c.b16 %v1985, %v1977
    %v2778 = vpack.c.b16 %v1986, %v1978
    %v2779 = vpack.c.b16 %v1987, %v1979
    %v2780 = vpack.c.b16 %v1988, %v1980
    %v2781 = vpack.c.b16 %v1989, %v1981
    %v2782 = vpack.c.b16 %v1990, %v1982
    %v2783 = vpack.c.b16 %v1999, %v1991
    %v2784 = vpack.c.b16 %v2000, %v1992
    %v2785 = vpack.c.b16 %v2001, %v1993
    %v2786 = vpack.c.b16 %v2002, %v1994
    %v2787 = vpack.c.b16 %v2003, %v1995
    %v2788 = vpack.c.b16 %v2004, %v1996
    %v2789 = vpack.c.b16 %v2005, %v1997
    %v2790 = vpack.c.b16 %v2006, %v1998
    %v2791 = vpack.c.b16 %v2015, %v2007
    %v2792 = vpack.c.b16 %v2016, %v2008
    %v2793 = vpack.c.b16 %v2017, %v2009
    %v2794 = vpack.c.b16 %v2018, %v2010
    %v2795 = vpack.c.b16 %v2019, %v2011
    %v2796 = vpack.c.b16 %v2020, %v2012
    %v2797 = vpack.c.b16 %v2021, %v2013
    %v2798 = vpack.c.b16 %v2022, %v2014
    %v2799 = vpack.c.b16 %v2031, %v2023
    %v2800 = vpack.c.b16 %v2032, %v2024
    %v2801 = vpack.c.b16 %v2033, %v2025
    %v2802 = vpack.c.b16 %v2034, %v2026
    %v2803 = vpack.c.b16 %v2035, %v2027
    %v2804 = vpack.c.b16 %v2036, %v2028
    %v2805 = vpack.c.b16 %v2037, %v2029
    %v2806 = vpack.c.b16 %v2038, %v2030
    %v2807 = vpack.c.b16 %v2047, %v2039
    %v2808 = vpack.c.b16 %v2048, %v2040
    %v2809 = vpack.c.b16 %v2049, %v2041
    %v2810 = vpack.c.b16 %v2050, %v2042
    %v2811 = vpack.c.b16 %v2051, %v2043
    %v2812 = vpack.c.b16 %v2052, %v2044
    %v2813 = vpack.c.b16 %v2053, %v2045
    %v2814 = vpack.c.b16 %v2054, %v2046
    %v2815 = vpack.c.b16 %v2063, %v2055
    %v2816 = vpack.c.b16 %v2064, %v2056
    %v2817 = vpack.c.b16 %v2065, %v2057
    %v2818 = vpack.c.b16 %v2066, %v2058
    %v2819 = vpack.c.b16 %v2067, %v2059
    %v2820 = vpack.c.b16 %v2068, %v2060
    %v2821 = vpack.c.b16 %v2069, %v2061
    %v2822 = vpack.c.b16 %v2070, %v2062
    %v2823 = vpack.c.b16 %v2079, %v2071
    %v2824 = vpack.c.b16 %v2080, %v2072
    %v2825 = vpack.c.b16 %v2081, %v2073
    %v2826 = vpack.c.b16 %v2082, %v2074
    %v2827 = vpack.c.b16 %v2083, %v2075
    %v2828 = vpack.c.b16 %v2084, %v2076
    %v2829 = vpack.c.b16 %v2085, %v2077
    %v2830 = vpack.c.b16 %v2086, %v2078
    %v2831 = vpack.c.b16 %v2095, %v2087
    %v2832 = vpack.c.b16 %v2096, %v2088
    %v2833 = vpack.c.b16 %v2097, %v2089
    %v2834 = vpack.c.b16 %v2098, %v2090
    %v2835 = vpack.c.b16 %v2099, %v2091
    %v2836 = vpack.c.b16 %v2100, %v2092
    %v2837 = vpack.c.b16 %v2101, %v2093
    %v2838 = vpack.c.b16 %v2102, %v2094
    %v2839 = vpack.c.b16 %v2111, %v2103
    %v2840 = vpack.c.b16 %v2112, %v2104
    %v2841 = vpack.c.b16 %v2113, %v2105
    %v2842 = vpack.c.b16 %v2114, %v2106
    %v2843 = vpack.c.b16 %v2115, %v2107
    %v2844 = vpack.c.b16 %v2116, %v2108
    %v2845 = vpack.c.b16 %v2117, %v2109
    %v2846 = vpack.c.b16 %v2118, %v2110
    %v2847 = vpack.c.b16 %v2127, %v2119
    %v2848 = vpack.c.b16 %v2128, %v2120
    %v2849 = vpack.c.b16 %v2129, %v2121
    %v2850 = vpack.c.b16 %v2130, %v2122
    %v2851 = vpack.c.b16 %v2131, %v2123
    %v2852 = vpack.c.b16 %v2132, %v2124
    %v2853 = vpack.c.b16 %v2133, %v2125
    %v2854 = vpack.c.b16 %v2134, %v2126
    %v2855 = vpack.c.b16 %v2143, %v2135
    %v2856 = vpack.c.b16 %v2144, %v2136
    %v2857 = vpack.c.b16 %v2145, %v2137
    %v2858 = vpack.c.b16 %v2146, %v2138
    %v2859 = vpack.c.b16 %v2147, %v2139
    %v2860 = vpack.c.b16 %v2148, %v2140
    %v2861 = vpack.c.b16 %v2149, %v2141
    %v2862 = vpack.c.b16 %v2150, %v2142
    %v2863 = vpack.c.b16 %v2159, %v2151
    %v2864 = vpack.c.b16 %v2160, %v2152
    %v2865 = vpack.c.b16 %v2161, %v2153
    %v2866 = vpack.c.b16 %v2162, %v2154
    %v2867 = vpack.c.b16 %v2163, %v2155
    %v2868 = vpack.c.b16 %v2164, %v2156
    %v2869 = vpack.c.b16 %v2165, %v2157
    %v2870 = vpack.c.b16 %v2166, %v2158
    %v2871 = vpack.c.b16 %v2175, %v2167
    %v2872 = vpack.c.b16 %v2176, %v2168
    %v2873 = vpack.c.b16 %v2177, %v2169
    %v2874 = vpack.c.b16 %v2178, %v2170
    %v2875 = vpack.c.b16 %v2179, %v2171
    %v2876 = vpack.c.b16 %v2180, %v2172
    %v2877 = vpack.c.b16 %v2181, %v2173
    %v2878 = vpack.c.b16 %v2182, %v2174
    %v2879 = vpack.c.b16 %v2191, %v2183
    %v2880 = vpack.c.b16 %v2192, %v2184
    %v2881 = vpack.c.b16 %v2193, %v2185
    %v2882 = vpack.c.b16 %v2194, %v2186
    %v2883 = vpack.c.b16 %v2195, %v2187
    %v2884 = vpack.c.b16 %v2196, %v2188
    %v2885 = vpack.c.b16 %v2197, %v2189
    %v2886 = vpack.c.b16 %v2198, %v2190
    %v2887 = vpack.c.b16 %v2207, %v2199
    %v2888 = vpack.c.b16 %v2208, %v2200
    %v2889 = vpack.c.b16 %v2209, %v2201
    %v2890 = vpack.c.b16 %v2210, %v2202
    %v2891 = vpack.c.b16 %v2211, %v2203
    %v2892 = vpack.c.b16 %v2212, %v2204
    %v2893 = vpack.c.b16 %v2213, %v2205
    %v2894 = vpack.c.b16 %v2214, %v2206
    %v2895 = vpack.c.b16 %v2223, %v2215
    %v2896 = vpack.c.b16 %v2224, %v2216
    %v2897 = vpack.c.b16 %v2225, %v2217
    %v2898 = vpack.c.b16 %v2226, %v2218
    %v2899 = vpack.c.b16 %v2227, %v2219
    %v2900 = vpack.c.b16 %v2228, %v2220
    %v2901 = vpack.c.b16 %v2229, %v2221
    %v2902 = vpack.c.b16 %v2230, %v2222
    %v2903 = vpack.c.b16 %v2239, %v2231
    %v2904 = vpack.c.b16 %v2240, %v2232
    %v2905 = vpack.c.b16 %v2241, %v2233
    %v2906 = vpack.c.b16 %v2242, %v2234
    %v2907 = vpack.c.b16 %v2243, %v2235
    %v2908 = vpack.c.b16 %v2244, %v2236
    %v2909 = vpack.c.b16 %v2245, %v2237
    %v2910 = vpack.c.b16 %v2246, %v2238
    %v2911 = vpack.c.b16 %v2255, %v2247
    %v2912 = vpack.c.b16 %v2256, %v2248
    %v2913 = vpack.c.b16 %v2257, %v2249
    %v2914 = vpack.c.b16 %v2258, %v2250
    %v2915 = vpack.c.b16 %v2259, %v2251
    %v2916 = vpack.c.b16 %v2260, %v2252
    %v2917 = vpack.c.b16 %v2261, %v2253
    %v2918 = vpack.c.b16 %v2262, %v2254
    %v2919 = vpack.c.b16 %v2271, %v2263
    %v2920 = vpack.c.b16 %v2272, %v2264
    %v2921 = vpack.c.b16 %v2273, %v2265
    %v2922 = vpack.c.b16 %v2274, %v2266
    %v2923 = vpack.c.b16 %v2275, %v2267
    %v2924 = vpack.c.b16 %v2276, %v2268
    %v2925 = vpack.c.b16 %v2277, %v2269
    %v2926 = vpack.c.b16 %v2278, %v2270
    %v2927 = vpack.c.b16 %v2287, %v2279
    %v2928 = vpack.c.b16 %v2288, %v2280
    %v2929 = vpack.c.b16 %v2289, %v2281
    %v2930 = vpack.c.b16 %v2290, %v2282
    %v2931 = vpack.c.b16 %v2291, %v2283
    %v2932 = vpack.c.b16 %v2292, %v2284
    %v2933 = vpack.c.b16 %v2293, %v2285
    %v2934 = vpack.c.b16 %v2294, %v2286
    %v2935 = vpack.c.b16 %v2303, %v2295
    %v2936 = vpack.c.b16 %v2304, %v2296
    %v2937 = vpack.c.b16 %v2305, %v2297
    %v2938 = vpack.c.b16 %v2306, %v2298
    %v2939 = vpack.c.b16 %v2307, %v2299
    %v2940 = vpack.c.b16 %v2308, %v2300
    %v2941 = vpack.c.b16 %v2309, %v2301
    %v2942 = vpack.c.b16 %v2310, %v2302
    %v2943 = vpack.c.b16 %v2319, %v2311
    %v2944 = vpack.c.b16 %v2320, %v2312
    %v2945 = vpack.c.b16 %v2321, %v2313
    %v2946 = vpack.c.b16 %v2322, %v2314
    %v2947 = vpack.c.b16 %v2323, %v2315
    %v2948 = vpack.c.b16 %v2324, %v2316
    %v2949 = vpack.c.b16 %v2325, %v2317
    %v2950 = vpack.c.b16 %v2326, %v2318
    %v2951 = vpack.c.b16 %v2335, %v2327
    %v2952 = vpack.c.b16 %v2336, %v2328
    %v2953 = vpack.c.b16 %v2337, %v2329
    %v2954 = vpack.c.b16 %v2338, %v2330
    %v2955 = vpack.c.b16 %v2339, %v2331
    %v2956 = vpack.c.b16 %v2340, %v2332
    %v2957 = vpack.c.b16 %v2341, %v2333
    %v2958 = vpack.c.b16 %v2342, %v2334
    %v2959 = vpack.c.b16 %v2351, %v2343
    %v2960 = vpack.c.b16 %v2352, %v2344
    %v2961 = vpack.c.b16 %v2353, %v2345
    %v2962 = vpack.c.b16 %v2354, %v2346
    %v2963 = vpack.c.b16 %v2355, %v2347
    %v2964 = vpack.c.b16 %v2356, %v2348
    %v2965 = vpack.c.b16 %v2357, %v2349
    %v2966 = vpack.c.b16 %v2358, %v2350
    %v2967 = vpack.c.b16 %v2367, %v2359
    %v2968 = vpack.c.b16 %v2368, %v2360
    %v2969 = vpack.c.b16 %v2369, %v2361
    %v2970 = vpack.c.b16 %v2370, %v2362
    %v2971 = vpack.c.b16 %v2371, %v2363
    %v2972 = vpack.c.b16 %v2372, %v2364
    %v2973 = vpack.c.b16 %v2373, %v2365
    %v2974 = vpack.c.b16 %v2374, %v2366
    %v2975 = vpack.c.b16 %v2383, %v2375
    %v2976 = vpack.c.b16 %v2384, %v2376
    %v2977 = vpack.c.b16 %v2385, %v2377
    %v2978 = vpack.c.b16 %v2386, %v2378
    %v2979 = vpack.c.b16 %v2387, %v2379
    %v2980 = vpack.c.b16 %v2388, %v2380
    %v2981 = vpack.c.b16 %v2389, %v2381
    %v2982 = vpack.c.b16 %v2390, %v2382
    %v2983 = vpack.c.b16 %v2399, %v2391
    %v2984 = vpack.c.b16 %v2400, %v2392
    %v2985 = vpack.c.b16 %v2401, %v2393
    %v2986 = vpack.c.b16 %v2402, %v2394
    %v2987 = vpack.c.b16 %v2403, %v2395
    %v2988 = vpack.c.b16 %v2404, %v2396
    %v2989 = vpack.c.b16 %v2405, %v2397
    %v2990 = vpack.c.b16 %v2406, %v2398
    %v2991 = vpack.c.b16 %v2415, %v2407
    %v2992 = vpack.c.b16 %v2416, %v2408
    %v2993 = vpack.c.b16 %v2417, %v2409
    %v2994 = vpack.c.b16 %v2418, %v2410
    %v2995 = vpack.c.b16 %v2419, %v2411
    %v2996 = vpack.c.b16 %v2420, %v2412
    %v2997 = vpack.c.b16 %v2421, %v2413
    %v2998 = vpack.c.b16 %v2422, %v2414
    %v2999 = vpack.c.b16 %v2431, %v2423
    %v3000 = vpack.c.b16 %v2432, %v2424
    %v3001 = vpack.c.b16 %v2433, %v2425
    %v3002 = vpack.c.b16 %v2434, %v2426
    %v3003 = vpack.c.b16 %v2435, %v2427
    %v3004 = vpack.c.b16 %v2436, %v2428
    %v3005 = vpack.c.b16 %v2437, %v2429
    %v3006 = vpack.c.b16 %v2438, %v2430
    %v3007 = vpack.c.b16 %v2447, %v2439
    %v3008 = vpack.c.b16 %v2448, %v2440
    %v3009 = vpack.c.b16 %v2449, %v2441
    %v3010 = vpack.c.b16 %v2450, %v2442
    %v3011 = vpack.c.b16 %v2451, %v2443
    %v3012 = vpack.c.b16 %v2452, %v2444
    %v3013 = vpack.c.b16 %v2453, %v2445
    %v3014 = vpack.c.b16 %v2454, %v2446
    %v3015 = vpack.c.b16 %v2463, %v2455
    %v3016 = vpack.c.b16 %v2464, %v2456
    %v3017 = vpack.c.b16 %v2465, %v2457
    %v3018 = vpack.c.b16 %v2466, %v2458
    %v3019 = vpack.c.b16 %v2467, %v2459
    %v3020 = vpack.c.b16 %v2468, %v2460
    %v3021 = vpack.c.b16 %v2469, %v2461
    %v3022 = vpack.c.b16 %v2470, %v2462
    %v3023 = vpack.c.b16 %v2479, %v2471
    %v3024 = vpack.c.b16 %v2480, %v2472
    %v3025 = vpack.c.b16 %v2481, %v2473
    %v3026 = vpack.c.b16 %v2482, %v2474
    %v3027 = vpack.c.b16 %v2483, %v2475
    %v3028 = vpack.c.b16 %v2484, %v2476
    %v3029 = vpack.c.b16 %v2485, %v2477
    %v3030 = vpack.c.b16 %v2486, %v2478
    %v3031 = vpack.c.b16 %v2495, %v2487
    %v3032 = vpack.c.b16 %v2496, %v2488
    %v3033 = vpack.c.b16 %v2497, %v2489
    %v3034 = vpack.c.b16 %v2498, %v2490
    %v3035 = vpack.c.b16 %v2499, %v2491
    %v3036 = vpack.c.b16 %v2500, %v2492
    %v3037 = vpack.c.b16 %v2501, %v2493
    %v3038 = vpack.c.b16 %v2502, %v2494
    %v3039 = vpack.c.b16 %v2511, %v2503
    %v3040 = vpack.c.b16 %v2512, %v2504
    %v3041 = vpack.c.b16 %v2513, %v2505
    %v3042 = vpack.c.b16 %v2514, %v2506
    %v3043 = vpack.c.b16 %v2515, %v2507
    %v3044 = vpack.c.b16 %v2516, %v2508
    %v3045 = vpack.c.b16 %v2517, %v2509
    %v3046 = vpack.c.b16 %v2518, %v2510
    %v3047 = vpack.c.b16 %v2527, %v2519
    %v3048 = vpack.c.b16 %v2528, %v2520
    %v3049 = vpack.c.b16 %v2529, %v2521
    %v3050 = vpack.c.b16 %v2530, %v2522
    %v3051 = vpack.c.b16 %v2531, %v2523
    %v3052 = vpack.c.b16 %v2532, %v2524
    %v3053 = vpack.c.b16 %v2533, %v2525
    %v3054 = vpack.c.b16 %v2534, %v2526
    %v3055 = vpack.c.b16 %v2543, %v2535
    %v3056 = vpack.c.b16 %v2544, %v2536
    %v3057 = vpack.c.b16 %v2545, %v2537
    %v3058 = vpack.c.b16 %v2546, %v2538
    %v3059 = vpack.c.b16 %v2547, %v2539
    %v3060 = vpack.c.b16 %v2548, %v2540
    %v3061 = vpack.c.b16 %v2549, %v2541
    %v3062 = vpack.c.b16 %v2550, %v2542
    %3575 = vmatprep.subr.bf16.mxu0 %v2608
    %3576 = vmatpush1.bf16.msra.mxu0 %v2607
    %3577 = vmatprep.subr.bf16.mxu0 %v2600
    %3578 = vmatpush1.bf16.msra.mxu0 %v2599
    %3579 = vmatprep.subr.bf16.mxu0 %v2592
    %3580 = vmatpush1.bf16.msra.mxu0 %v2591
    %3581 = vmatprep.subr.bf16.mxu0 %v2584
    %3582 = vmatpush1.bf16.msra.mxu0 %v2583
    %3583 = vmatprep.subr.bf16.mxu0 %v2576
    %3584 = vmatpush1.bf16.msra.mxu0 %v2575
    %3585 = vmatprep.subr.bf16.mxu0 %v2568
    %3586 = vmatpush1.bf16.msra.mxu0 %v2567
    %3587 = vmatprep.subr.bf16.mxu0 %v2560
    %3588 = vmatpush1.bf16.msra.mxu0 %v2559
    %3589 = vmatprep.subr.bf16.mxu0 %v2552
    %3590 = vmatpush1.bf16.msra.mxu0 %v2551
    %3591 = vmatprep.subr.bf16.mxu0 %v2672
    %3592 = vmatpush2.bf16.msra.mxu0 %v2671
    %3593 = vmatprep.subr.bf16.mxu0 %v2664
    %3594 = vmatpush2.bf16.msra.mxu0 %v2663
    %3595 = vmatprep.subr.bf16.mxu0 %v2656
    %3596 = vmatpush2.bf16.msra.mxu0 %v2655
    %3597 = vmatprep.subr.bf16.mxu0 %v2648
    %3598 = vmatpush2.bf16.msra.mxu0 %v2647
    %3599 = vmatprep.subr.bf16.mxu0 %v2640
    %3600 = vmatpush2.bf16.msra.mxu0 %v2639
    %3601 = vmatprep.subr.bf16.mxu0 %v2632
    %3602 = vmatpush2.bf16.msra.mxu0 %v2631
    %3603 = vmatprep.subr.bf16.mxu0 %v2624
    %3604 = vmatpush2.bf16.msra.mxu0 %v2623
    %3605 = vmatprep.subr.bf16.mxu0 %v2616
    %3606 = vmatpush2.bf16.msra.mxu0 %v2615
    %3607 = vmatprep.mubr.bf16.mxu0 %v454
    %3608 = vmatmul.mubr.bf16.gmra.mxu0 %v453
    %v3609 = vpop.f32.mrf.mxu0
    %v3610 = vadd.f32 %v978, %v3609
    %v3611 = vpop.f32.mrf.mxu0
    %v3612 = vadd.f32 %v982, %v3611
    %v3613 = vpop.f32.mrf.mxu0
    %v3614 = vpop.f32.mrf.mxu0
    %3615 = vdwg.mxu0
    %3616 = vmatprep.subr.bf16.mxu0 %v2736
    %3617 = vmatpush1.bf16.msra.mxu0 %v2735
    %3618 = vmatprep.subr.bf16.mxu0 %v2728
    %3619 = vmatpush1.bf16.msra.mxu0 %v2727
    %3620 = vmatprep.subr.bf16.mxu0 %v2720
    %3621 = vmatpush1.bf16.msra.mxu0 %v2719
    %3622 = vmatprep.subr.bf16.mxu0 %v2712
    %3623 = vmatpush1.bf16.msra.mxu0 %v2711
    %3624 = vmatprep.subr.bf16.mxu0 %v2704
    %3625 = vmatpush1.bf16.msra.mxu0 %v2703
    %3626 = vmatprep.subr.bf16.mxu0 %v2696
    %3627 = vmatpush1.bf16.msra.mxu0 %v2695
    %3628 = vmatprep.subr.bf16.mxu0 %v2688
    %3629 = vmatpush1.bf16.msra.mxu0 %v2687
    %3630 = vmatprep.subr.bf16.mxu0 %v2680
    %3631 = vmatpush1.bf16.msra.mxu0 %v2679
    %3632 = vmatprep.subr.bf16.mxu0 %v2800
    %3633 = vmatpush2.bf16.msra.mxu0 %v2799
    %3634 = vmatprep.subr.bf16.mxu0 %v2792
    %3635 = vmatpush2.bf16.msra.mxu0 %v2791
    %3636 = vmatprep.subr.bf16.mxu0 %v2784
    %3637 = vmatpush2.bf16.msra.mxu0 %v2783
    %3638 = vmatprep.subr.bf16.mxu0 %v2776
    %3639 = vmatpush2.bf16.msra.mxu0 %v2775
    %3640 = vmatprep.subr.bf16.mxu0 %v2768
    %3641 = vmatpush2.bf16.msra.mxu0 %v2767
    %3642 = vmatprep.subr.bf16.mxu0 %v2760
    %3643 = vmatpush2.bf16.msra.mxu0 %v2759
    %3644 = vmatprep.subr.bf16.mxu0 %v2752
    %3645 = vmatpush2.bf16.msra.mxu0 %v2751
    %3646 = vmatprep.subr.bf16.mxu0 %v2744
    %3647 = vmatpush2.bf16.msra.mxu0 %v2743
    %3648 = vmatprep.mubr.bf16.mxu0 %v456
    %3649 = vmatmul.mubr.bf16.gmra.mxu0 %v455
    %v3650 = vpop.f32.mrf.mxu0
    %v3651 = vadd.f32 %v3610, %v3650
    %v3652 = vpop.f32.mrf.mxu0
    %v3653 = vadd.f32 %v3612, %v3652
    %v3654 = vpop.f32.mrf.mxu0
    %v3655 = vpop.f32.mrf.mxu0
    %3656 = vdwg.mxu0
    %3657 = vmatprep.subr.bf16.mxu0 %v2864
    %3658 = vmatpush1.bf16.msra.mxu0 %v2863
    %3659 = vmatprep.subr.bf16.mxu0 %v2856
    %3660 = vmatpush1.bf16.msra.mxu0 %v2855
    %3661 = vmatprep.subr.bf16.mxu0 %v2848
    %3662 = vmatpush1.bf16.msra.mxu0 %v2847
    %3663 = vmatprep.subr.bf16.mxu0 %v2840
    %3664 = vmatpush1.bf16.msra.mxu0 %v2839
    %3665 = vmatprep.subr.bf16.mxu0 %v2832
    %3666 = vmatpush1.bf16.msra.mxu0 %v2831
    %3667 = vmatprep.subr.bf16.mxu0 %v2824
    %3668 = vmatpush1.bf16.msra.mxu0 %v2823
    %3669 = vmatprep.subr.bf16.mxu0 %v2816
    %3670 = vmatpush1.bf16.msra.mxu0 %v2815
    %3671 = vmatprep.subr.bf16.mxu0 %v2808
    %3672 = vmatpush1.bf16.msra.mxu0 %v2807
    %3673 = vmatprep.subr.bf16.mxu0 %v2928
    %3674 = vmatpush2.bf16.msra.mxu0 %v2927
    %3675 = vmatprep.subr.bf16.mxu0 %v2920
    %3676 = vmatpush2.bf16.msra.mxu0 %v2919
    %3677 = vmatprep.subr.bf16.mxu0 %v2912
    %3678 = vmatpush2.bf16.msra.mxu0 %v2911
    %3679 = vmatprep.subr.bf16.mxu0 %v2904
    %3680 = vmatpush2.bf16.msra.mxu0 %v2903
    %3681 = vmatprep.subr.bf16.mxu0 %v2896
    %3682 = vmatpush2.bf16.msra.mxu0 %v2895
    %3683 = vmatprep.subr.bf16.mxu0 %v2888
    %3684 = vmatpush2.bf16.msra.mxu0 %v2887
    %3685 = vmatprep.subr.bf16.mxu0 %v2880
    %3686 = vmatpush2.bf16.msra.mxu0 %v2879
    %3687 = vmatprep.subr.bf16.mxu0 %v2872
    %3688 = vmatpush2.bf16.msra.mxu0 %v2871
    %3689 = vmatprep.mubr.bf16.mxu0 %v458
    %3690 = vmatmul.mubr.bf16.gmra.mxu0 %v457
    %v3691 = vpop.f32.mrf.mxu0
    %v3692 = vadd.f32 %v3651, %v3691
    %v3693 = vpop.f32.mrf.mxu0
    %v3694 = vadd.f32 %v3653, %v3693
    %v3695 = vpop.f32.mrf.mxu0
    %v3696 = vpop.f32.mrf.mxu0
    %3697 = vdwg.mxu0
    %3698 = vmatprep.subr.bf16.mxu0 %v2992
    %3699 = vmatpush1.bf16.msra.mxu0 %v2991
    %3700 = vmatprep.subr.bf16.mxu0 %v2984
    %3701 = vmatpush1.bf16.msra.mxu0 %v2983
    %3702 = vmatprep.subr.bf16.mxu0 %v2976
    %3703 = vmatpush1.bf16.msra.mxu0 %v2975
    %3704 = vmatprep.subr.bf16.mxu0 %v2968
    %3705 = vmatpush1.bf16.msra.mxu0 %v2967
    %3706 = vmatprep.subr.bf16.mxu0 %v2960
    %3707 = vmatpush1.bf16.msra.mxu0 %v2959
    %3708 = vmatprep.subr.bf16.mxu0 %v2952
    %3709 = vmatpush1.bf16.msra.mxu0 %v2951
    %3710 = vmatprep.subr.bf16.mxu0 %v2944
    %3711 = vmatpush1.bf16.msra.mxu0 %v2943
    %3712 = vmatprep.subr.bf16.mxu0 %v2936
    %3713 = vmatpush1.bf16.msra.mxu0 %v2935
    %3714 = vmatprep.subr.bf16.mxu0 %v3056
    %3715 = vmatpush2.bf16.msra.mxu0 %v3055
    %3716 = vmatprep.subr.bf16.mxu0 %v3048
    %3717 = vmatpush2.bf16.msra.mxu0 %v3047
    %3718 = vmatprep.subr.bf16.mxu0 %v3040
    %3719 = vmatpush2.bf16.msra.mxu0 %v3039
    %3720 = vmatprep.subr.bf16.mxu0 %v3032
    %3721 = vmatpush2.bf16.msra.mxu0 %v3031
    %3722 = vmatprep.subr.bf16.mxu0 %v3024
    %3723 = vmatpush2.bf16.msra.mxu0 %v3023
    %3724 = vmatprep.subr.bf16.mxu0 %v3016
    %3725 = vmatpush2.bf16.msra.mxu0 %v3015
    %3726 = vmatprep.subr.bf16.mxu0 %v3008
    %3727 = vmatpush2.bf16.msra.mxu0 %v3007
    %3728 = vmatprep.subr.bf16.mxu0 %v3000
    %3729 = vmatpush2.bf16.msra.mxu0 %v2999
    %3730 = vmatprep.mubr.bf16.mxu0 %v460
    %3731 = vmatmul.mubr.bf16.gmra.mxu0 %v459
    %v3732 = vpop.f32.mrf.mxu0
    %v3733 = vadd.f32 %v3692, %v3732
    %v3734 = vpop.f32.mrf.mxu0
    %v3735 = vadd.f32 %v3694, %v3734
    %v3736 = vpop.f32.mrf.mxu0
    %v3737 = vpop.f32.mrf.mxu0
    %3738 = vdwg.mxu0
    %3739 = vmatprep.subr.bf16.mxu0 %v2610
    %3740 = vmatpush1.bf16.msra.mxu0 %v2609
    %3741 = vmatprep.subr.bf16.mxu0 %v2602
    %3742 = vmatpush1.bf16.msra.mxu0 %v2601
    %3743 = vmatprep.subr.bf16.mxu0 %v2594
    %3744 = vmatpush1.bf16.msra.mxu0 %v2593
    %3745 = vmatprep.subr.bf16.mxu0 %v2586
    %3746 = vmatpush1.bf16.msra.mxu0 %v2585
    %3747 = vmatprep.subr.bf16.mxu0 %v2578
    %3748 = vmatpush1.bf16.msra.mxu0 %v2577
    %3749 = vmatprep.subr.bf16.mxu0 %v2570
    %3750 = vmatpush1.bf16.msra.mxu0 %v2569
    %3751 = vmatprep.subr.bf16.mxu0 %v2562
    %3752 = vmatpush1.bf16.msra.mxu0 %v2561
    %3753 = vmatprep.subr.bf16.mxu0 %v2554
    %3754 = vmatpush1.bf16.msra.mxu0 %v2553
    %3755 = vmatprep.subr.bf16.mxu0 %v2674
    %3756 = vmatpush2.bf16.msra.mxu0 %v2673
    %3757 = vmatprep.subr.bf16.mxu0 %v2666
    %3758 = vmatpush2.bf16.msra.mxu0 %v2665
    %3759 = vmatprep.subr.bf16.mxu0 %v2658
    %3760 = vmatpush2.bf16.msra.mxu0 %v2657
    %3761 = vmatprep.subr.bf16.mxu0 %v2650
    %3762 = vmatpush2.bf16.msra.mxu0 %v2649
    %3763 = vmatprep.subr.bf16.mxu0 %v2642
    %3764 = vmatpush2.bf16.msra.mxu0 %v2641
    %3765 = vmatprep.subr.bf16.mxu0 %v2634
    %3766 = vmatpush2.bf16.msra.mxu0 %v2633
    %3767 = vmatprep.subr.bf16.mxu0 %v2626
    %3768 = vmatpush2.bf16.msra.mxu0 %v2625
    %3769 = vmatprep.subr.bf16.mxu0 %v2618
    %3770 = vmatpush2.bf16.msra.mxu0 %v2617
    %3771 = vmatprep.mubr.bf16.mxu0 %v454
    %3772 = vmatmul.mubr.bf16.gmra.mxu0 %v453
    %v3773 = vpop.f32.mrf.mxu0
    %v3774 = vadd.f32 %v986, %v3773
    %v3775 = vpop.f32.mrf.mxu0
    %v3776 = vadd.f32 %v990, %v3775
    %v3777 = vpop.f32.mrf.mxu0
    %v3778 = vpop.f32.mrf.mxu0
    %3779 = vdwg.mxu0
    %3780 = vmatprep.subr.bf16.mxu0 %v2738
    %3781 = vmatpush1.bf16.msra.mxu0 %v2737
    %3782 = vmatprep.subr.bf16.mxu0 %v2730
    %3783 = vmatpush1.bf16.msra.mxu0 %v2729
    %3784 = vmatprep.subr.bf16.mxu0 %v2722
    %3785 = vmatpush1.bf16.msra.mxu0 %v2721
    %3786 = vmatprep.subr.bf16.mxu0 %v2714
    %3787 = vmatpush1.bf16.msra.mxu0 %v2713
    %3788 = vmatprep.subr.bf16.mxu0 %v2706
    %3789 = vmatpush1.bf16.msra.mxu0 %v2705
    %3790 = vmatprep.subr.bf16.mxu0 %v2698
    %3791 = vmatpush1.bf16.msra.mxu0 %v2697
    %3792 = vmatprep.subr.bf16.mxu0 %v2690
    %3793 = vmatpush1.bf16.msra.mxu0 %v2689
    %3794 = vmatprep.subr.bf16.mxu0 %v2682
    %3795 = vmatpush1.bf16.msra.mxu0 %v2681
    %3796 = vmatprep.subr.bf16.mxu0 %v2802
    %3797 = vmatpush2.bf16.msra.mxu0 %v2801
    %3798 = vmatprep.subr.bf16.mxu0 %v2794
    %3799 = vmatpush2.bf16.msra.mxu0 %v2793
    %3800 = vmatprep.subr.bf16.mxu0 %v2786
    %3801 = vmatpush2.bf16.msra.mxu0 %v2785
    %3802 = vmatprep.subr.bf16.mxu0 %v2778
    %3803 = vmatpush2.bf16.msra.mxu0 %v2777
    %3804 = vmatprep.subr.bf16.mxu0 %v2770
    %3805 = vmatpush2.bf16.msra.mxu0 %v2769
    %3806 = vmatprep.subr.bf16.mxu0 %v2762
    %3807 = vmatpush2.bf16.msra.mxu0 %v2761
    %3808 = vmatprep.subr.bf16.mxu0 %v2754
    %3809 = vmatpush2.bf16.msra.mxu0 %v2753
    %3810 = vmatprep.subr.bf16.mxu0 %v2746
    %3811 = vmatpush2.bf16.msra.mxu0 %v2745
    %3812 = vmatprep.mubr.bf16.mxu0 %v456
    %3813 = vmatmul.mubr.bf16.gmra.mxu0 %v455
    %v3814 = vpop.f32.mrf.mxu0
    %v3815 = vadd.f32 %v3774, %v3814
    %v3816 = vpop.f32.mrf.mxu0
    %v3817 = vadd.f32 %v3776, %v3816
    %v3818 = vpop.f32.mrf.mxu0
    %v3819 = vpop.f32.mrf.mxu0
    %3820 = vdwg.mxu0
    %3821 = vmatprep.subr.bf16.mxu0 %v2866
    %3822 = vmatpush1.bf16.msra.mxu0 %v2865
    %3823 = vmatprep.subr.bf16.mxu0 %v2858
    %3824 = vmatpush1.bf16.msra.mxu0 %v2857
    %3825 = vmatprep.subr.bf16.mxu0 %v2850
    %3826 = vmatpush1.bf16.msra.mxu0 %v2849
    %3827 = vmatprep.subr.bf16.mxu0 %v2842
    %3828 = vmatpush1.bf16.msra.mxu0 %v2841
    %3829 = vmatprep.subr.bf16.mxu0 %v2834
    %3830 = vmatpush1.bf16.msra.mxu0 %v2833
    %3831 = vmatprep.subr.bf16.mxu0 %v2826
    %3832 = vmatpush1.bf16.msra.mxu0 %v2825
    %3833 = vmatprep.subr.bf16.mxu0 %v2818
    %3834 = vmatpush1.bf16.msra.mxu0 %v2817
    %3835 = vmatprep.subr.bf16.mxu0 %v2810
    %3836 = vmatpush1.bf16.msra.mxu0 %v2809
    %3837 = vmatprep.subr.bf16.mxu0 %v2930
    %3838 = vmatpush2.bf16.msra.mxu0 %v2929
    %3839 = vmatprep.subr.bf16.mxu0 %v2922
    %3840 = vmatpush2.bf16.msra.mxu0 %v2921
    %3841 = vmatprep.subr.bf16.mxu0 %v2914
    %3842 = vmatpush2.bf16.msra.mxu0 %v2913
    %3843 = vmatprep.subr.bf16.mxu0 %v2906
    %3844 = vmatpush2.bf16.msra.mxu0 %v2905
    %3845 = vmatprep.subr.bf16.mxu0 %v2898
    %3846 = vmatpush2.bf16.msra.mxu0 %v2897
    %3847 = vmatprep.subr.bf16.mxu0 %v2890
    %3848 = vmatpush2.bf16.msra.mxu0 %v2889
    %3849 = vmatprep.subr.bf16.mxu0 %v2882
    %3850 = vmatpush2.bf16.msra.mxu0 %v2881
    %3851 = vmatprep.subr.bf16.mxu0 %v2874
    %3852 = vmatpush2.bf16.msra.mxu0 %v2873
    %3853 = vmatprep.mubr.bf16.mxu0 %v458
    %3854 = vmatmul.mubr.bf16.gmra.mxu0 %v457
    %v3855 = vpop.f32.mrf.mxu0
    %v3856 = vadd.f32 %v3815, %v3855
    %v3857 = vpop.f32.mrf.mxu0
    %v3858 = vadd.f32 %v3817, %v3857
    %v3859 = vpop.f32.mrf.mxu0
    %v3860 = vpop.f32.mrf.mxu0
    %3861 = vdwg.mxu0
    %3862 = vmatprep.subr.bf16.mxu0 %v2994
    %3863 = vmatpush1.bf16.msra.mxu0 %v2993
    %3864 = vmatprep.subr.bf16.mxu0 %v2986
    %3865 = vmatpush1.bf16.msra.mxu0 %v2985
    %3866 = vmatprep.subr.bf16.mxu0 %v2978
    %3867 = vmatpush1.bf16.msra.mxu0 %v2977
    %3868 = vmatprep.subr.bf16.mxu0 %v2970
    %3869 = vmatpush1.bf16.msra.mxu0 %v2969
    %3870 = vmatprep.subr.bf16.mxu0 %v2962
    %3871 = vmatpush1.bf16.msra.mxu0 %v2961
    %3872 = vmatprep.subr.bf16.mxu0 %v2954
    %3873 = vmatpush1.bf16.msra.mxu0 %v2953
    %3874 = vmatprep.subr.bf16.mxu0 %v2946
    %3875 = vmatpush1.bf16.msra.mxu0 %v2945
    %3876 = vmatprep.subr.bf16.mxu0 %v2938
    %3877 = vmatpush1.bf16.msra.mxu0 %v2937
    %3878 = vmatprep.subr.bf16.mxu0 %v3058
    %3879 = vmatpush2.bf16.msra.mxu0 %v3057
    %3880 = vmatprep.subr.bf16.mxu0 %v3050
    %3881 = vmatpush2.bf16.msra.mxu0 %v3049
    %3882 = vmatprep.subr.bf16.mxu0 %v3042
    %3883 = vmatpush2.bf16.msra.mxu0 %v3041
    %3884 = vmatprep.subr.bf16.mxu0 %v3034
    %3885 = vmatpush2.bf16.msra.mxu0 %v3033
    %3886 = vmatprep.subr.bf16.mxu0 %v3026
    %3887 = vmatpush2.bf16.msra.mxu0 %v3025
    %3888 = vmatprep.subr.bf16.mxu0 %v3018
    %3889 = vmatpush2.bf16.msra.mxu0 %v3017
    %3890 = vmatprep.subr.bf16.mxu0 %v3010
    %3891 = vmatpush2.bf16.msra.mxu0 %v3009
    %3892 = vmatprep.subr.bf16.mxu0 %v3002
    %3893 = vmatpush2.bf16.msra.mxu0 %v3001
    %3894 = vmatprep.mubr.bf16.mxu0 %v460
    %3895 = vmatmul.mubr.bf16.gmra.mxu0 %v459
    %v3896 = vpop.f32.mrf.mxu0
    %v3897 = vadd.f32 %v3856, %v3896
    %v3898 = vpop.f32.mrf.mxu0
    %v3899 = vadd.f32 %v3858, %v3898
    %v3900 = vpop.f32.mrf.mxu0
    %v3901 = vpop.f32.mrf.mxu0
    %3902 = vdwg.mxu0
    %3903 = vmatprep.subr.bf16.mxu0 %v2612
    %3904 = vmatpush1.bf16.msra.mxu0 %v2611
    %3905 = vmatprep.subr.bf16.mxu0 %v2604
    %3906 = vmatpush1.bf16.msra.mxu0 %v2603
    %3907 = vmatprep.subr.bf16.mxu0 %v2596
    %3908 = vmatpush1.bf16.msra.mxu0 %v2595
    %3909 = vmatprep.subr.bf16.mxu0 %v2588
    %3910 = vmatpush1.bf16.msra.mxu0 %v2587
    %3911 = vmatprep.subr.bf16.mxu0 %v2580
    %3912 = vmatpush1.bf16.msra.mxu0 %v2579
    %3913 = vmatprep.subr.bf16.mxu0 %v2572
    %3914 = vmatpush1.bf16.msra.mxu0 %v2571
    %3915 = vmatprep.subr.bf16.mxu0 %v2564
    %3916 = vmatpush1.bf16.msra.mxu0 %v2563
    %3917 = vmatprep.subr.bf16.mxu0 %v2556
    %3918 = vmatpush1.bf16.msra.mxu0 %v2555
    %3919 = vmatprep.subr.bf16.mxu0 %v2676
    %3920 = vmatpush2.bf16.msra.mxu0 %v2675
    %3921 = vmatprep.subr.bf16.mxu0 %v2668
    %3922 = vmatpush2.bf16.msra.mxu0 %v2667
    %3923 = vmatprep.subr.bf16.mxu0 %v2660
    %3924 = vmatpush2.bf16.msra.mxu0 %v2659
    %3925 = vmatprep.subr.bf16.mxu0 %v2652
    %3926 = vmatpush2.bf16.msra.mxu0 %v2651
    %3927 = vmatprep.subr.bf16.mxu0 %v2644
    %3928 = vmatpush2.bf16.msra.mxu0 %v2643
    %3929 = vmatprep.subr.bf16.mxu0 %v2636
    %3930 = vmatpush2.bf16.msra.mxu0 %v2635
    %3931 = vmatprep.subr.bf16.mxu0 %v2628
    %3932 = vmatpush2.bf16.msra.mxu0 %v2627
    %3933 = vmatprep.subr.bf16.mxu0 %v2620
    %3934 = vmatpush2.bf16.msra.mxu0 %v2619
    %3935 = vmatprep.mubr.bf16.mxu0 %v454
    %3936 = vmatmul.mubr.bf16.gmra.mxu0 %v453
    %v3937 = vpop.f32.mrf.mxu0
    %v3938 = vadd.f32 %v994, %v3937
    %v3939 = vpop.f32.mrf.mxu0
    %v3940 = vadd.f32 %v998, %v3939
    %v3941 = vpop.f32.mrf.mxu0
    %v3942 = vpop.f32.mrf.mxu0
    %3943 = vdwg.mxu0
    %3944 = vmatprep.subr.bf16.mxu0 %v2740
    %3945 = vmatpush1.bf16.msra.mxu0 %v2739
    %3946 = vmatprep.subr.bf16.mxu0 %v2732
    %3947 = vmatpush1.bf16.msra.mxu0 %v2731
    %3948 = vmatprep.subr.bf16.mxu0 %v2724
    %3949 = vmatpush1.bf16.msra.mxu0 %v2723
    %3950 = vmatprep.subr.bf16.mxu0 %v2716
    %3951 = vmatpush1.bf16.msra.mxu0 %v2715
    %3952 = vmatprep.subr.bf16.mxu0 %v2708
    %3953 = vmatpush1.bf16.msra.mxu0 %v2707
    %3954 = vmatprep.subr.bf16.mxu0 %v2700
    %3955 = vmatpush1.bf16.msra.mxu0 %v2699
    %3956 = vmatprep.subr.bf16.mxu0 %v2692
    %3957 = vmatpush1.bf16.msra.mxu0 %v2691
    %3958 = vmatprep.subr.bf16.mxu0 %v2684
    %3959 = vmatpush1.bf16.msra.mxu0 %v2683
    %3960 = vmatprep.subr.bf16.mxu0 %v2804
    %3961 = vmatpush2.bf16.msra.mxu0 %v2803
    %3962 = vmatprep.subr.bf16.mxu0 %v2796
    %3963 = vmatpush2.bf16.msra.mxu0 %v2795
    %3964 = vmatprep.subr.bf16.mxu0 %v2788
    %3965 = vmatpush2.bf16.msra.mxu0 %v2787
    %3966 = vmatprep.subr.bf16.mxu0 %v2780
    %3967 = vmatpush2.bf16.msra.mxu0 %v2779
    %3968 = vmatprep.subr.bf16.mxu0 %v2772
    %3969 = vmatpush2.bf16.msra.mxu0 %v2771
    %3970 = vmatprep.subr.bf16.mxu0 %v2764
    %3971 = vmatpush2.bf16.msra.mxu0 %v2763
    %3972 = vmatprep.subr.bf16.mxu0 %v2756
    %3973 = vmatpush2.bf16.msra.mxu0 %v2755
    %3974 = vmatprep.subr.bf16.mxu0 %v2748
    %3975 = vmatpush2.bf16.msra.mxu0 %v2747
    %3976 = vmatprep.mubr.bf16.mxu0 %v456
    %3977 = vmatmul.mubr.bf16.gmra.mxu0 %v455
    %v3978 = vpop.f32.mrf.mxu0
    %v3979 = vadd.f32 %v3938, %v3978
    %v3980 = vpop.f32.mrf.mxu0
    %v3981 = vadd.f32 %v3940, %v3980
    %v3982 = vpop.f32.mrf.mxu0
    %v3983 = vpop.f32.mrf.mxu0
    %3984 = vdwg.mxu0
    %3985 = vmatprep.subr.bf16.mxu0 %v2868
    %3986 = vmatpush1.bf16.msra.mxu0 %v2867
    %3987 = vmatprep.subr.bf16.mxu0 %v2860
    %3988 = vmatpush1.bf16.msra.mxu0 %v2859
    %3989 = vmatprep.subr.bf16.mxu0 %v2852
    %3990 = vmatpush1.bf16.msra.mxu0 %v2851
    %3991 = vmatprep.subr.bf16.mxu0 %v2844
    %3992 = vmatpush1.bf16.msra.mxu0 %v2843
    %3993 = vmatprep.subr.bf16.mxu0 %v2836
    %3994 = vmatpush1.bf16.msra.mxu0 %v2835
    %3995 = vmatprep.subr.bf16.mxu0 %v2828
    %3996 = vmatpush1.bf16.msra.mxu0 %v2827
    %3997 = vmatprep.subr.bf16.mxu0 %v2820
    %3998 = vmatpush1.bf16.msra.mxu0 %v2819
    %3999 = vmatprep.subr.bf16.mxu0 %v2812
    %4000 = vmatpush1.bf16.msra.mxu0 %v2811
    %4001 = vmatprep.subr.bf16.mxu0 %v2932
    %4002 = vmatpush2.bf16.msra.mxu0 %v2931
    %4003 = vmatprep.subr.bf16.mxu0 %v2924
    %4004 = vmatpush2.bf16.msra.mxu0 %v2923
    %4005 = vmatprep.subr.bf16.mxu0 %v2916
    %4006 = vmatpush2.bf16.msra.mxu0 %v2915
    %4007 = vmatprep.subr.bf16.mxu0 %v2908
    %4008 = vmatpush2.bf16.msra.mxu0 %v2907
    %4009 = vmatprep.subr.bf16.mxu0 %v2900
    %4010 = vmatpush2.bf16.msra.mxu0 %v2899
    %4011 = vmatprep.subr.bf16.mxu0 %v2892
    %4012 = vmatpush2.bf16.msra.mxu0 %v2891
    %4013 = vmatprep.subr.bf16.mxu0 %v2884
    %4014 = vmatpush2.bf16.msra.mxu0 %v2883
    %4015 = vmatprep.subr.bf16.mxu0 %v2876
    %4016 = vmatpush2.bf16.msra.mxu0 %v2875
    %4017 = vmatprep.mubr.bf16.mxu0 %v458
    %4018 = vmatmul.mubr.bf16.gmra.mxu0 %v457
    %v4019 = vpop.f32.mrf.mxu0
    %v4020 = vadd.f32 %v3979, %v4019
    %v4021 = vpop.f32.mrf.mxu0
    %v4022 = vadd.f32 %v3981, %v4021
    %v4023 = vpop.f32.mrf.mxu0
    %v4024 = vpop.f32.mrf.mxu0
    %4025 = vdwg.mxu0
    %4026 = vmatprep.subr.bf16.mxu0 %v2996
    %4027 = vmatpush1.bf16.msra.mxu0 %v2995
    %4028 = vmatprep.subr.bf16.mxu0 %v2988
    %4029 = vmatpush1.bf16.msra.mxu0 %v2987
    %4030 = vmatprep.subr.bf16.mxu0 %v2980
    %4031 = vmatpush1.bf16.msra.mxu0 %v2979
    %4032 = vmatprep.subr.bf16.mxu0 %v2972
    %4033 = vmatpush1.bf16.msra.mxu0 %v2971
    %4034 = vmatprep.subr.bf16.mxu0 %v2964
    %4035 = vmatpush1.bf16.msra.mxu0 %v2963
    %4036 = vmatprep.subr.bf16.mxu0 %v2956
    %4037 = vmatpush1.bf16.msra.mxu0 %v2955
    %4038 = vmatprep.subr.bf16.mxu0 %v2948
    %4039 = vmatpush1.bf16.msra.mxu0 %v2947
    %4040 = vmatprep.subr.bf16.mxu0 %v2940
    %4041 = vmatpush1.bf16.msra.mxu0 %v2939
    %4042 = vmatprep.subr.bf16.mxu0 %v3060
    %4043 = vmatpush2.bf16.msra.mxu0 %v3059
    %4044 = vmatprep.subr.bf16.mxu0 %v3052
    %4045 = vmatpush2.bf16.msra.mxu0 %v3051
    %4046 = vmatprep.subr.bf16.mxu0 %v3044
    %4047 = vmatpush2.bf16.msra.mxu0 %v3043
    %4048 = vmatprep.subr.bf16.mxu0 %v3036
    %4049 = vmatpush2.bf16.msra.mxu0 %v3035
    %4050 = vmatprep.subr.bf16.mxu0 %v3028
    %4051 = vmatpush2.bf16.msra.mxu0 %v3027
    %4052 = vmatprep.subr.bf16.mxu0 %v3020
    %4053 = vmatpush2.bf16.msra.mxu0 %v3019
    %4054 = vmatprep.subr.bf16.mxu0 %v3012
    %4055 = vmatpush2.bf16.msra.mxu0 %v3011
    %4056 = vmatprep.subr.bf16.mxu0 %v3004
    %4057 = vmatpush2.bf16.msra.mxu0 %v3003
    %4058 = vmatprep.mubr.bf16.mxu0 %v460
    %4059 = vmatmul.mubr.bf16.gmra.mxu0 %v459
    %v4060 = vpop.f32.mrf.mxu0
    %v4061 = vadd.f32 %v4020, %v4060
    %v4062 = vpop.f32.mrf.mxu0
    %v4063 = vadd.f32 %v4022, %v4062
    %v4064 = vpop.f32.mrf.mxu0
    %v4065 = vpop.f32.mrf.mxu0
    %4066 = vdwg.mxu0
    %4067 = vmatprep.subr.bf16.mxu0 %v2614
    %4068 = vmatpush1.bf16.msra.mxu0 %v2613
    %4069 = vmatprep.subr.bf16.mxu0 %v2606
    %4070 = vmatpush1.bf16.msra.mxu0 %v2605
    %4071 = vmatprep.subr.bf16.mxu0 %v2598
    %4072 = vmatpush1.bf16.msra.mxu0 %v2597
    %4073 = vmatprep.subr.bf16.mxu0 %v2590
    %4074 = vmatpush1.bf16.msra.mxu0 %v2589
    %4075 = vmatprep.subr.bf16.mxu0 %v2582
    %4076 = vmatpush1.bf16.msra.mxu0 %v2581
    %4077 = vmatprep.subr.bf16.mxu0 %v2574
    %4078 = vmatpush1.bf16.msra.mxu0 %v2573
    %4079 = vmatprep.subr.bf16.mxu0 %v2566
    %4080 = vmatpush1.bf16.msra.mxu0 %v2565
    %4081 = vmatprep.subr.bf16.mxu0 %v2558
    %4082 = vmatpush1.bf16.msra.mxu0 %v2557
    %4083 = vmatprep.subr.bf16.mxu0 %v2678
    %4084 = vmatpush2.bf16.msra.mxu0 %v2677
    %4085 = vmatprep.subr.bf16.mxu0 %v2670
    %4086 = vmatpush2.bf16.msra.mxu0 %v2669
    %4087 = vmatprep.subr.bf16.mxu0 %v2662
    %4088 = vmatpush2.bf16.msra.mxu0 %v2661
    %4089 = vmatprep.subr.bf16.mxu0 %v2654
    %4090 = vmatpush2.bf16.msra.mxu0 %v2653
    %4091 = vmatprep.subr.bf16.mxu0 %v2646
    %4092 = vmatpush2.bf16.msra.mxu0 %v2645
    %4093 = vmatprep.subr.bf16.mxu0 %v2638
    %4094 = vmatpush2.bf16.msra.mxu0 %v2637
    %4095 = vmatprep.subr.bf16.mxu0 %v2630
    %4096 = vmatpush2.bf16.msra.mxu0 %v2629
    %4097 = vmatprep.subr.bf16.mxu0 %v2622
    %4098 = vmatpush2.bf16.msra.mxu0 %v2621
    %4099 = vmatprep.mubr.bf16.mxu0 %v454
    %4100 = vmatmul.mubr.bf16.gmra.mxu0 %v453
    %v4101 = vpop.f32.mrf.mxu0
    %v4102 = vadd.f32 %v1002, %v4101
    %v4103 = vpop.f32.mrf.mxu0
    %v4104 = vadd.f32 %v1006, %v4103
    %v4105 = vpop.f32.mrf.mxu0
    %v4106 = vpop.f32.mrf.mxu0
    %4107 = vdwg.mxu0
    %4108 = vmatprep.subr.bf16.mxu0 %v2742
    %4109 = vmatpush1.bf16.msra.mxu0 %v2741
    %4110 = vmatprep.subr.bf16.mxu0 %v2734
    %4111 = vmatpush1.bf16.msra.mxu0 %v2733
    %4112 = vmatprep.subr.bf16.mxu0 %v2726
    %4113 = vmatpush1.bf16.msra.mxu0 %v2725
    %4114 = vmatprep.subr.bf16.mxu0 %v2718
    %4115 = vmatpush1.bf16.msra.mxu0 %v2717
    %4116 = vmatprep.subr.bf16.mxu0 %v2710
    %4117 = vmatpush1.bf16.msra.mxu0 %v2709
    %4118 = vmatprep.subr.bf16.mxu0 %v2702
    %4119 = vmatpush1.bf16.msra.mxu0 %v2701
    %4120 = vmatprep.subr.bf16.mxu0 %v2694
    %4121 = vmatpush1.bf16.msra.mxu0 %v2693
    %4122 = vmatprep.subr.bf16.mxu0 %v2686
    %4123 = vmatpush1.bf16.msra.mxu0 %v2685
    %4124 = vmatprep.subr.bf16.mxu0 %v2806
    %4125 = vmatpush2.bf16.msra.mxu0 %v2805
    %4126 = vmatprep.subr.bf16.mxu0 %v2798
    %4127 = vmatpush2.bf16.msra.mxu0 %v2797
    %4128 = vmatprep.subr.bf16.mxu0 %v2790
    %4129 = vmatpush2.bf16.msra.mxu0 %v2789
    %4130 = vmatprep.subr.bf16.mxu0 %v2782
    %4131 = vmatpush2.bf16.msra.mxu0 %v2781
    %4132 = vmatprep.subr.bf16.mxu0 %v2774
    %4133 = vmatpush2.bf16.msra.mxu0 %v2773
    %4134 = vmatprep.subr.bf16.mxu0 %v2766
    %4135 = vmatpush2.bf16.msra.mxu0 %v2765
    %4136 = vmatprep.subr.bf16.mxu0 %v2758
    %4137 = vmatpush2.bf16.msra.mxu0 %v2757
    %4138 = vmatprep.subr.bf16.mxu0 %v2750
    %4139 = vmatpush2.bf16.msra.mxu0 %v2749
    %4140 = vmatprep.mubr.bf16.mxu0 %v456
    %4141 = vmatmul.mubr.bf16.gmra.mxu0 %v455
    %v4142 = vpop.f32.mrf.mxu0
    %v4143 = vadd.f32 %v4102, %v4142
    %v4144 = vpop.f32.mrf.mxu0
    %v4145 = vadd.f32 %v4104, %v4144
    %v4146 = vpop.f32.mrf.mxu0
    %v4147 = vpop.f32.mrf.mxu0
    %4148 = vdwg.mxu0
    %4149 = vmatprep.subr.bf16.mxu0 %v2870
    %4150 = vmatpush1.bf16.msra.mxu0 %v2869
    %4151 = vmatprep.subr.bf16.mxu0 %v2862
    %4152 = vmatpush1.bf16.msra.mxu0 %v2861
    %4153 = vmatprep.subr.bf16.mxu0 %v2854
    %4154 = vmatpush1.bf16.msra.mxu0 %v2853
    %4155 = vmatprep.subr.bf16.mxu0 %v2846
    %4156 = vmatpush1.bf16.msra.mxu0 %v2845
    %4157 = vmatprep.subr.bf16.mxu0 %v2838
    %4158 = vmatpush1.bf16.msra.mxu0 %v2837
    %4159 = vmatprep.subr.bf16.mxu0 %v2830
    %4160 = vmatpush1.bf16.msra.mxu0 %v2829
    %4161 = vmatprep.subr.bf16.mxu0 %v2822
    %4162 = vmatpush1.bf16.msra.mxu0 %v2821
    %4163 = vmatprep.subr.bf16.mxu0 %v2814
    %4164 = vmatpush1.bf16.msra.mxu0 %v2813
    %4165 = vmatprep.subr.bf16.mxu0 %v2934
    %4166 = vmatpush2.bf16.msra.mxu0 %v2933
    %4167 = vmatprep.subr.bf16.mxu0 %v2926
    %4168 = vmatpush2.bf16.msra.mxu0 %v2925
    %4169 = vmatprep.subr.bf16.mxu0 %v2918
    %4170 = vmatpush2.bf16.msra.mxu0 %v2917
    %4171 = vmatprep.subr.bf16.mxu0 %v2910
    %4172 = vmatpush2.bf16.msra.mxu0 %v2909
    %4173 = vmatprep.subr.bf16.mxu0 %v2902
    %4174 = vmatpush2.bf16.msra.mxu0 %v2901
    %4175 = vmatprep.subr.bf16.mxu0 %v2894
    %4176 = vmatpush2.bf16.msra.mxu0 %v2893
    %4177 = vmatprep.subr.bf16.mxu0 %v2886
    %4178 = vmatpush2.bf16.msra.mxu0 %v2885
    %4179 = vmatprep.subr.bf16.mxu0 %v2878
    %4180 = vmatpush2.bf16.msra.mxu0 %v2877
    %4181 = vmatprep.mubr.bf16.mxu0 %v458
    %4182 = vmatmul.mubr.bf16.gmra.mxu0 %v457
    %v4183 = vpop.f32.mrf.mxu0
    %v4184 = vadd.f32 %v4143, %v4183
    %v4185 = vpop.f32.mrf.mxu0
    %v4186 = vadd.f32 %v4145, %v4185
    %v4187 = vpop.f32.mrf.mxu0
    %v4188 = vpop.f32.mrf.mxu0
    %4189 = vdwg.mxu0
    %4190 = vmatprep.subr.bf16.mxu0 %v2998
    %4191 = vmatpush1.bf16.msra.mxu0 %v2997
    %4192 = vmatprep.subr.bf16.mxu0 %v2990
    %4193 = vmatpush1.bf16.msra.mxu0 %v2989
    %4194 = vmatprep.subr.bf16.mxu0 %v2982
    %4195 = vmatpush1.bf16.msra.mxu0 %v2981
    %4196 = vmatprep.subr.bf16.mxu0 %v2974
    %4197 = vmatpush1.bf16.msra.mxu0 %v2973
    %4198 = vmatprep.subr.bf16.mxu0 %v2966
    %4199 = vmatpush1.bf16.msra.mxu0 %v2965
    %4200 = vmatprep.subr.bf16.mxu0 %v2958
    %4201 = vmatpush1.bf16.msra.mxu0 %v2957
    %4202 = vmatprep.subr.bf16.mxu0 %v2950
    %4203 = vmatpush1.bf16.msra.mxu0 %v2949
    %4204 = vmatprep.subr.bf16.mxu0 %v2942
    %4205 = vmatpush1.bf16.msra.mxu0 %v2941
    %4206 = vmatprep.subr.bf16.mxu0 %v3062
    %4207 = vmatpush2.bf16.msra.mxu0 %v3061
    %4208 = vmatprep.subr.bf16.mxu0 %v3054
    %4209 = vmatpush2.bf16.msra.mxu0 %v3053
    %4210 = vmatprep.subr.bf16.mxu0 %v3046
    %4211 = vmatpush2.bf16.msra.mxu0 %v3045
    %4212 = vmatprep.subr.bf16.mxu0 %v3038
    %4213 = vmatpush2.bf16.msra.mxu0 %v3037
    %4214 = vmatprep.subr.bf16.mxu0 %v3030
    %4215 = vmatpush2.bf16.msra.mxu0 %v3029
    %4216 = vmatprep.subr.bf16.mxu0 %v3022
    %4217 = vmatpush2.bf16.msra.mxu0 %v3021
    %4218 = vmatprep.subr.bf16.mxu0 %v3014
    %4219 = vmatpush2.bf16.msra.mxu0 %v3013
    %4220 = vmatprep.subr.bf16.mxu0 %v3006
    %4221 = vmatpush2.bf16.msra.mxu0 %v3005
    %4222 = vmatprep.mubr.bf16.mxu0 %v460
    %4223 = vmatmul.mubr.bf16.gmra.mxu0 %v459
    %v4224 = vpop.f32.mrf.mxu0
    %v4225 = vadd.f32 %v4184, %v4224
    %v4226 = vpop.f32.mrf.mxu0
    %v4227 = vadd.f32 %v4186, %v4226
    %v4228 = vpop.f32.mrf.mxu0
    %v4229 = vpop.f32.mrf.mxu0
    %4230 = vdwg.mxu0
    %v4231 = vmax.f32 %v3733, 0.0
    %v4232 = vmax.f32 %v3735, 0.0
    %v4233 = vmax.f32 %v3897, 0.0
    %v4234 = vmax.f32 %v3899, 0.0
    %v4235 = vmax.f32 %v4061, 0.0
    %v4236 = vmax.f32 %v4063, 0.0
    %v4237 = vmax.f32 %v4225, 0.0
    %v4238 = vmax.f32 %v4227, 0.0
    %v4239 = vpack.c.bf16 %v4231, %v4231
    %v4240 = vpack.c.bf16 %v4232, %v4232
    %v4241 = vpack.c.bf16 %v4233, %v4233
    %v4242 = vpack.c.bf16 %v4234, %v4234
    %v4243 = vpack.c.bf16 %v4235, %v4235
    %v4244 = vpack.c.bf16 %v4236, %v4236
    %v4245 = vpack.c.bf16 %v4237, %v4237
    %v4246 = vpack.c.bf16 %v4238, %v4238
    %v4247 = vld [vmem:[#allocation12] sm:$0xff]
    %v4248 = vld [vmem:[#allocation12 + $0x8] sm:$0xff]
    %v4249 = vld [vmem:[#allocation12 + $0x10] sm:$0xff]
    %v4250 = vld [vmem:[#allocation12 + $0x18] sm:$0xff]
    %v4251 = vld [vmem:[#allocation12 + $0x20] sm:$0xff]
    %v4252 = vld [vmem:[#allocation12 + $0x28] sm:$0xff]
    %v4253 = vld [vmem:[#allocation12 + $0x30] sm:$0xff]
    %v4254 = vld [vmem:[#allocation12 + $0x38] sm:$0xff]
    %v4255 = vld [vmem:[#allocation12 + $0x40] sm:$0xff]
    %v4256 = vld [vmem:[#allocation12 + $0x48] sm:$0xff]
    %v4257 = vld [vmem:[#allocation12 + $0x50] sm:$0xff]
    %v4258 = vld [vmem:[#allocation12 + $0x58] sm:$0xff]
    %v4259 = vld [vmem:[#allocation12 + $0x60] sm:$0xff]
    %v4260 = vld [vmem:[#allocation12 + $0x68] sm:$0xff]
    %v4261 = vld [vmem:[#allocation12 + $0x70] sm:$0xff]
    %v4262 = vld [vmem:[#allocation12 + $0x78] sm:$0xff]
    %v4263 = vld [vmem:[#allocation12 + $0x80] sm:$0xff]
    %v4264 = vld [vmem:[#allocation12 + $0x88] sm:$0xff]
    %v4265 = vld [vmem:[#allocation12 + $0x90] sm:$0xff]
    %v4266 = vld [vmem:[#allocation12 + $0x98] sm:$0xff]
    %v4267 = vld [vmem:[#allocation12 + $0xa0] sm:$0xff]
    %v4268 = vld [vmem:[#allocation12 + $0xa8] sm:$0xff]
    %v4269 = vld [vmem:[#allocation12 + $0xb0] sm:$0xff]
    %v4270 = vld [vmem:[#allocation12 + $0xb8] sm:$0xff]
    %v4271 = vld [vmem:[#allocation12 + $0xc0] sm:$0xff]
    %v4272 = vld [vmem:[#allocation12 + $0xc8] sm:$0xff]
    %v4273 = vld [vmem:[#allocation12 + $0xd0] sm:$0xff]
    %v4274 = vld [vmem:[#allocation12 + $0xd8] sm:$0xff]
    %v4275 = vld [vmem:[#allocation12 + $0xe0] sm:$0xff]
    %v4276 = vld [vmem:[#allocation12 + $0xe8] sm:$0xff]
    %v4277 = vld [vmem:[#allocation12 + $0xf0] sm:$0xff]
    %v4278 = vld [vmem:[#allocation12 + $0xf8] sm:$0xff]
    %v4279 = vld [vmem:[#allocation12 + $0x100] sm:$0xff]
    %v4280 = vld [vmem:[#allocation12 + $0x108] sm:$0xff]
    %v4281 = vld [vmem:[#allocation12 + $0x110] sm:$0xff]
    %v4282 = vld [vmem:[#allocation12 + $0x118] sm:$0xff]
    %v4283 = vld [vmem:[#allocation12 + $0x120] sm:$0xff]
    %v4284 = vld [vmem:[#allocation12 + $0x128] sm:$0xff]
    %v4285 = vld [vmem:[#allocation12 + $0x130] sm:$0xff]
    %v4286 = vld [vmem:[#allocation12 + $0x138] sm:$0xff]
    %v4287 = vld [vmem:[#allocation12 + $0x140] sm:$0xff]
    %v4288 = vld [vmem:[#allocation12 + $0x148] sm:$0xff]
    %v4289 = vld [vmem:[#allocation12 + $0x150] sm:$0xff]
    %v4290 = vld [vmem:[#allocation12 + $0x158] sm:$0xff]
    %v4291 = vld [vmem:[#allocation12 + $0x160] sm:$0xff]
    %v4292 = vld [vmem:[#allocation12 + $0x168] sm:$0xff]
    %v4293 = vld [vmem:[#allocation12 + $0x170] sm:$0xff]
    %v4294 = vld [vmem:[#allocation12 + $0x178] sm:$0xff]
    %v4295 = vld [vmem:[#allocation12 + $0x180] sm:$0xff]
    %v4296 = vld [vmem:[#allocation12 + $0x188] sm:$0xff]
    %v4297 = vld [vmem:[#allocation12 + $0x190] sm:$0xff]
    %v4298 = vld [vmem:[#allocation12 + $0x198] sm:$0xff]
    %v4299 = vld [vmem:[#allocation12 + $0x1a0] sm:$0xff]
    %v4300 = vld [vmem:[#allocation12 + $0x1a8] sm:$0xff]
    %v4301 = vld [vmem:[#allocation12 + $0x1b0] sm:$0xff]
    %v4302 = vld [vmem:[#allocation12 + $0x1b8] sm:$0xff]
    %v4303 = vld [vmem:[#allocation12 + $0x1c0] sm:$0xff]
    %v4304 = vld [vmem:[#allocation12 + $0x1c8] sm:$0xff]
    %v4305 = vld [vmem:[#allocation12 + $0x1d0] sm:$0xff]
    %v4306 = vld [vmem:[#allocation12 + $0x1d8] sm:$0xff]
    %v4307 = vld [vmem:[#allocation12 + $0x1e0] sm:$0xff]
    %v4308 = vld [vmem:[#allocation12 + $0x1e8] sm:$0xff]
    %v4309 = vld [vmem:[#allocation12 + $0x1f0] sm:$0xff]
    %v4310 = vld [vmem:[#allocation12 + $0x1f8] sm:$0xff]
    %v4311 = vld [vmem:[#allocation12 + $0x200] sm:$0xff]
    %v4312 = vld [vmem:[#allocation12 + $0x208] sm:$0xff]
    %v4313 = vld [vmem:[#allocation12 + $0x210] sm:$0xff]
    %v4314 = vld [vmem:[#allocation12 + $0x218] sm:$0xff]
    %v4315 = vld [vmem:[#allocation12 + $0x220] sm:$0xff]
    %v4316 = vld [vmem:[#allocation12 + $0x228] sm:$0xff]
    %v4317 = vld [vmem:[#allocation12 + $0x230] sm:$0xff]
    %v4318 = vld [vmem:[#allocation12 + $0x238] sm:$0xff]
    %v4319 = vld [vmem:[#allocation12 + $0x240] sm:$0xff]
    %v4320 = vld [vmem:[#allocation12 + $0x248] sm:$0xff]
    %v4321 = vld [vmem:[#allocation12 + $0x250] sm:$0xff]
    %v4322 = vld [vmem:[#allocation12 + $0x258] sm:$0xff]
    %v4323 = vld [vmem:[#allocation12 + $0x260] sm:$0xff]
    %v4324 = vld [vmem:[#allocation12 + $0x268] sm:$0xff]
    %v4325 = vld [vmem:[#allocation12 + $0x270] sm:$0xff]
    %v4326 = vld [vmem:[#allocation12 + $0x278] sm:$0xff]
    %v4327 = vld [vmem:[#allocation12 + $0x280] sm:$0xff]
    %v4328 = vld [vmem:[#allocation12 + $0x288] sm:$0xff]
    %v4329 = vld [vmem:[#allocation12 + $0x290] sm:$0xff]
    %v4330 = vld [vmem:[#allocation12 + $0x298] sm:$0xff]
    %v4331 = vld [vmem:[#allocation12 + $0x2a0] sm:$0xff]
    %v4332 = vld [vmem:[#allocation12 + $0x2a8] sm:$0xff]
    %v4333 = vld [vmem:[#allocation12 + $0x2b0] sm:$0xff]
    %v4334 = vld [vmem:[#allocation12 + $0x2b8] sm:$0xff]
    %v4335 = vld [vmem:[#allocation12 + $0x2c0] sm:$0xff]
    %v4336 = vld [vmem:[#allocation12 + $0x2c8] sm:$0xff]
    %v4337 = vld [vmem:[#allocation12 + $0x2d0] sm:$0xff]
    %v4338 = vld [vmem:[#allocation12 + $0x2d8] sm:$0xff]
    %v4339 = vld [vmem:[#allocation12 + $0x2e0] sm:$0xff]
    %v4340 = vld [vmem:[#allocation12 + $0x2e8] sm:$0xff]
    %v4341 = vld [vmem:[#allocation12 + $0x2f0] sm:$0xff]
    %v4342 = vld [vmem:[#allocation12 + $0x2f8] sm:$0xff]
    %v4343 = vld [vmem:[#allocation12 + $0x300] sm:$0xff]
    %v4344 = vld [vmem:[#allocation12 + $0x308] sm:$0xff]
    %v4345 = vld [vmem:[#allocation12 + $0x310] sm:$0xff]
    %v4346 = vld [vmem:[#allocation12 + $0x318] sm:$0xff]
    %v4347 = vld [vmem:[#allocation12 + $0x320] sm:$0xff]
    %v4348 = vld [vmem:[#allocation12 + $0x328] sm:$0xff]
    %v4349 = vld [vmem:[#allocation12 + $0x330] sm:$0xff]
    %v4350 = vld [vmem:[#allocation12 + $0x338] sm:$0xff]
    %v4351 = vld [vmem:[#allocation12 + $0x340] sm:$0xff]
    %v4352 = vld [vmem:[#allocation12 + $0x348] sm:$0xff]
    %v4353 = vld [vmem:[#allocation12 + $0x350] sm:$0xff]
    %v4354 = vld [vmem:[#allocation12 + $0x358] sm:$0xff]
    %v4355 = vld [vmem:[#allocation12 + $0x360] sm:$0xff]
    %v4356 = vld [vmem:[#allocation12 + $0x368] sm:$0xff]
    %v4357 = vld [vmem:[#allocation12 + $0x370] sm:$0xff]
    %v4358 = vld [vmem:[#allocation12 + $0x378] sm:$0xff]
    %v4359 = vld [vmem:[#allocation12 + $0x380] sm:$0xff]
    %v4360 = vld [vmem:[#allocation12 + $0x388] sm:$0xff]
    %v4361 = vld [vmem:[#allocation12 + $0x390] sm:$0xff]
    %v4362 = vld [vmem:[#allocation12 + $0x398] sm:$0xff]
    %v4363 = vld [vmem:[#allocation12 + $0x3a0] sm:$0xff]
    %v4364 = vld [vmem:[#allocation12 + $0x3a8] sm:$0xff]
    %v4365 = vld [vmem:[#allocation12 + $0x3b0] sm:$0xff]
    %v4366 = vld [vmem:[#allocation12 + $0x3b8] sm:$0xff]
    %v4367 = vld [vmem:[#allocation12 + $0x3c0] sm:$0xff]
    %v4368 = vld [vmem:[#allocation12 + $0x3c8] sm:$0xff]
    %v4369 = vld [vmem:[#allocation12 + $0x3d0] sm:$0xff]
    %v4370 = vld [vmem:[#allocation12 + $0x3d8] sm:$0xff]
    %v4371 = vld [vmem:[#allocation12 + $0x3e0] sm:$0xff]
    %v4372 = vld [vmem:[#allocation12 + $0x3e8] sm:$0xff]
    %v4373 = vld [vmem:[#allocation12 + $0x3f0] sm:$0xff]
    %v4374 = vld [vmem:[#allocation12 + $0x3f8] sm:$0xff]
    %v4375 = vld [vmem:[#allocation12 + $0x400] sm:$0xff]
    %v4376 = vld [vmem:[#allocation12 + $0x408] sm:$0xff]
    %v4377 = vld [vmem:[#allocation12 + $0x410] sm:$0xff]
    %v4378 = vld [vmem:[#allocation12 + $0x418] sm:$0xff]
    %v4379 = vld [vmem:[#allocation12 + $0x420] sm:$0xff]
    %v4380 = vld [vmem:[#allocation12 + $0x428] sm:$0xff]
    %v4381 = vld [vmem:[#allocation12 + $0x430] sm:$0xff]
    %v4382 = vld [vmem:[#allocation12 + $0x438] sm:$0xff]
    %v4383 = vld [vmem:[#allocation12 + $0x440] sm:$0xff]
    %v4384 = vld [vmem:[#allocation12 + $0x448] sm:$0xff]
    %v4385 = vld [vmem:[#allocation12 + $0x450] sm:$0xff]
    %v4386 = vld [vmem:[#allocation12 + $0x458] sm:$0xff]
    %v4387 = vld [vmem:[#allocation12 + $0x460] sm:$0xff]
    %v4388 = vld [vmem:[#allocation12 + $0x468] sm:$0xff]
    %v4389 = vld [vmem:[#allocation12 + $0x470] sm:$0xff]
    %v4390 = vld [vmem:[#allocation12 + $0x478] sm:$0xff]
    %v4391 = vld [vmem:[#allocation12 + $0x480] sm:$0xff]
    %v4392 = vld [vmem:[#allocation12 + $0x488] sm:$0xff]
    %v4393 = vld [vmem:[#allocation12 + $0x490] sm:$0xff]
    %v4394 = vld [vmem:[#allocation12 + $0x498] sm:$0xff]
    %v4395 = vld [vmem:[#allocation12 + $0x4a0] sm:$0xff]
    %v4396 = vld [vmem:[#allocation12 + $0x4a8] sm:$0xff]
    %v4397 = vld [vmem:[#allocation12 + $0x4b0] sm:$0xff]
    %v4398 = vld [vmem:[#allocation12 + $0x4b8] sm:$0xff]
    %v4399 = vld [vmem:[#allocation12 + $0x4c0] sm:$0xff]
    %v4400 = vld [vmem:[#allocation12 + $0x4c8] sm:$0xff]
    %v4401 = vld [vmem:[#allocation12 + $0x4d0] sm:$0xff]
    %v4402 = vld [vmem:[#allocation12 + $0x4d8] sm:$0xff]
    %v4403 = vld [vmem:[#allocation12 + $0x4e0] sm:$0xff]
    %v4404 = vld [vmem:[#allocation12 + $0x4e8] sm:$0xff]
    %v4405 = vld [vmem:[#allocation12 + $0x4f0] sm:$0xff]
    %v4406 = vld [vmem:[#allocation12 + $0x4f8] sm:$0xff]
    %v4407 = vld [vmem:[#allocation12 + $0x500] sm:$0xff]
    %v4408 = vld [vmem:[#allocation12 + $0x508] sm:$0xff]
    %v4409 = vld [vmem:[#allocation12 + $0x510] sm:$0xff]
    %v4410 = vld [vmem:[#allocation12 + $0x518] sm:$0xff]
    %v4411 = vld [vmem:[#allocation12 + $0x520] sm:$0xff]
    %v4412 = vld [vmem:[#allocation12 + $0x528] sm:$0xff]
    %v4413 = vld [vmem:[#allocation12 + $0x530] sm:$0xff]
    %v4414 = vld [vmem:[#allocation12 + $0x538] sm:$0xff]
    %v4415 = vld [vmem:[#allocation12 + $0x540] sm:$0xff]
    %v4416 = vld [vmem:[#allocation12 + $0x548] sm:$0xff]
    %v4417 = vld [vmem:[#allocation12 + $0x550] sm:$0xff]
    %v4418 = vld [vmem:[#allocation12 + $0x558] sm:$0xff]
    %v4419 = vld [vmem:[#allocation12 + $0x560] sm:$0xff]
    %v4420 = vld [vmem:[#allocation12 + $0x568] sm:$0xff]
    %v4421 = vld [vmem:[#allocation12 + $0x570] sm:$0xff]
    %v4422 = vld [vmem:[#allocation12 + $0x578] sm:$0xff]
    %v4423 = vld [vmem:[#allocation12 + $0x580] sm:$0xff]
    %v4424 = vld [vmem:[#allocation12 + $0x588] sm:$0xff]
    %v4425 = vld [vmem:[#allocation12 + $0x590] sm:$0xff]
    %v4426 = vld [vmem:[#allocation12 + $0x598] sm:$0xff]
    %v4427 = vld [vmem:[#allocation12 + $0x5a0] sm:$0xff]
    %v4428 = vld [vmem:[#allocation12 + $0x5a8] sm:$0xff]
    %v4429 = vld [vmem:[#allocation12 + $0x5b0] sm:$0xff]
    %v4430 = vld [vmem:[#allocation12 + $0x5b8] sm:$0xff]
    %v4431 = vld [vmem:[#allocation12 + $0x5c0] sm:$0xff]
    %v4432 = vld [vmem:[#allocation12 + $0x5c8] sm:$0xff]
    %v4433 = vld [vmem:[#allocation12 + $0x5d0] sm:$0xff]
    %v4434 = vld [vmem:[#allocation12 + $0x5d8] sm:$0xff]
    %v4435 = vld [vmem:[#allocation12 + $0x5e0] sm:$0xff]
    %v4436 = vld [vmem:[#allocation12 + $0x5e8] sm:$0xff]
    %v4437 = vld [vmem:[#allocation12 + $0x5f0] sm:$0xff]
    %v4438 = vld [vmem:[#allocation12 + $0x5f8] sm:$0xff]
    %v4439 = vld [vmem:[#allocation12 + $0x600] sm:$0xff]
    %v4440 = vld [vmem:[#allocation12 + $0x608] sm:$0xff]
    %v4441 = vld [vmem:[#allocation12 + $0x610] sm:$0xff]
    %v4442 = vld [vmem:[#allocation12 + $0x618] sm:$0xff]
    %v4443 = vld [vmem:[#allocation12 + $0x620] sm:$0xff]
    %v4444 = vld [vmem:[#allocation12 + $0x628] sm:$0xff]
    %v4445 = vld [vmem:[#allocation12 + $0x630] sm:$0xff]
    %v4446 = vld [vmem:[#allocation12 + $0x638] sm:$0xff]
    %v4447 = vld [vmem:[#allocation12 + $0x640] sm:$0xff]
    %v4448 = vld [vmem:[#allocation12 + $0x648] sm:$0xff]
    %v4449 = vld [vmem:[#allocation12 + $0x650] sm:$0xff]
    %v4450 = vld [vmem:[#allocation12 + $0x658] sm:$0xff]
    %v4451 = vld [vmem:[#allocation12 + $0x660] sm:$0xff]
    %v4452 = vld [vmem:[#allocation12 + $0x668] sm:$0xff]
    %v4453 = vld [vmem:[#allocation12 + $0x670] sm:$0xff]
    %v4454 = vld [vmem:[#allocation12 + $0x678] sm:$0xff]
    %v4455 = vld [vmem:[#allocation12 + $0x680] sm:$0xff]
    %v4456 = vld [vmem:[#allocation12 + $0x688] sm:$0xff]
    %v4457 = vld [vmem:[#allocation12 + $0x690] sm:$0xff]
    %v4458 = vld [vmem:[#allocation12 + $0x698] sm:$0xff]
    %v4459 = vld [vmem:[#allocation12 + $0x6a0] sm:$0xff]
    %v4460 = vld [vmem:[#allocation12 + $0x6a8] sm:$0xff]
    %v4461 = vld [vmem:[#allocation12 + $0x6b0] sm:$0xff]
    %v4462 = vld [vmem:[#allocation12 + $0x6b8] sm:$0xff]
    %v4463 = vld [vmem:[#allocation12 + $0x6c0] sm:$0xff]
    %v4464 = vld [vmem:[#allocation12 + $0x6c8] sm:$0xff]
    %v4465 = vld [vmem:[#allocation12 + $0x6d0] sm:$0xff]
    %v4466 = vld [vmem:[#allocation12 + $0x6d8] sm:$0xff]
    %v4467 = vld [vmem:[#allocation12 + $0x6e0] sm:$0xff]
    %v4468 = vld [vmem:[#allocation12 + $0x6e8] sm:$0xff]
    %v4469 = vld [vmem:[#allocation12 + $0x6f0] sm:$0xff]
    %v4470 = vld [vmem:[#allocation12 + $0x6f8] sm:$0xff]
    %v4471 = vld [vmem:[#allocation12 + $0x700] sm:$0xff]
    %v4472 = vld [vmem:[#allocation12 + $0x708] sm:$0xff]
    %v4473 = vld [vmem:[#allocation12 + $0x710] sm:$0xff]
    %v4474 = vld [vmem:[#allocation12 + $0x718] sm:$0xff]
    %v4475 = vld [vmem:[#allocation12 + $0x720] sm:$0xff]
    %v4476 = vld [vmem:[#allocation12 + $0x728] sm:$0xff]
    %v4477 = vld [vmem:[#allocation12 + $0x730] sm:$0xff]
    %v4478 = vld [vmem:[#allocation12 + $0x738] sm:$0xff]
    %v4479 = vld [vmem:[#allocation12 + $0x740] sm:$0xff]
    %v4480 = vld [vmem:[#allocation12 + $0x748] sm:$0xff]
    %v4481 = vld [vmem:[#allocation12 + $0x750] sm:$0xff]
    %v4482 = vld [vmem:[#allocation12 + $0x758] sm:$0xff]
    %v4483 = vld [vmem:[#allocation12 + $0x760] sm:$0xff]
    %v4484 = vld [vmem:[#allocation12 + $0x768] sm:$0xff]
    %v4485 = vld [vmem:[#allocation12 + $0x770] sm:$0xff]
    %v4486 = vld [vmem:[#allocation12 + $0x778] sm:$0xff]
    %v4487 = vld [vmem:[#allocation12 + $0x780] sm:$0xff]
    %v4488 = vld [vmem:[#allocation12 + $0x788] sm:$0xff]
    %v4489 = vld [vmem:[#allocation12 + $0x790] sm:$0xff]
    %v4490 = vld [vmem:[#allocation12 + $0x798] sm:$0xff]
    %v4491 = vld [vmem:[#allocation12 + $0x7a0] sm:$0xff]
    %v4492 = vld [vmem:[#allocation12 + $0x7a8] sm:$0xff]
    %v4493 = vld [vmem:[#allocation12 + $0x7b0] sm:$0xff]
    %v4494 = vld [vmem:[#allocation12 + $0x7b8] sm:$0xff]
    %v4495 = vld [vmem:[#allocation12 + $0x7c0] sm:$0xff]
    %v4496 = vld [vmem:[#allocation12 + $0x7c8] sm:$0xff]
    %v4497 = vld [vmem:[#allocation12 + $0x7d0] sm:$0xff]
    %v4498 = vld [vmem:[#allocation12 + $0x7d8] sm:$0xff]
    %v4499 = vld [vmem:[#allocation12 + $0x7e0] sm:$0xff]
    %v4500 = vld [vmem:[#allocation12 + $0x7e8] sm:$0xff]
    %v4501 = vld [vmem:[#allocation12 + $0x7f0] sm:$0xff]
    %v4502 = vld [vmem:[#allocation12 + $0x7f8] sm:$0xff]
    %v4503 = vld [vmem:[#allocation14] sm:$0xf]
    %v4505 = vlaneseq
    %v4506 = vshrl.u32 %v4505, 7
    %v4507 = vsub.s32 0, %v4506
    %v4508 = vrot.slane %v4503, %v4507
    %v4509 = vlaneseq
    %v4510 = vshrl.u32 %v4509, 7
    %v4511 = vsub.s32 1, %v4510
    %v4512 = vrot.slane %v4503, %v4511
    %v4513 = vlaneseq
    %v4514 = vshrl.u32 %v4513, 7
    %v4515 = vsub.s32 2, %v4514
    %v4516 = vrot.slane %v4503, %v4515
    %v4517 = vlaneseq
    %v4518 = vshrl.u32 %v4517, 7
    %v4519 = vsub.s32 3, %v4518
    %v4520 = vrot.slane %v4503, %v4519
    %v4781 = vunpack.c.l.b16 %v4247
    %v4782 = vunpack.c.h.b16 %v4247
    %v4783 = vunpack.c.l.b16 %v4248
    %v4784 = vunpack.c.h.b16 %v4248
    %v4785 = vunpack.c.l.b16 %v4249
    %v4786 = vunpack.c.h.b16 %v4249
    %v4787 = vunpack.c.l.b16 %v4250
    %v4788 = vunpack.c.h.b16 %v4250
    %v4789 = vunpack.c.l.b16 %v4251
    %v4790 = vunpack.c.h.b16 %v4251
    %v4791 = vunpack.c.l.b16 %v4252
    %v4792 = vunpack.c.h.b16 %v4252
    %v4793 = vunpack.c.l.b16 %v4253
    %v4794 = vunpack.c.h.b16 %v4253
    %v4795 = vunpack.c.l.b16 %v4254
    %v4796 = vunpack.c.h.b16 %v4254
    %v4797 = vunpack.c.l.b16 %v4255
    %v4798 = vunpack.c.h.b16 %v4255
    %v4799 = vunpack.c.l.b16 %v4256
    %v4800 = vunpack.c.h.b16 %v4256
    %v4801 = vunpack.c.l.b16 %v4257
    %v4802 = vunpack.c.h.b16 %v4257
    %v4803 = vunpack.c.l.b16 %v4258
    %v4804 = vunpack.c.h.b16 %v4258
    %v4805 = vunpack.c.l.b16 %v4259
    %v4806 = vunpack.c.h.b16 %v4259
    %v4807 = vunpack.c.l.b16 %v4260
    %v4808 = vunpack.c.h.b16 %v4260
    %v4809 = vunpack.c.l.b16 %v4261
    %v4810 = vunpack.c.h.b16 %v4261
    %v4811 = vunpack.c.l.b16 %v4262
    %v4812 = vunpack.c.h.b16 %v4262
    %v4813 = vunpack.c.l.b16 %v4263
    %v4814 = vunpack.c.h.b16 %v4263
    %v4815 = vunpack.c.l.b16 %v4264
    %v4816 = vunpack.c.h.b16 %v4264
    %v4817 = vunpack.c.l.b16 %v4265
    %v4818 = vunpack.c.h.b16 %v4265
    %v4819 = vunpack.c.l.b16 %v4266
    %v4820 = vunpack.c.h.b16 %v4266
    %v4821 = vunpack.c.l.b16 %v4267
    %v4822 = vunpack.c.h.b16 %v4267
    %v4823 = vunpack.c.l.b16 %v4268
    %v4824 = vunpack.c.h.b16 %v4268
    %v4825 = vunpack.c.l.b16 %v4269
    %v4826 = vunpack.c.h.b16 %v4269
    %v4827 = vunpack.c.l.b16 %v4270
    %v4828 = vunpack.c.h.b16 %v4270
    %v4829 = vunpack.c.l.b16 %v4271
    %v4830 = vunpack.c.h.b16 %v4271
    %v4831 = vunpack.c.l.b16 %v4272
    %v4832 = vunpack.c.h.b16 %v4272
    %v4833 = vunpack.c.l.b16 %v4273
    %v4834 = vunpack.c.h.b16 %v4273
    %v4835 = vunpack.c.l.b16 %v4274
    %v4836 = vunpack.c.h.b16 %v4274
    %v4837 = vunpack.c.l.b16 %v4275
    %v4838 = vunpack.c.h.b16 %v4275
    %v4839 = vunpack.c.l.b16 %v4276
    %v4840 = vunpack.c.h.b16 %v4276
    %v4841 = vunpack.c.l.b16 %v4277
    %v4842 = vunpack.c.h.b16 %v4277
    %v4843 = vunpack.c.l.b16 %v4278
    %v4844 = vunpack.c.h.b16 %v4278
    %v4845 = vunpack.c.l.b16 %v4279
    %v4846 = vunpack.c.h.b16 %v4279
    %v4847 = vunpack.c.l.b16 %v4280
    %v4848 = vunpack.c.h.b16 %v4280
    %v4849 = vunpack.c.l.b16 %v4281
    %v4850 = vunpack.c.h.b16 %v4281
    %v4851 = vunpack.c.l.b16 %v4282
    %v4852 = vunpack.c.h.b16 %v4282
    %v4853 = vunpack.c.l.b16 %v4283
    %v4854 = vunpack.c.h.b16 %v4283
    %v4855 = vunpack.c.l.b16 %v4284
    %v4856 = vunpack.c.h.b16 %v4284
    %v4857 = vunpack.c.l.b16 %v4285
    %v4858 = vunpack.c.h.b16 %v4285
    %v4859 = vunpack.c.l.b16 %v4286
    %v4860 = vunpack.c.h.b16 %v4286
    %v4861 = vunpack.c.l.b16 %v4287
    %v4862 = vunpack.c.h.b16 %v4287
    %v4863 = vunpack.c.l.b16 %v4288
    %v4864 = vunpack.c.h.b16 %v4288
    %v4865 = vunpack.c.l.b16 %v4289
    %v4866 = vunpack.c.h.b16 %v4289
    %v4867 = vunpack.c.l.b16 %v4290
    %v4868 = vunpack.c.h.b16 %v4290
    %v4869 = vunpack.c.l.b16 %v4291
    %v4870 = vunpack.c.h.b16 %v4291
    %v4871 = vunpack.c.l.b16 %v4292
    %v4872 = vunpack.c.h.b16 %v4292
    %v4873 = vunpack.c.l.b16 %v4293
    %v4874 = vunpack.c.h.b16 %v4293
    %v4875 = vunpack.c.l.b16 %v4294
    %v4876 = vunpack.c.h.b16 %v4294
    %v4877 = vunpack.c.l.b16 %v4295
    %v4878 = vunpack.c.h.b16 %v4295
    %v4879 = vunpack.c.l.b16 %v4296
    %v4880 = vunpack.c.h.b16 %v4296
    %v4881 = vunpack.c.l.b16 %v4297
    %v4882 = vunpack.c.h.b16 %v4297
    %v4883 = vunpack.c.l.b16 %v4298
    %v4884 = vunpack.c.h.b16 %v4298
    %v4885 = vunpack.c.l.b16 %v4299
    %v4886 = vunpack.c.h.b16 %v4299
    %v4887 = vunpack.c.l.b16 %v4300
    %v4888 = vunpack.c.h.b16 %v4300
    %v4889 = vunpack.c.l.b16 %v4301
    %v4890 = vunpack.c.h.b16 %v4301
    %v4891 = vunpack.c.l.b16 %v4302
    %v4892 = vunpack.c.h.b16 %v4302
    %v4893 = vunpack.c.l.b16 %v4303
    %v4894 = vunpack.c.h.b16 %v4303
    %v4895 = vunpack.c.l.b16 %v4304
    %v4896 = vunpack.c.h.b16 %v4304
    %v4897 = vunpack.c.l.b16 %v4305
    %v4898 = vunpack.c.h.b16 %v4305
    %v4899 = vunpack.c.l.b16 %v4306
    %v4900 = vunpack.c.h.b16 %v4306
    %v4901 = vunpack.c.l.b16 %v4307
    %v4902 = vunpack.c.h.b16 %v4307
    %v4903 = vunpack.c.l.b16 %v4308
    %v4904 = vunpack.c.h.b16 %v4308
    %v4905 = vunpack.c.l.b16 %v4309
    %v4906 = vunpack.c.h.b16 %v4309
    %v4907 = vunpack.c.l.b16 %v4310
    %v4908 = vunpack.c.h.b16 %v4310
    %v4909 = vunpack.c.l.b16 %v4311
    %v4910 = vunpack.c.h.b16 %v4311
    %v4911 = vunpack.c.l.b16 %v4312
    %v4912 = vunpack.c.h.b16 %v4312
    %v4913 = vunpack.c.l.b16 %v4313
    %v4914 = vunpack.c.h.b16 %v4313
    %v4915 = vunpack.c.l.b16 %v4314
    %v4916 = vunpack.c.h.b16 %v4314
    %v4917 = vunpack.c.l.b16 %v4315
    %v4918 = vunpack.c.h.b16 %v4315
    %v4919 = vunpack.c.l.b16 %v4316
    %v4920 = vunpack.c.h.b16 %v4316
    %v4921 = vunpack.c.l.b16 %v4317
    %v4922 = vunpack.c.h.b16 %v4317
    %v4923 = vunpack.c.l.b16 %v4318
    %v4924 = vunpack.c.h.b16 %v4318
    %v4925 = vunpack.c.l.b16 %v4319
    %v4926 = vunpack.c.h.b16 %v4319
    %v4927 = vunpack.c.l.b16 %v4320
    %v4928 = vunpack.c.h.b16 %v4320
    %v4929 = vunpack.c.l.b16 %v4321
    %v4930 = vunpack.c.h.b16 %v4321
    %v4931 = vunpack.c.l.b16 %v4322
    %v4932 = vunpack.c.h.b16 %v4322
    %v4933 = vunpack.c.l.b16 %v4323
    %v4934 = vunpack.c.h.b16 %v4323
    %v4935 = vunpack.c.l.b16 %v4324
    %v4936 = vunpack.c.h.b16 %v4324
    %v4937 = vunpack.c.l.b16 %v4325
    %v4938 = vunpack.c.h.b16 %v4325
    %v4939 = vunpack.c.l.b16 %v4326
    %v4940 = vunpack.c.h.b16 %v4326
    %v4941 = vunpack.c.l.b16 %v4327
    %v4942 = vunpack.c.h.b16 %v4327
    %v4943 = vunpack.c.l.b16 %v4328
    %v4944 = vunpack.c.h.b16 %v4328
    %v4945 = vunpack.c.l.b16 %v4329
    %v4946 = vunpack.c.h.b16 %v4329
    %v4947 = vunpack.c.l.b16 %v4330
    %v4948 = vunpack.c.h.b16 %v4330
    %v4949 = vunpack.c.l.b16 %v4331
    %v4950 = vunpack.c.h.b16 %v4331
    %v4951 = vunpack.c.l.b16 %v4332
    %v4952 = vunpack.c.h.b16 %v4332
    %v4953 = vunpack.c.l.b16 %v4333
    %v4954 = vunpack.c.h.b16 %v4333
    %v4955 = vunpack.c.l.b16 %v4334
    %v4956 = vunpack.c.h.b16 %v4334
    %v4957 = vunpack.c.l.b16 %v4335
    %v4958 = vunpack.c.h.b16 %v4335
    %v4959 = vunpack.c.l.b16 %v4336
    %v4960 = vunpack.c.h.b16 %v4336
    %v4961 = vunpack.c.l.b16 %v4337
    %v4962 = vunpack.c.h.b16 %v4337
    %v4963 = vunpack.c.l.b16 %v4338
    %v4964 = vunpack.c.h.b16 %v4338
    %v4965 = vunpack.c.l.b16 %v4339
    %v4966 = vunpack.c.h.b16 %v4339
    %v4967 = vunpack.c.l.b16 %v4340
    %v4968 = vunpack.c.h.b16 %v4340
    %v4969 = vunpack.c.l.b16 %v4341
    %v4970 = vunpack.c.h.b16 %v4341
    %v4971 = vunpack.c.l.b16 %v4342
    %v4972 = vunpack.c.h.b16 %v4342
    %v4973 = vunpack.c.l.b16 %v4343
    %v4974 = vunpack.c.h.b16 %v4343
    %v4975 = vunpack.c.l.b16 %v4344
    %v4976 = vunpack.c.h.b16 %v4344
    %v4977 = vunpack.c.l.b16 %v4345
    %v4978 = vunpack.c.h.b16 %v4345
    %v4979 = vunpack.c.l.b16 %v4346
    %v4980 = vunpack.c.h.b16 %v4346
    %v4981 = vunpack.c.l.b16 %v4347
    %v4982 = vunpack.c.h.b16 %v4347
    %v4983 = vunpack.c.l.b16 %v4348
    %v4984 = vunpack.c.h.b16 %v4348
    %v4985 = vunpack.c.l.b16 %v4349
    %v4986 = vunpack.c.h.b16 %v4349
    %v4987 = vunpack.c.l.b16 %v4350
    %v4988 = vunpack.c.h.b16 %v4350
    %v4989 = vunpack.c.l.b16 %v4351
    %v4990 = vunpack.c.h.b16 %v4351
    %v4991 = vunpack.c.l.b16 %v4352
    %v4992 = vunpack.c.h.b16 %v4352
    %v4993 = vunpack.c.l.b16 %v4353
    %v4994 = vunpack.c.h.b16 %v4353
    %v4995 = vunpack.c.l.b16 %v4354
    %v4996 = vunpack.c.h.b16 %v4354
    %v4997 = vunpack.c.l.b16 %v4355
    %v4998 = vunpack.c.h.b16 %v4355
    %v4999 = vunpack.c.l.b16 %v4356
    %v5000 = vunpack.c.h.b16 %v4356
    %v5001 = vunpack.c.l.b16 %v4357
    %v5002 = vunpack.c.h.b16 %v4357
    %v5003 = vunpack.c.l.b16 %v4358
    %v5004 = vunpack.c.h.b16 %v4358
    %v5005 = vunpack.c.l.b16 %v4359
    %v5006 = vunpack.c.h.b16 %v4359
    %v5007 = vunpack.c.l.b16 %v4360
    %v5008 = vunpack.c.h.b16 %v4360
    %v5009 = vunpack.c.l.b16 %v4361
    %v5010 = vunpack.c.h.b16 %v4361
    %v5011 = vunpack.c.l.b16 %v4362
    %v5012 = vunpack.c.h.b16 %v4362
    %v5013 = vunpack.c.l.b16 %v4363
    %v5014 = vunpack.c.h.b16 %v4363
    %v5015 = vunpack.c.l.b16 %v4364
    %v5016 = vunpack.c.h.b16 %v4364
    %v5017 = vunpack.c.l.b16 %v4365
    %v5018 = vunpack.c.h.b16 %v4365
    %v5019 = vunpack.c.l.b16 %v4366
    %v5020 = vunpack.c.h.b16 %v4366
    %v5021 = vunpack.c.l.b16 %v4367
    %v5022 = vunpack.c.h.b16 %v4367
    %v5023 = vunpack.c.l.b16 %v4368
    %v5024 = vunpack.c.h.b16 %v4368
    %v5025 = vunpack.c.l.b16 %v4369
    %v5026 = vunpack.c.h.b16 %v4369
    %v5027 = vunpack.c.l.b16 %v4370
    %v5028 = vunpack.c.h.b16 %v4370
    %v5029 = vunpack.c.l.b16 %v4371
    %v5030 = vunpack.c.h.b16 %v4371
    %v5031 = vunpack.c.l.b16 %v4372
    %v5032 = vunpack.c.h.b16 %v4372
    %v5033 = vunpack.c.l.b16 %v4373
    %v5034 = vunpack.c.h.b16 %v4373
    %v5035 = vunpack.c.l.b16 %v4374
    %v5036 = vunpack.c.h.b16 %v4374
    %v5037 = vunpack.c.l.b16 %v4375
    %v5038 = vunpack.c.h.b16 %v4375
    %v5039 = vunpack.c.l.b16 %v4376
    %v5040 = vunpack.c.h.b16 %v4376
    %v5041 = vunpack.c.l.b16 %v4377
    %v5042 = vunpack.c.h.b16 %v4377
    %v5043 = vunpack.c.l.b16 %v4378
    %v5044 = vunpack.c.h.b16 %v4378
    %v5045 = vunpack.c.l.b16 %v4379
    %v5046 = vunpack.c.h.b16 %v4379
    %v5047 = vunpack.c.l.b16 %v4380
    %v5048 = vunpack.c.h.b16 %v4380
    %v5049 = vunpack.c.l.b16 %v4381
    %v5050 = vunpack.c.h.b16 %v4381
    %v5051 = vunpack.c.l.b16 %v4382
    %v5052 = vunpack.c.h.b16 %v4382
    %v5053 = vunpack.c.l.b16 %v4383
    %v5054 = vunpack.c.h.b16 %v4383
    %v5055 = vunpack.c.l.b16 %v4384
    %v5056 = vunpack.c.h.b16 %v4384
    %v5057 = vunpack.c.l.b16 %v4385
    %v5058 = vunpack.c.h.b16 %v4385
    %v5059 = vunpack.c.l.b16 %v4386
    %v5060 = vunpack.c.h.b16 %v4386
    %v5061 = vunpack.c.l.b16 %v4387
    %v5062 = vunpack.c.h.b16 %v4387
    %v5063 = vunpack.c.l.b16 %v4388
    %v5064 = vunpack.c.h.b16 %v4388
    %v5065 = vunpack.c.l.b16 %v4389
    %v5066 = vunpack.c.h.b16 %v4389
    %v5067 = vunpack.c.l.b16 %v4390
    %v5068 = vunpack.c.h.b16 %v4390
    %v5069 = vunpack.c.l.b16 %v4391
    %v5070 = vunpack.c.h.b16 %v4391
    %v5071 = vunpack.c.l.b16 %v4392
    %v5072 = vunpack.c.h.b16 %v4392
    %v5073 = vunpack.c.l.b16 %v4393
    %v5074 = vunpack.c.h.b16 %v4393
    %v5075 = vunpack.c.l.b16 %v4394
    %v5076 = vunpack.c.h.b16 %v4394
    %v5077 = vunpack.c.l.b16 %v4395
    %v5078 = vunpack.c.h.b16 %v4395
    %v5079 = vunpack.c.l.b16 %v4396
    %v5080 = vunpack.c.h.b16 %v4396
    %v5081 = vunpack.c.l.b16 %v4397
    %v5082 = vunpack.c.h.b16 %v4397
    %v5083 = vunpack.c.l.b16 %v4398
    %v5084 = vunpack.c.h.b16 %v4398
    %v5085 = vunpack.c.l.b16 %v4399
    %v5086 = vunpack.c.h.b16 %v4399
    %v5087 = vunpack.c.l.b16 %v4400
    %v5088 = vunpack.c.h.b16 %v4400
    %v5089 = vunpack.c.l.b16 %v4401
    %v5090 = vunpack.c.h.b16 %v4401
    %v5091 = vunpack.c.l.b16 %v4402
    %v5092 = vunpack.c.h.b16 %v4402
    %v5093 = vunpack.c.l.b16 %v4403
    %v5094 = vunpack.c.h.b16 %v4403
    %v5095 = vunpack.c.l.b16 %v4404
    %v5096 = vunpack.c.h.b16 %v4404
    %v5097 = vunpack.c.l.b16 %v4405
    %v5098 = vunpack.c.h.b16 %v4405
    %v5099 = vunpack.c.l.b16 %v4406
    %v5100 = vunpack.c.h.b16 %v4406
    %v5101 = vunpack.c.l.b16 %v4407
    %v5102 = vunpack.c.h.b16 %v4407
    %v5103 = vunpack.c.l.b16 %v4408
    %v5104 = vunpack.c.h.b16 %v4408
    %v5105 = vunpack.c.l.b16 %v4409
    %v5106 = vunpack.c.h.b16 %v4409
    %v5107 = vunpack.c.l.b16 %v4410
    %v5108 = vunpack.c.h.b16 %v4410
    %v5109 = vunpack.c.l.b16 %v4411
    %v5110 = vunpack.c.h.b16 %v4411
    %v5111 = vunpack.c.l.b16 %v4412
    %v5112 = vunpack.c.h.b16 %v4412
    %v5113 = vunpack.c.l.b16 %v4413
    %v5114 = vunpack.c.h.b16 %v4413
    %v5115 = vunpack.c.l.b16 %v4414
    %v5116 = vunpack.c.h.b16 %v4414
    %v5117 = vunpack.c.l.b16 %v4415
    %v5118 = vunpack.c.h.b16 %v4415
    %v5119 = vunpack.c.l.b16 %v4416
    %v5120 = vunpack.c.h.b16 %v4416
    %v5121 = vunpack.c.l.b16 %v4417
    %v5122 = vunpack.c.h.b16 %v4417
    %v5123 = vunpack.c.l.b16 %v4418
    %v5124 = vunpack.c.h.b16 %v4418
    %v5125 = vunpack.c.l.b16 %v4419
    %v5126 = vunpack.c.h.b16 %v4419
    %v5127 = vunpack.c.l.b16 %v4420
    %v5128 = vunpack.c.h.b16 %v4420
    %v5129 = vunpack.c.l.b16 %v4421
    %v5130 = vunpack.c.h.b16 %v4421
    %v5131 = vunpack.c.l.b16 %v4422
    %v5132 = vunpack.c.h.b16 %v4422
    %v5133 = vunpack.c.l.b16 %v4423
    %v5134 = vunpack.c.h.b16 %v4423
    %v5135 = vunpack.c.l.b16 %v4424
    %v5136 = vunpack.c.h.b16 %v4424
    %v5137 = vunpack.c.l.b16 %v4425
    %v5138 = vunpack.c.h.b16 %v4425
    %v5139 = vunpack.c.l.b16 %v4426
    %v5140 = vunpack.c.h.b16 %v4426
    %v5141 = vunpack.c.l.b16 %v4427
    %v5142 = vunpack.c.h.b16 %v4427
    %v5143 = vunpack.c.l.b16 %v4428
    %v5144 = vunpack.c.h.b16 %v4428
    %v5145 = vunpack.c.l.b16 %v4429
    %v5146 = vunpack.c.h.b16 %v4429
    %v5147 = vunpack.c.l.b16 %v4430
    %v5148 = vunpack.c.h.b16 %v4430
    %v5149 = vunpack.c.l.b16 %v4431
    %v5150 = vunpack.c.h.b16 %v4431
    %v5151 = vunpack.c.l.b16 %v4432
    %v5152 = vunpack.c.h.b16 %v4432
    %v5153 = vunpack.c.l.b16 %v4433
    %v5154 = vunpack.c.h.b16 %v4433
    %v5155 = vunpack.c.l.b16 %v4434
    %v5156 = vunpack.c.h.b16 %v4434
    %v5157 = vunpack.c.l.b16 %v4435
    %v5158 = vunpack.c.h.b16 %v4435
    %v5159 = vunpack.c.l.b16 %v4436
    %v5160 = vunpack.c.h.b16 %v4436
    %v5161 = vunpack.c.l.b16 %v4437
    %v5162 = vunpack.c.h.b16 %v4437
    %v5163 = vunpack.c.l.b16 %v4438
    %v5164 = vunpack.c.h.b16 %v4438
    %v5165 = vunpack.c.l.b16 %v4439
    %v5166 = vunpack.c.h.b16 %v4439
    %v5167 = vunpack.c.l.b16 %v4440
    %v5168 = vunpack.c.h.b16 %v4440
    %v5169 = vunpack.c.l.b16 %v4441
    %v5170 = vunpack.c.h.b16 %v4441
    %v5171 = vunpack.c.l.b16 %v4442
    %v5172 = vunpack.c.h.b16 %v4442
    %v5173 = vunpack.c.l.b16 %v4443
    %v5174 = vunpack.c.h.b16 %v4443
    %v5175 = vunpack.c.l.b16 %v4444
    %v5176 = vunpack.c.h.b16 %v4444
    %v5177 = vunpack.c.l.b16 %v4445
    %v5178 = vunpack.c.h.b16 %v4445
    %v5179 = vunpack.c.l.b16 %v4446
    %v5180 = vunpack.c.h.b16 %v4446
    %v5181 = vunpack.c.l.b16 %v4447
    %v5182 = vunpack.c.h.b16 %v4447
    %v5183 = vunpack.c.l.b16 %v4448
    %v5184 = vunpack.c.h.b16 %v4448
    %v5185 = vunpack.c.l.b16 %v4449
    %v5186 = vunpack.c.h.b16 %v4449
    %v5187 = vunpack.c.l.b16 %v4450
    %v5188 = vunpack.c.h.b16 %v4450
    %v5189 = vunpack.c.l.b16 %v4451
    %v5190 = vunpack.c.h.b16 %v4451
    %v5191 = vunpack.c.l.b16 %v4452
    %v5192 = vunpack.c.h.b16 %v4452
    %v5193 = vunpack.c.l.b16 %v4453
    %v5194 = vunpack.c.h.b16 %v4453
    %v5195 = vunpack.c.l.b16 %v4454
    %v5196 = vunpack.c.h.b16 %v4454
    %v5197 = vunpack.c.l.b16 %v4455
    %v5198 = vunpack.c.h.b16 %v4455
    %v5199 = vunpack.c.l.b16 %v4456
    %v5200 = vunpack.c.h.b16 %v4456
    %v5201 = vunpack.c.l.b16 %v4457
    %v5202 = vunpack.c.h.b16 %v4457
    %v5203 = vunpack.c.l.b16 %v4458
    %v5204 = vunpack.c.h.b16 %v4458
    %v5205 = vunpack.c.l.b16 %v4459
    %v5206 = vunpack.c.h.b16 %v4459
    %v5207 = vunpack.c.l.b16 %v4460
    %v5208 = vunpack.c.h.b16 %v4460
    %v5209 = vunpack.c.l.b16 %v4461
    %v5210 = vunpack.c.h.b16 %v4461
    %v5211 = vunpack.c.l.b16 %v4462
    %v5212 = vunpack.c.h.b16 %v4462
    %v5213 = vunpack.c.l.b16 %v4463
    %v5214 = vunpack.c.h.b16 %v4463
    %v5215 = vunpack.c.l.b16 %v4464
    %v5216 = vunpack.c.h.b16 %v4464
    %v5217 = vunpack.c.l.b16 %v4465
    %v5218 = vunpack.c.h.b16 %v4465
    %v5219 = vunpack.c.l.b16 %v4466
    %v5220 = vunpack.c.h.b16 %v4466
    %v5221 = vunpack.c.l.b16 %v4467
    %v5222 = vunpack.c.h.b16 %v4467
    %v5223 = vunpack.c.l.b16 %v4468
    %v5224 = vunpack.c.h.b16 %v4468
    %v5225 = vunpack.c.l.b16 %v4469
    %v5226 = vunpack.c.h.b16 %v4469
    %v5227 = vunpack.c.l.b16 %v4470
    %v5228 = vunpack.c.h.b16 %v4470
    %v5229 = vunpack.c.l.b16 %v4471
    %v5230 = vunpack.c.h.b16 %v4471
    %v5231 = vunpack.c.l.b16 %v4472
    %v5232 = vunpack.c.h.b16 %v4472
    %v5233 = vunpack.c.l.b16 %v4473
    %v5234 = vunpack.c.h.b16 %v4473
    %v5235 = vunpack.c.l.b16 %v4474
    %v5236 = vunpack.c.h.b16 %v4474
    %v5237 = vunpack.c.l.b16 %v4475
    %v5238 = vunpack.c.h.b16 %v4475
    %v5239 = vunpack.c.l.b16 %v4476
    %v5240 = vunpack.c.h.b16 %v4476
    %v5241 = vunpack.c.l.b16 %v4477
    %v5242 = vunpack.c.h.b16 %v4477
    %v5243 = vunpack.c.l.b16 %v4478
    %v5244 = vunpack.c.h.b16 %v4478
    %v5245 = vunpack.c.l.b16 %v4479
    %v5246 = vunpack.c.h.b16 %v4479
    %v5247 = vunpack.c.l.b16 %v4480
    %v5248 = vunpack.c.h.b16 %v4480
    %v5249 = vunpack.c.l.b16 %v4481
    %v5250 = vunpack.c.h.b16 %v4481
    %v5251 = vunpack.c.l.b16 %v4482
    %v5252 = vunpack.c.h.b16 %v4482
    %v5253 = vunpack.c.l.b16 %v4483
    %v5254 = vunpack.c.h.b16 %v4483
    %v5255 = vunpack.c.l.b16 %v4484
    %v5256 = vunpack.c.h.b16 %v4484
    %v5257 = vunpack.c.l.b16 %v4485
    %v5258 = vunpack.c.h.b16 %v4485
    %v5259 = vunpack.c.l.b16 %v4486
    %v5260 = vunpack.c.h.b16 %v4486
    %v5261 = vunpack.c.l.b16 %v4487
    %v5262 = vunpack.c.h.b16 %v4487
    %v5263 = vunpack.c.l.b16 %v4488
    %v5264 = vunpack.c.h.b16 %v4488
    %v5265 = vunpack.c.l.b16 %v4489
    %v5266 = vunpack.c.h.b16 %v4489
    %v5267 = vunpack.c.l.b16 %v4490
    %v5268 = vunpack.c.h.b16 %v4490
    %v5269 = vunpack.c.l.b16 %v4491
    %v5270 = vunpack.c.h.b16 %v4491
    %v5271 = vunpack.c.l.b16 %v4492
    %v5272 = vunpack.c.h.b16 %v4492
    %v5273 = vunpack.c.l.b16 %v4493
    %v5274 = vunpack.c.h.b16 %v4493
    %v5275 = vunpack.c.l.b16 %v4494
    %v5276 = vunpack.c.h.b16 %v4494
    %v5277 = vunpack.c.l.b16 %v4495
    %v5278 = vunpack.c.h.b16 %v4495
    %v5279 = vunpack.c.l.b16 %v4496
    %v5280 = vunpack.c.h.b16 %v4496
    %v5281 = vunpack.c.l.b16 %v4497
    %v5282 = vunpack.c.h.b16 %v4497
    %v5283 = vunpack.c.l.b16 %v4498
    %v5284 = vunpack.c.h.b16 %v4498
    %v5285 = vunpack.c.l.b16 %v4499
    %v5286 = vunpack.c.h.b16 %v4499
    %v5287 = vunpack.c.l.b16 %v4500
    %v5288 = vunpack.c.h.b16 %v4500
    %v5289 = vunpack.c.l.b16 %v4501
    %v5290 = vunpack.c.h.b16 %v4501
    %v5291 = vunpack.c.l.b16 %v4502
    %v5292 = vunpack.c.h.b16 %v4502
    %v5293 = vpack.c.b16 %v4785, %v4781
    %v5294 = vpack.c.b16 %v4786, %v4782
    %v5295 = vpack.c.b16 %v4787, %v4783
    %v5296 = vpack.c.b16 %v4788, %v4784
    %v5297 = vpack.c.b16 %v4793, %v4789
    %v5298 = vpack.c.b16 %v4794, %v4790
    %v5299 = vpack.c.b16 %v4795, %v4791
    %v5300 = vpack.c.b16 %v4796, %v4792
    %v5301 = vpack.c.b16 %v4801, %v4797
    %v5302 = vpack.c.b16 %v4802, %v4798
    %v5303 = vpack.c.b16 %v4803, %v4799
    %v5304 = vpack.c.b16 %v4804, %v4800
    %v5305 = vpack.c.b16 %v4809, %v4805
    %v5306 = vpack.c.b16 %v4810, %v4806
    %v5307 = vpack.c.b16 %v4811, %v4807
    %v5308 = vpack.c.b16 %v4812, %v4808
    %v5309 = vpack.c.b16 %v4817, %v4813
    %v5310 = vpack.c.b16 %v4818, %v4814
    %v5311 = vpack.c.b16 %v4819, %v4815
    %v5312 = vpack.c.b16 %v4820, %v4816
    %v5313 = vpack.c.b16 %v4825, %v4821
    %v5314 = vpack.c.b16 %v4826, %v4822
    %v5315 = vpack.c.b16 %v4827, %v4823
    %v5316 = vpack.c.b16 %v4828, %v4824
    %v5317 = vpack.c.b16 %v4833, %v4829
    %v5318 = vpack.c.b16 %v4834, %v4830
    %v5319 = vpack.c.b16 %v4835, %v4831
    %v5320 = vpack.c.b16 %v4836, %v4832
    %v5321 = vpack.c.b16 %v4841, %v4837
    %v5322 = vpack.c.b16 %v4842, %v4838
    %v5323 = vpack.c.b16 %v4843, %v4839
    %v5324 = vpack.c.b16 %v4844, %v4840
    %v5325 = vpack.c.b16 %v4849, %v4845
    %v5326 = vpack.c.b16 %v4850, %v4846
    %v5327 = vpack.c.b16 %v4851, %v4847
    %v5328 = vpack.c.b16 %v4852, %v4848
    %v5329 = vpack.c.b16 %v4857, %v4853
    %v5330 = vpack.c.b16 %v4858, %v4854
    %v5331 = vpack.c.b16 %v4859, %v4855
    %v5332 = vpack.c.b16 %v4860, %v4856
    %v5333 = vpack.c.b16 %v4865, %v4861
    %v5334 = vpack.c.b16 %v4866, %v4862
    %v5335 = vpack.c.b16 %v4867, %v4863
    %v5336 = vpack.c.b16 %v4868, %v4864
    %v5337 = vpack.c.b16 %v4873, %v4869
    %v5338 = vpack.c.b16 %v4874, %v4870
    %v5339 = vpack.c.b16 %v4875, %v4871
    %v5340 = vpack.c.b16 %v4876, %v4872
    %v5341 = vpack.c.b16 %v4881, %v4877
    %v5342 = vpack.c.b16 %v4882, %v4878
    %v5343 = vpack.c.b16 %v4883, %v4879
    %v5344 = vpack.c.b16 %v4884, %v4880
    %v5345 = vpack.c.b16 %v4889, %v4885
    %v5346 = vpack.c.b16 %v4890, %v4886
    %v5347 = vpack.c.b16 %v4891, %v4887
    %v5348 = vpack.c.b16 %v4892, %v4888
    %v5349 = vpack.c.b16 %v4897, %v4893
    %v5350 = vpack.c.b16 %v4898, %v4894
    %v5351 = vpack.c.b16 %v4899, %v4895
    %v5352 = vpack.c.b16 %v4900, %v4896
    %v5353 = vpack.c.b16 %v4905, %v4901
    %v5354 = vpack.c.b16 %v4906, %v4902
    %v5355 = vpack.c.b16 %v4907, %v4903
    %v5356 = vpack.c.b16 %v4908, %v4904
    %v5357 = vpack.c.b16 %v4913, %v4909
    %v5358 = vpack.c.b16 %v4914, %v4910
    %v5359 = vpack.c.b16 %v4915, %v4911
    %v5360 = vpack.c.b16 %v4916, %v4912
    %v5361 = vpack.c.b16 %v4921, %v4917
    %v5362 = vpack.c.b16 %v4922, %v4918
    %v5363 = vpack.c.b16 %v4923, %v4919
    %v5364 = vpack.c.b16 %v4924, %v4920
    %v5365 = vpack.c.b16 %v4929, %v4925
    %v5366 = vpack.c.b16 %v4930, %v4926
    %v5367 = vpack.c.b16 %v4931, %v4927
    %v5368 = vpack.c.b16 %v4932, %v4928
    %v5369 = vpack.c.b16 %v4937, %v4933
    %v5370 = vpack.c.b16 %v4938, %v4934
    %v5371 = vpack.c.b16 %v4939, %v4935
    %v5372 = vpack.c.b16 %v4940, %v4936
    %v5373 = vpack.c.b16 %v4945, %v4941
    %v5374 = vpack.c.b16 %v4946, %v4942
    %v5375 = vpack.c.b16 %v4947, %v4943
    %v5376 = vpack.c.b16 %v4948, %v4944
    %v5377 = vpack.c.b16 %v4953, %v4949
    %v5378 = vpack.c.b16 %v4954, %v4950
    %v5379 = vpack.c.b16 %v4955, %v4951
    %v5380 = vpack.c.b16 %v4956, %v4952
    %v5381 = vpack.c.b16 %v4961, %v4957
    %v5382 = vpack.c.b16 %v4962, %v4958
    %v5383 = vpack.c.b16 %v4963, %v4959
    %v5384 = vpack.c.b16 %v4964, %v4960
    %v5385 = vpack.c.b16 %v4969, %v4965
    %v5386 = vpack.c.b16 %v4970, %v4966
    %v5387 = vpack.c.b16 %v4971, %v4967
    %v5388 = vpack.c.b16 %v4972, %v4968
    %v5389 = vpack.c.b16 %v4977, %v4973
    %v5390 = vpack.c.b16 %v4978, %v4974
    %v5391 = vpack.c.b16 %v4979, %v4975
    %v5392 = vpack.c.b16 %v4980, %v4976
    %v5393 = vpack.c.b16 %v4985, %v4981
    %v5394 = vpack.c.b16 %v4986, %v4982
    %v5395 = vpack.c.b16 %v4987, %v4983
    %v5396 = vpack.c.b16 %v4988, %v4984
    %v5397 = vpack.c.b16 %v4993, %v4989
    %v5398 = vpack.c.b16 %v4994, %v4990
    %v5399 = vpack.c.b16 %v4995, %v4991
    %v5400 = vpack.c.b16 %v4996, %v4992
    %v5401 = vpack.c.b16 %v5001, %v4997
    %v5402 = vpack.c.b16 %v5002, %v4998
    %v5403 = vpack.c.b16 %v5003, %v4999
    %v5404 = vpack.c.b16 %v5004, %v5000
    %v5405 = vpack.c.b16 %v5009, %v5005
    %v5406 = vpack.c.b16 %v5010, %v5006
    %v5407 = vpack.c.b16 %v5011, %v5007
    %v5408 = vpack.c.b16 %v5012, %v5008
    %v5409 = vpack.c.b16 %v5017, %v5013
    %v5410 = vpack.c.b16 %v5018, %v5014
    %v5411 = vpack.c.b16 %v5019, %v5015
    %v5412 = vpack.c.b16 %v5020, %v5016
    %v5413 = vpack.c.b16 %v5025, %v5021
    %v5414 = vpack.c.b16 %v5026, %v5022
    %v5415 = vpack.c.b16 %v5027, %v5023
    %v5416 = vpack.c.b16 %v5028, %v5024
    %v5417 = vpack.c.b16 %v5033, %v5029
    %v5418 = vpack.c.b16 %v5034, %v5030
    %v5419 = vpack.c.b16 %v5035, %v5031
    %v5420 = vpack.c.b16 %v5036, %v5032
    %v5421 = vpack.c.b16 %v5041, %v5037
    %v5422 = vpack.c.b16 %v5042, %v5038
    %v5423 = vpack.c.b16 %v5043, %v5039
    %v5424 = vpack.c.b16 %v5044, %v5040
    %v5425 = vpack.c.b16 %v5049, %v5045
    %v5426 = vpack.c.b16 %v5050, %v5046
    %v5427 = vpack.c.b16 %v5051, %v5047
    %v5428 = vpack.c.b16 %v5052, %v5048
    %v5429 = vpack.c.b16 %v5057, %v5053
    %v5430 = vpack.c.b16 %v5058, %v5054
    %v5431 = vpack.c.b16 %v5059, %v5055
    %v5432 = vpack.c.b16 %v5060, %v5056
    %v5433 = vpack.c.b16 %v5065, %v5061
    %v5434 = vpack.c.b16 %v5066, %v5062
    %v5435 = vpack.c.b16 %v5067, %v5063
    %v5436 = vpack.c.b16 %v5068, %v5064
    %v5437 = vpack.c.b16 %v5073, %v5069
    %v5438 = vpack.c.b16 %v5074, %v5070
    %v5439 = vpack.c.b16 %v5075, %v5071
    %v5440 = vpack.c.b16 %v5076, %v5072
    %v5441 = vpack.c.b16 %v5081, %v5077
    %v5442 = vpack.c.b16 %v5082, %v5078
    %v5443 = vpack.c.b16 %v5083, %v5079
    %v5444 = vpack.c.b16 %v5084, %v5080
    %v5445 = vpack.c.b16 %v5089, %v5085
    %v5446 = vpack.c.b16 %v5090, %v5086
    %v5447 = vpack.c.b16 %v5091, %v5087
    %v5448 = vpack.c.b16 %v5092, %v5088
    %v5449 = vpack.c.b16 %v5097, %v5093
    %v5450 = vpack.c.b16 %v5098, %v5094
    %v5451 = vpack.c.b16 %v5099, %v5095
    %v5452 = vpack.c.b16 %v5100, %v5096
    %v5453 = vpack.c.b16 %v5105, %v5101
    %v5454 = vpack.c.b16 %v5106, %v5102
    %v5455 = vpack.c.b16 %v5107, %v5103
    %v5456 = vpack.c.b16 %v5108, %v5104
    %v5457 = vpack.c.b16 %v5113, %v5109
    %v5458 = vpack.c.b16 %v5114, %v5110
    %v5459 = vpack.c.b16 %v5115, %v5111
    %v5460 = vpack.c.b16 %v5116, %v5112
    %v5461 = vpack.c.b16 %v5121, %v5117
    %v5462 = vpack.c.b16 %v5122, %v5118
    %v5463 = vpack.c.b16 %v5123, %v5119
    %v5464 = vpack.c.b16 %v5124, %v5120
    %v5465 = vpack.c.b16 %v5129, %v5125
    %v5466 = vpack.c.b16 %v5130, %v5126
    %v5467 = vpack.c.b16 %v5131, %v5127
    %v5468 = vpack.c.b16 %v5132, %v5128
    %v5469 = vpack.c.b16 %v5137, %v5133
    %v5470 = vpack.c.b16 %v5138, %v5134
    %v5471 = vpack.c.b16 %v5139, %v5135
    %v5472 = vpack.c.b16 %v5140, %v5136
    %v5473 = vpack.c.b16 %v5145, %v5141
    %v5474 = vpack.c.b16 %v5146, %v5142
    %v5475 = vpack.c.b16 %v5147, %v5143
    %v5476 = vpack.c.b16 %v5148, %v5144
    %v5477 = vpack.c.b16 %v5153, %v5149
    %v5478 = vpack.c.b16 %v5154, %v5150
    %v5479 = vpack.c.b16 %v5155, %v5151
    %v5480 = vpack.c.b16 %v5156, %v5152
    %v5481 = vpack.c.b16 %v5161, %v5157
    %v5482 = vpack.c.b16 %v5162, %v5158
    %v5483 = vpack.c.b16 %v5163, %v5159
    %v5484 = vpack.c.b16 %v5164, %v5160
    %v5485 = vpack.c.b16 %v5169, %v5165
    %v5486 = vpack.c.b16 %v5170, %v5166
    %v5487 = vpack.c.b16 %v5171, %v5167
    %v5488 = vpack.c.b16 %v5172, %v5168
    %v5489 = vpack.c.b16 %v5177, %v5173
    %v5490 = vpack.c.b16 %v5178, %v5174
    %v5491 = vpack.c.b16 %v5179, %v5175
    %v5492 = vpack.c.b16 %v5180, %v5176
    %v5493 = vpack.c.b16 %v5185, %v5181
    %v5494 = vpack.c.b16 %v5186, %v5182
    %v5495 = vpack.c.b16 %v5187, %v5183
    %v5496 = vpack.c.b16 %v5188, %v5184
    %v5497 = vpack.c.b16 %v5193, %v5189
    %v5498 = vpack.c.b16 %v5194, %v5190
    %v5499 = vpack.c.b16 %v5195, %v5191
    %v5500 = vpack.c.b16 %v5196, %v5192
    %v5501 = vpack.c.b16 %v5201, %v5197
    %v5502 = vpack.c.b16 %v5202, %v5198
    %v5503 = vpack.c.b16 %v5203, %v5199
    %v5504 = vpack.c.b16 %v5204, %v5200
    %v5505 = vpack.c.b16 %v5209, %v5205
    %v5506 = vpack.c.b16 %v5210, %v5206
    %v5507 = vpack.c.b16 %v5211, %v5207
    %v5508 = vpack.c.b16 %v5212, %v5208
    %v5509 = vpack.c.b16 %v5217, %v5213
    %v5510 = vpack.c.b16 %v5218, %v5214
    %v5511 = vpack.c.b16 %v5219, %v5215
    %v5512 = vpack.c.b16 %v5220, %v5216
    %v5513 = vpack.c.b16 %v5225, %v5221
    %v5514 = vpack.c.b16 %v5226, %v5222
    %v5515 = vpack.c.b16 %v5227, %v5223
    %v5516 = vpack.c.b16 %v5228, %v5224
    %v5517 = vpack.c.b16 %v5233, %v5229
    %v5518 = vpack.c.b16 %v5234, %v5230
    %v5519 = vpack.c.b16 %v5235, %v5231
    %v5520 = vpack.c.b16 %v5236, %v5232
    %v5521 = vpack.c.b16 %v5241, %v5237
    %v5522 = vpack.c.b16 %v5242, %v5238
    %v5523 = vpack.c.b16 %v5243, %v5239
    %v5524 = vpack.c.b16 %v5244, %v5240
    %v5525 = vpack.c.b16 %v5249, %v5245
    %v5526 = vpack.c.b16 %v5250, %v5246
    %v5527 = vpack.c.b16 %v5251, %v5247
    %v5528 = vpack.c.b16 %v5252, %v5248
    %v5529 = vpack.c.b16 %v5257, %v5253
    %v5530 = vpack.c.b16 %v5258, %v5254
    %v5531 = vpack.c.b16 %v5259, %v5255
    %v5532 = vpack.c.b16 %v5260, %v5256
    %v5533 = vpack.c.b16 %v5265, %v5261
    %v5534 = vpack.c.b16 %v5266, %v5262
    %v5535 = vpack.c.b16 %v5267, %v5263
    %v5536 = vpack.c.b16 %v5268, %v5264
    %v5537 = vpack.c.b16 %v5273, %v5269
    %v5538 = vpack.c.b16 %v5274, %v5270
    %v5539 = vpack.c.b16 %v5275, %v5271
    %v5540 = vpack.c.b16 %v5276, %v5272
    %v5541 = vpack.c.b16 %v5281, %v5277
    %v5542 = vpack.c.b16 %v5282, %v5278
    %v5543 = vpack.c.b16 %v5283, %v5279
    %v5544 = vpack.c.b16 %v5284, %v5280
    %v5545 = vpack.c.b16 %v5289, %v5285
    %v5546 = vpack.c.b16 %v5290, %v5286
    %v5547 = vpack.c.b16 %v5291, %v5287
    %v5548 = vpack.c.b16 %v5292, %v5288
    %5805 = vmatprep.subr.bf16.mxu0 %v5322
    %5806 = vmatpush1.bf16.msra.mxu0 %v5321
    %5807 = vmatprep.subr.bf16.mxu0 %v5318
    %5808 = vmatpush1.bf16.msra.mxu0 %v5317
    %5809 = vmatprep.subr.bf16.mxu0 %v5314
    %5810 = vmatpush1.bf16.msra.mxu0 %v5313
    %5811 = vmatprep.subr.bf16.mxu0 %v5310
    %5812 = vmatpush1.bf16.msra.mxu0 %v5309
    %5813 = vmatprep.subr.bf16.mxu0 %v5306
    %5814 = vmatpush1.bf16.msra.mxu0 %v5305
    %5815 = vmatprep.subr.bf16.mxu0 %v5302
    %5816 = vmatpush1.bf16.msra.mxu0 %v5301
    %5817 = vmatprep.subr.bf16.mxu0 %v5298
    %5818 = vmatpush1.bf16.msra.mxu0 %v5297
    %5819 = vmatprep.subr.bf16.mxu0 %v5294
    %5820 = vmatpush1.bf16.msra.mxu0 %v5293
    %5821 = vmatprep.subr.bf16.mxu0 %v5354
    %5822 = vmatpush2.bf16.msra.mxu0 %v5353
    %5823 = vmatprep.subr.bf16.mxu0 %v5350
    %5824 = vmatpush2.bf16.msra.mxu0 %v5349
    %5825 = vmatprep.subr.bf16.mxu0 %v5346
    %5826 = vmatpush2.bf16.msra.mxu0 %v5345
    %5827 = vmatprep.subr.bf16.mxu0 %v5342
    %5828 = vmatpush2.bf16.msra.mxu0 %v5341
    %5829 = vmatprep.subr.bf16.mxu0 %v5338
    %5830 = vmatpush2.bf16.msra.mxu0 %v5337
    %5831 = vmatprep.subr.bf16.mxu0 %v5334
    %5832 = vmatpush2.bf16.msra.mxu0 %v5333
    %5833 = vmatprep.subr.bf16.mxu0 %v5330
    %5834 = vmatpush2.bf16.msra.mxu0 %v5329
    %5835 = vmatprep.subr.bf16.mxu0 %v5326
    %5836 = vmatpush2.bf16.msra.mxu0 %v5325
    %5837 = vmatprep.mubr.bf16.mxu0 %v4240
    %5838 = vmatmul.mubr.bf16.gmra.mxu0 %v4239
    %v5839 = vpop.f32.mrf.mxu0
    %v5840 = vadd.f32 %v4508, %v5839
    %v5841 = vpop.f32.mrf.mxu0
    %v5842 = vadd.f32 %v4512, %v5841
    %v5843 = vpop.f32.mrf.mxu0
    %v5844 = vpop.f32.mrf.mxu0
    %5845 = vdwg.mxu0
    %5846 = vmatprep.subr.bf16.mxu0 %v5386
    %5847 = vmatpush1.bf16.msra.mxu0 %v5385
    %5848 = vmatprep.subr.bf16.mxu0 %v5382
    %5849 = vmatpush1.bf16.msra.mxu0 %v5381
    %5850 = vmatprep.subr.bf16.mxu0 %v5378
    %5851 = vmatpush1.bf16.msra.mxu0 %v5377
    %5852 = vmatprep.subr.bf16.mxu0 %v5374
    %5853 = vmatpush1.bf16.msra.mxu0 %v5373
    %5854 = vmatprep.subr.bf16.mxu0 %v5370
    %5855 = vmatpush1.bf16.msra.mxu0 %v5369
    %5856 = vmatprep.subr.bf16.mxu0 %v5366
    %5857 = vmatpush1.bf16.msra.mxu0 %v5365
    %5858 = vmatprep.subr.bf16.mxu0 %v5362
    %5859 = vmatpush1.bf16.msra.mxu0 %v5361
    %5860 = vmatprep.subr.bf16.mxu0 %v5358
    %5861 = vmatpush1.bf16.msra.mxu0 %v5357
    %5862 = vmatprep.subr.bf16.mxu0 %v5418
    %5863 = vmatpush2.bf16.msra.mxu0 %v5417
    %5864 = vmatprep.subr.bf16.mxu0 %v5414
    %5865 = vmatpush2.bf16.msra.mxu0 %v5413
    %5866 = vmatprep.subr.bf16.mxu0 %v5410
    %5867 = vmatpush2.bf16.msra.mxu0 %v5409
    %5868 = vmatprep.subr.bf16.mxu0 %v5406
    %5869 = vmatpush2.bf16.msra.mxu0 %v5405
    %5870 = vmatprep.subr.bf16.mxu0 %v5402
    %5871 = vmatpush2.bf16.msra.mxu0 %v5401
    %5872 = vmatprep.subr.bf16.mxu0 %v5398
    %5873 = vmatpush2.bf16.msra.mxu0 %v5397
    %5874 = vmatprep.subr.bf16.mxu0 %v5394
    %5875 = vmatpush2.bf16.msra.mxu0 %v5393
    %5876 = vmatprep.subr.bf16.mxu0 %v5390
    %5877 = vmatpush2.bf16.msra.mxu0 %v5389
    %5878 = vmatprep.mubr.bf16.mxu0 %v4242
    %5879 = vmatmul.mubr.bf16.gmra.mxu0 %v4241
    %v5880 = vpop.f32.mrf.mxu0
    %v5881 = vadd.f32 %v5840, %v5880
    %v5882 = vpop.f32.mrf.mxu0
    %v5883 = vadd.f32 %v5842, %v5882
    %v5884 = vpop.f32.mrf.mxu0
    %v5885 = vpop.f32.mrf.mxu0
    %5886 = vdwg.mxu0
    %5887 = vmatprep.subr.bf16.mxu0 %v5450
    %5888 = vmatpush1.bf16.msra.mxu0 %v5449
    %5889 = vmatprep.subr.bf16.mxu0 %v5446
    %5890 = vmatpush1.bf16.msra.mxu0 %v5445
    %5891 = vmatprep.subr.bf16.mxu0 %v5442
    %5892 = vmatpush1.bf16.msra.mxu0 %v5441
    %5893 = vmatprep.subr.bf16.mxu0 %v5438
    %5894 = vmatpush1.bf16.msra.mxu0 %v5437
    %5895 = vmatprep.subr.bf16.mxu0 %v5434
    %5896 = vmatpush1.bf16.msra.mxu0 %v5433
    %5897 = vmatprep.subr.bf16.mxu0 %v5430
    %5898 = vmatpush1.bf16.msra.mxu0 %v5429
    %5899 = vmatprep.subr.bf16.mxu0 %v5426
    %5900 = vmatpush1.bf16.msra.mxu0 %v5425
    %5901 = vmatprep.subr.bf16.mxu0 %v5422
    %5902 = vmatpush1.bf16.msra.mxu0 %v5421
    %5903 = vmatprep.subr.bf16.mxu0 %v5482
    %5904 = vmatpush2.bf16.msra.mxu0 %v5481
    %5905 = vmatprep.subr.bf16.mxu0 %v5478
    %5906 = vmatpush2.bf16.msra.mxu0 %v5477
    %5907 = vmatprep.subr.bf16.mxu0 %v5474
    %5908 = vmatpush2.bf16.msra.mxu0 %v5473
    %5909 = vmatprep.subr.bf16.mxu0 %v5470
    %5910 = vmatpush2.bf16.msra.mxu0 %v5469
    %5911 = vmatprep.subr.bf16.mxu0 %v5466
    %5912 = vmatpush2.bf16.msra.mxu0 %v5465
    %5913 = vmatprep.subr.bf16.mxu0 %v5462
    %5914 = vmatpush2.bf16.msra.mxu0 %v5461
    %5915 = vmatprep.subr.bf16.mxu0 %v5458
    %5916 = vmatpush2.bf16.msra.mxu0 %v5457
    %5917 = vmatprep.subr.bf16.mxu0 %v5454
    %5918 = vmatpush2.bf16.msra.mxu0 %v5453
    %5919 = vmatprep.mubr.bf16.mxu0 %v4244
    %5920 = vmatmul.mubr.bf16.gmra.mxu0 %v4243
    %v5921 = vpop.f32.mrf.mxu0
    %v5922 = vadd.f32 %v5881, %v5921
    %v5923 = vpop.f32.mrf.mxu0
    %v5924 = vadd.f32 %v5883, %v5923
    %v5925 = vpop.f32.mrf.mxu0
    %v5926 = vpop.f32.mrf.mxu0
    %5927 = vdwg.mxu0
    %5928 = vmatprep.subr.bf16.mxu0 %v5514
    %5929 = vmatpush1.bf16.msra.mxu0 %v5513
    %5930 = vmatprep.subr.bf16.mxu0 %v5510
    %5931 = vmatpush1.bf16.msra.mxu0 %v5509
    %5932 = vmatprep.subr.bf16.mxu0 %v5506
    %5933 = vmatpush1.bf16.msra.mxu0 %v5505
    %5934 = vmatprep.subr.bf16.mxu0 %v5502
    %5935 = vmatpush1.bf16.msra.mxu0 %v5501
    %5936 = vmatprep.subr.bf16.mxu0 %v5498
    %5937 = vmatpush1.bf16.msra.mxu0 %v5497
    %5938 = vmatprep.subr.bf16.mxu0 %v5494
    %5939 = vmatpush1.bf16.msra.mxu0 %v5493
    %5940 = vmatprep.subr.bf16.mxu0 %v5490
    %5941 = vmatpush1.bf16.msra.mxu0 %v5489
    %5942 = vmatprep.subr.bf16.mxu0 %v5486
    %5943 = vmatpush1.bf16.msra.mxu0 %v5485
    %5944 = vmatprep.subr.bf16.mxu0 %v5546
    %5945 = vmatpush2.bf16.msra.mxu0 %v5545
    %5946 = vmatprep.subr.bf16.mxu0 %v5542
    %5947 = vmatpush2.bf16.msra.mxu0 %v5541
    %5948 = vmatprep.subr.bf16.mxu0 %v5538
    %5949 = vmatpush2.bf16.msra.mxu0 %v5537
    %5950 = vmatprep.subr.bf16.mxu0 %v5534
    %5951 = vmatpush2.bf16.msra.mxu0 %v5533
    %5952 = vmatprep.subr.bf16.mxu0 %v5530
    %5953 = vmatpush2.bf16.msra.mxu0 %v5529
    %5954 = vmatprep.subr.bf16.mxu0 %v5526
    %5955 = vmatpush2.bf16.msra.mxu0 %v5525
    %5956 = vmatprep.subr.bf16.mxu0 %v5522
    %5957 = vmatpush2.bf16.msra.mxu0 %v5521
    %5958 = vmatprep.subr.bf16.mxu0 %v5518
    %5959 = vmatpush2.bf16.msra.mxu0 %v5517
    %5960 = vmatprep.mubr.bf16.mxu0 %v4246
    %5961 = vmatmul.mubr.bf16.gmra.mxu0 %v4245
    %v5962 = vpop.f32.mrf.mxu0
    %v5963 = vadd.f32 %v5922, %v5962
    %v5964 = vpop.f32.mrf.mxu0
    %v5965 = vadd.f32 %v5924, %v5964
    %v5966 = vpop.f32.mrf.mxu0
    %v5967 = vpop.f32.mrf.mxu0
    %5968 = vdwg.mxu0
    %5969 = vmatprep.subr.bf16.mxu0 %v5324
    %5970 = vmatpush1.bf16.msra.mxu0 %v5323
    %5971 = vmatprep.subr.bf16.mxu0 %v5320
    %5972 = vmatpush1.bf16.msra.mxu0 %v5319
    %5973 = vmatprep.subr.bf16.mxu0 %v5316
    %5974 = vmatpush1.bf16.msra.mxu0 %v5315
    %5975 = vmatprep.subr.bf16.mxu0 %v5312
    %5976 = vmatpush1.bf16.msra.mxu0 %v5311
    %5977 = vmatprep.subr.bf16.mxu0 %v5308
    %5978 = vmatpush1.bf16.msra.mxu0 %v5307
    %5979 = vmatprep.subr.bf16.mxu0 %v5304
    %5980 = vmatpush1.bf16.msra.mxu0 %v5303
    %5981 = vmatprep.subr.bf16.mxu0 %v5300
    %5982 = vmatpush1.bf16.msra.mxu0 %v5299
    %5983 = vmatprep.subr.bf16.mxu0 %v5296
    %5984 = vmatpush1.bf16.msra.mxu0 %v5295
    %5985 = vmatprep.subr.bf16.mxu0 %v5356
    %5986 = vmatpush2.bf16.msra.mxu0 %v5355
    %5987 = vmatprep.subr.bf16.mxu0 %v5352
    %5988 = vmatpush2.bf16.msra.mxu0 %v5351
    %5989 = vmatprep.subr.bf16.mxu0 %v5348
    %5990 = vmatpush2.bf16.msra.mxu0 %v5347
    %5991 = vmatprep.subr.bf16.mxu0 %v5344
    %5992 = vmatpush2.bf16.msra.mxu0 %v5343
    %5993 = vmatprep.subr.bf16.mxu0 %v5340
    %5994 = vmatpush2.bf16.msra.mxu0 %v5339
    %5995 = vmatprep.subr.bf16.mxu0 %v5336
    %5996 = vmatpush2.bf16.msra.mxu0 %v5335
    %5997 = vmatprep.subr.bf16.mxu0 %v5332
    %5998 = vmatpush2.bf16.msra.mxu0 %v5331
    %5999 = vmatprep.subr.bf16.mxu0 %v5328
    %6000 = vmatpush2.bf16.msra.mxu0 %v5327
    %6001 = vmatprep.mubr.bf16.mxu0 %v4240
    %6002 = vmatmul.mubr.bf16.gmra.mxu0 %v4239
    %v6003 = vpop.f32.mrf.mxu0
    %v6004 = vadd.f32 %v4516, %v6003
    %v6005 = vpop.f32.mrf.mxu0
    %v6006 = vadd.f32 %v4520, %v6005
    %v6007 = vpop.f32.mrf.mxu0
    %v6008 = vpop.f32.mrf.mxu0
    %6009 = vdwg.mxu0
    %6010 = vmatprep.subr.bf16.mxu0 %v5388
    %6011 = vmatpush1.bf16.msra.mxu0 %v5387
    %6012 = vmatprep.subr.bf16.mxu0 %v5384
    %6013 = vmatpush1.bf16.msra.mxu0 %v5383
    %6014 = vmatprep.subr.bf16.mxu0 %v5380
    %6015 = vmatpush1.bf16.msra.mxu0 %v5379
    %6016 = vmatprep.subr.bf16.mxu0 %v5376
    %6017 = vmatpush1.bf16.msra.mxu0 %v5375
    %6018 = vmatprep.subr.bf16.mxu0 %v5372
    %6019 = vmatpush1.bf16.msra.mxu0 %v5371
    %6020 = vmatprep.subr.bf16.mxu0 %v5368
    %6021 = vmatpush1.bf16.msra.mxu0 %v5367
    %6022 = vmatprep.subr.bf16.mxu0 %v5364
    %6023 = vmatpush1.bf16.msra.mxu0 %v5363
    %6024 = vmatprep.subr.bf16.mxu0 %v5360
    %6025 = vmatpush1.bf16.msra.mxu0 %v5359
    %6026 = vmatprep.subr.bf16.mxu0 %v5420
    %6027 = vmatpush2.bf16.msra.mxu0 %v5419
    %6028 = vmatprep.subr.bf16.mxu0 %v5416
    %6029 = vmatpush2.bf16.msra.mxu0 %v5415
    %6030 = vmatprep.subr.bf16.mxu0 %v5412
    %6031 = vmatpush2.bf16.msra.mxu0 %v5411
    %6032 = vmatprep.subr.bf16.mxu0 %v5408
    %6033 = vmatpush2.bf16.msra.mxu0 %v5407
    %6034 = vmatprep.subr.bf16.mxu0 %v5404
    %6035 = vmatpush2.bf16.msra.mxu0 %v5403
    %6036 = vmatprep.subr.bf16.mxu0 %v5400
    %6037 = vmatpush2.bf16.msra.mxu0 %v5399
    %6038 = vmatprep.subr.bf16.mxu0 %v5396
    %6039 = vmatpush2.bf16.msra.mxu0 %v5395
    %6040 = vmatprep.subr.bf16.mxu0 %v5392
    %6041 = vmatpush2.bf16.msra.mxu0 %v5391
    %6042 = vmatprep.mubr.bf16.mxu0 %v4242
    %6043 = vmatmul.mubr.bf16.gmra.mxu0 %v4241
    %v6044 = vpop.f32.mrf.mxu0
    %v6045 = vadd.f32 %v6004, %v6044
    %v6046 = vpop.f32.mrf.mxu0
    %v6047 = vadd.f32 %v6006, %v6046
    %v6048 = vpop.f32.mrf.mxu0
    %v6049 = vpop.f32.mrf.mxu0
    %6050 = vdwg.mxu0
    %6051 = vmatprep.subr.bf16.mxu0 %v5452
    %6052 = vmatpush1.bf16.msra.mxu0 %v5451
    %6053 = vmatprep.subr.bf16.mxu0 %v5448
    %6054 = vmatpush1.bf16.msra.mxu0 %v5447
    %6055 = vmatprep.subr.bf16.mxu0 %v5444
    %6056 = vmatpush1.bf16.msra.mxu0 %v5443
    %6057 = vmatprep.subr.bf16.mxu0 %v5440
    %6058 = vmatpush1.bf16.msra.mxu0 %v5439
    %6059 = vmatprep.subr.bf16.mxu0 %v5436
    %6060 = vmatpush1.bf16.msra.mxu0 %v5435
    %6061 = vmatprep.subr.bf16.mxu0 %v5432
    %6062 = vmatpush1.bf16.msra.mxu0 %v5431
    %6063 = vmatprep.subr.bf16.mxu0 %v5428
    %6064 = vmatpush1.bf16.msra.mxu0 %v5427
    %6065 = vmatprep.subr.bf16.mxu0 %v5424
    %6066 = vmatpush1.bf16.msra.mxu0 %v5423
    %6067 = vmatprep.subr.bf16.mxu0 %v5484
    %6068 = vmatpush2.bf16.msra.mxu0 %v5483
    %6069 = vmatprep.subr.bf16.mxu0 %v5480
    %6070 = vmatpush2.bf16.msra.mxu0 %v5479
    %6071 = vmatprep.subr.bf16.mxu0 %v5476
    %6072 = vmatpush2.bf16.msra.mxu0 %v5475
    %6073 = vmatprep.subr.bf16.mxu0 %v5472
    %6074 = vmatpush2.bf16.msra.mxu0 %v5471
    %6075 = vmatprep.subr.bf16.mxu0 %v5468
    %6076 = vmatpush2.bf16.msra.mxu0 %v5467
    %6077 = vmatprep.subr.bf16.mxu0 %v5464
    %6078 = vmatpush2.bf16.msra.mxu0 %v5463
    %6079 = vmatprep.subr.bf16.mxu0 %v5460
    %6080 = vmatpush2.bf16.msra.mxu0 %v5459
    %6081 = vmatprep.subr.bf16.mxu0 %v5456
    %6082 = vmatpush2.bf16.msra.mxu0 %v5455
    %6083 = vmatprep.mubr.bf16.mxu0 %v4244
    %6084 = vmatmul.mubr.bf16.gmra.mxu0 %v4243
    %v6085 = vpop.f32.mrf.mxu0
    %v6086 = vadd.f32 %v6045, %v6085
    %v6087 = vpop.f32.mrf.mxu0
    %v6088 = vadd.f32 %v6047, %v6087
    %v6089 = vpop.f32.mrf.mxu0
    %v6090 = vpop.f32.mrf.mxu0
    %6091 = vdwg.mxu0
    %6092 = vmatprep.subr.bf16.mxu0 %v5516
    %6093 = vmatpush1.bf16.msra.mxu0 %v5515
    %6094 = vmatprep.subr.bf16.mxu0 %v5512
    %6095 = vmatpush1.bf16.msra.mxu0 %v5511
    %6096 = vmatprep.subr.bf16.mxu0 %v5508
    %6097 = vmatpush1.bf16.msra.mxu0 %v5507
    %6098 = vmatprep.subr.bf16.mxu0 %v5504
    %6099 = vmatpush1.bf16.msra.mxu0 %v5503
    %6100 = vmatprep.subr.bf16.mxu0 %v5500
    %6101 = vmatpush1.bf16.msra.mxu0 %v5499
    %6102 = vmatprep.subr.bf16.mxu0 %v5496
    %6103 = vmatpush1.bf16.msra.mxu0 %v5495
    %6104 = vmatprep.subr.bf16.mxu0 %v5492
    %6105 = vmatpush1.bf16.msra.mxu0 %v5491
    %6106 = vmatprep.subr.bf16.mxu0 %v5488
    %6107 = vmatpush1.bf16.msra.mxu0 %v5487
    %6108 = vmatprep.subr.bf16.mxu0 %v5548
    %6109 = vmatpush2.bf16.msra.mxu0 %v5547
    %6110 = vmatprep.subr.bf16.mxu0 %v5544
    %6111 = vmatpush2.bf16.msra.mxu0 %v5543
    %6112 = vmatprep.subr.bf16.mxu0 %v5540
    %6113 = vmatpush2.bf16.msra.mxu0 %v5539
    %6114 = vmatprep.subr.bf16.mxu0 %v5536
    %6115 = vmatpush2.bf16.msra.mxu0 %v5535
    %6116 = vmatprep.subr.bf16.mxu0 %v5532
    %6117 = vmatpush2.bf16.msra.mxu0 %v5531
    %6118 = vmatprep.subr.bf16.mxu0 %v5528
    %6119 = vmatpush2.bf16.msra.mxu0 %v5527
    %6120 = vmatprep.subr.bf16.mxu0 %v5524
    %6121 = vmatpush2.bf16.msra.mxu0 %v5523
    %6122 = vmatprep.subr.bf16.mxu0 %v5520
    %6123 = vmatpush2.bf16.msra.mxu0 %v5519
    %6124 = vmatprep.mubr.bf16.mxu0 %v4246
    %6125 = vmatmul.mubr.bf16.gmra.mxu0 %v4245
    %v6126 = vpop.f32.mrf.mxu0
    %v6127 = vadd.f32 %v6086, %v6126
    %v6128 = vpop.f32.mrf.mxu0
    %v6129 = vadd.f32 %v6088, %v6128
    %v6130 = vpop.f32.mrf.mxu0
    %v6131 = vpop.f32.mrf.mxu0
    %6132 = vdwg.mxu0
    %6133 = vst [vmem:[#allocation17] sm:$0xff] %v5963
    %6134 = vst [vmem:[#allocation17 + $0x8] sm:$0xff] %v5965
    %6135 = vst [vmem:[#allocation17 + $0x10] sm:$0xff] %v6127
    %6136 = vst [vmem:[#allocation17 + $0x18] sm:$0xff] %v6129
    %v6137 = vld [vmem:[#allocation15] sm:$0xf]
    %v6139 = vlaneseq
    %v6140 = vshrl.u32 %v6139, 7
    %v6141 = vsub.s32 0, %v6140
    %v6142 = vrot.slane %v6137, %v6141
    %v6143 = vlaneseq
    %v6144 = vshrl.u32 %v6143, 7
    %v6145 = vsub.s32 1, %v6144
    %v6146 = vrot.slane %v6137, %v6145
    %v6147 = vlaneseq
    %v6148 = vshrl.u32 %v6147, 7
    %v6149 = vsub.s32 2, %v6148
    %v6150 = vrot.slane %v6137, %v6149
    %v6151 = vlaneseq
    %v6152 = vshrl.u32 %v6151, 7
    %v6153 = vsub.s32 3, %v6152
    %v6154 = vrot.slane %v6137, %v6153
    %v6159 = vmul.f32 %v5963, %v6142
    %v6160 = vmul.f32 %v5965, %v6146
    %v6161 = vmul.f32 %v6127, %v6150
    %v6162 = vmul.f32 %v6129, %v6154
    %v6163 = vadd.f32 %v6159, %v6160
    %v6164 = vadd.f32 %v6163, %v6161
    %v6165 = vadd.f32 %v6164, %v6162
    %6166 = vadd.xlane.f32.xlu0 %v6165
    %v6167 = vpop.xlane.xlu0 %6166
    %v6168 = vld [vmem:[#allocation2] sm:$0x1]
    %v6170 = vlaneseq
    %v6171 = vshrl.u32 %v6170, 7
    %v6172 = vsub.s32 0, %v6171
    %v6173 = vrot.slane %v6168, %v6172
    %v6175 = vadd.f32 %v6167, %v6173
    %v6176 = vxor.u32 %v6175, 2147483648
    %v6177 = vmul.f32 %v6176, 1.442695
    %v6178 = vpow.pop %v6177
    %v6179 = vadd.f32 %v6178, 1.0
    %v6180 = vrcp.pop %v6179
    %v6181 = vmul.f32 1.0, %v6180
    %6183 = vset.pattern.permute.xlu0 0
    %6184 = vperm.xlu0 %6183, %v6181
    %v6185 = vpop.permute.xlu0 %6184
    %6187 = vst [vmem:[%s10] sm:$0xff] %v6185
    // Predicated region
    $region70: #{icu_mlp.1} parent=1 // pred_check
      _
    $region71: #{icu_mlp.1} parent=1 // pred_check_branch
      %6189 = sbr.rel (0) target = $region73
    $region72: #{icu_mlp.1} parent=1 // pred_region
      %s6191 = ssub.s32 512, 512
      %6192 = vsyncadd [#allocation5], %s6191
      %s6194 = sshll.u32 [#allocation17], 4
      %s6195 = int_to_ptr.vmem [resolvable:$true] %s6194
      %6197 = dma.vmem_to_hbm [thread:$0]  %s6195, 512, %s9, [#allocation5]
    $region73: #{icu_mlp.1} parent=1 // pred_fallthru
      _
    // Predicated region
    $region74: #{icu_mlp.1} parent=1 // pred_check
      _
    $region75: #{icu_mlp.1} parent=1 // pred_check_branch
      %6199 = sbr.rel (0) target = $region77
    $region76: #{icu_mlp.1} parent=1 // pred_region
      _
    $region77: #{icu_mlp.1} parent=1 // pred_fallthru
      _
    // Predicated region
    $region78: #{icu_mlp.1} parent=1 // pred_check
      _
    $region79: #{icu_mlp.1} parent=1 // pred_check_branch
      %6201 = sbr.rel (0) target = $region81
    $region80: #{icu_mlp.1} parent=1 // pred_region
      %6202 = dma.done [#allocation5], 512
    $region81: #{icu_mlp.1} parent=1 // pred_fallthru
      _
    // Predicated region
    $region82: #{icu_mlp.1} parent=1 // pred_check
      _
    $region83: #{icu_mlp.1} parent=1 // pred_check_branch
      %6204 = sbr.rel (0) target = $region85
    $region84: #{icu_mlp.1} parent=1 // pred_region
      _
    $region85: #{icu_mlp.1} parent=1 // pred_fallthru
      _
    %6205 = vsyncpa [#allocation4], 1
    %6206 = vsyncpa [#allocation7], 1
    %6207 = vsyncpa [#allocation10], 1
    %6208 = vsyncpa [#allocation13], 1
    %6209 = vsyncpa [#allocation16], 1
    %6210 = vsyncpa [#allocation5], 1

</llo_original>
